<compile_context>
chip_gen: v6e
topology: v6e:2x2x1
jax: 0.10.0
libtpu: 0.0.40
codegen_flags: <defaults>
</compile_context>

<pallas_src>
import math

import jax
import jax.numpy as jnp
from jax.experimental import pallas as pl
from jax.experimental.pallas import tpu as pltpu  # noqa: F401  (TPU backend)

D   = 200          # feature_size / d_model
H   = 10           # nhead
DH  = D // H       # head dim = 20
FF  = 2048         # dim_feedforward (PyTorch TransformerEncoderLayer default)
EPS = 1e-5         # LayerNorm eps (PyTorch default)
NEG = -1e30        # large finite "minus infinity" (robust masking)

SEQ, BATCH = 8, 2
MAX_LEN = 64


# ----------------------------------------------------------------------------- kernel
def _layernorm(x, gamma, beta):
    mu = jnp.mean(x, axis=-1, keepdims=True)
    var = jnp.mean((x - mu) ** 2, axis=-1, keepdims=True)
    return (x - mu) * jax.lax.rsqrt(var + EPS) * gamma + beta


def transam_kernel(x_ref, pe_ref,
                   wqkv_ref, bqkv_ref, wo_ref, bo_ref,
                   w1_ref, b1_ref, w2_ref, b2_ref,
                   g1_ref, be1_ref, g2_ref, be2_ref,
                   kmask_ref, vmask_ref, seg_ref, bias_ref,
                   out_ref):
    # Single invocation over ALL B*S rows (collapsed batch+seq).
    n = x_ref.shape[0]          # B * S rows
    hn = H * n                  # head-expanded key axis

    # positional encoding (dropout = identity, eval mode)
    x = x_ref[...] + pe_ref[...]                                   # (n, D)

    # ---- fused Q/K/V projection: one (n,D)x(D,3D) MXU matmul ----
    qkv = jnp.dot(x, wqkv_ref[...], preferred_element_type=jnp.float32) + bqkv_ref[...]
    scale = 1.0 / math.sqrt(DH)
    q = qkv[:, 0 * D:1 * D] * scale                                # (n, D)
    k = qkv[:, 1 * D:2 * D]                                        # (n, D)
    v = qkv[:, 2 * D:3 * D]                                        # (n, D)

    # ---- all heads at once via block-masked full-width matmuls (no per-head loop) ----
    # k_exp[c, h*n + j] = k[j, c] if feature c belongs to head h else 0
    kT = k.T                                                       # (D, n)
    k_exp = jnp.concatenate([kT] * H, axis=1) * kmask_ref[...]     # (D, H*n)

    # scores[i, h*n + j] = <q_i, k_j> restricted to head h  -- ONE matmul
    s = jnp.dot(q, k_exp, preferred_element_type=jnp.float32)      # (n, H*n)

    # block-diagonal causal mask (causal within each batch element), additive bias
    s = s + bias_ref[...]

    # one batched softmax over every (row, head) group
    s = s - jnp.max(s, axis=-1, keepdims=True)                     # per-row max (valid shift)
    p = jnp.exp(s)                                                 # masked entries -> 0
    # per-(row, head) denominator, broadcast across each head block, via one matmul
    den = jnp.dot(p, seg_ref[...], preferred_element_type=jnp.float32)
    p = p * pl.reciprocal(den, approx=True)

    # ctx[i, c] = sum_j p[i, head(c)*n + j] * v[j, c]  -- ONE matmul
    v_exp = jnp.concatenate([v] * H, axis=0) * vmask_ref[...]      # (H*n, D)
    ctx = jnp.dot(p, v_exp, preferred_element_type=jnp.float32)    # (n, D)

    attn = jnp.dot(ctx, wo_ref[...], preferred_element_type=jnp.float32) + bo_ref[...]

    # ---- residual + LayerNorm 1 (post-norm, PyTorch default) ----
    y = _layernorm(x + attn, g1_ref[...], be1_ref[...])

    # ---- feed-forward: Linear -> ReLU -> Linear, bf16 weights/acts, f32 accumulation ----
    hid = jnp.dot(y.astype(jnp.bfloat16), w1_ref[...],
                  preferred_element_type=jnp.float32) + b1_ref[...]
    hid = jnp.maximum(hid, 0.0)
    ff = jnp.dot(hid.astype(jnp.bfloat16), w2_ref[...],
                 preferred_element_type=jnp.float32) + b2_ref[...]

    # ---- residual + LayerNorm 2, lane-dense (n, D) output ----
    out_ref[...] = _layernorm(y + ff, g2_ref[...], be2_ref[...])


# ----------------------------------------------------------------------------- wrapper
def _build_masks(batch, seq):
    """Constant mask/selector matrices, built with plain XLA in the wrapper."""
    n = batch * seq
    hn = H * n
    feat_head = jnp.arange(D)[:, None] // DH                 # (D, 1)   head of feature
    col_head = jnp.arange(hn)[None, :] // n                  # (1, hn)  head of expanded col
    kmask = (feat_head == col_head).astype(jnp.float32)      # (D, hn)
    vmask = kmask.T                                          # (hn, D)
    row_head = jnp.arange(hn)[:, None] // n
    seg = (row_head == (jnp.arange(hn)[None, :] // n)).astype(jnp.float32)   # (hn, hn)
    i = jnp.arange(n)[:, None]
    j = jnp.arange(hn)[None, :] % n
    allowed = (j <= i) & ((j // seq) == (i // seq))          # block-diag causal
    bias = jnp.where(allowed, 0.0, NEG).astype(jnp.float32)  # (n, hn) additive mask
    return kmask, vmask, seg, bias


def transam_forward(src, p):
    """src: (seq, batch, D) float32 — PyTorch layout. Returns (seq, batch, 1)."""
    S, B, _ = src.shape
    x = jnp.transpose(src, (1, 0, 2)).reshape(B * S, D)      # collapse to (B*S, D)
    pe = jnp.tile(p["pe"][:S], (B, 1))                       # (B*S, D)

    wqkv = jnp.concatenate([p["wq"], p["wk"], p["wv"]], axis=1)   # (D, 3D)
    bqkv = jnp.concatenate([p["bq"], p["bk"], p["bv"]], axis=1)   # (1, 3D)
    w1 = p["w1"].astype(jnp.bfloat16)
    w2 = p["w2"].astype(jnp.bfloat16)

    kmask, vmask, seg, bias = _build_masks(B, S)

    y = pl.pallas_call(
        transam_kernel,
        out_shape=jax.ShapeDtypeStruct((B * S, D), jnp.float32),
    )(x, pe, wqkv, bqkv, p["wo"], p["bo"],
      w1, p["b1"], w2, p["b2"],
      p["g1"], p["be1"], p["g2"], p["be2"],
      kmask, vmask, seg, bias)

    # decoder Linear(D, 1) kept in the wrapper so the kernel output stays lane-dense
    out = y @ p["wd"] + p["bd"]                              # (B*S, 1)
    return jnp.transpose(out.reshape(B, S, 1), (1, 0, 2))    # (S, B, 1)


# ----------------------------------------------------------------------------- params
def init_params():
    key = jax.random.PRNGKey(42)
    ks = jax.random.split(key, 12)

    def u(k, shape, scale):
        return jax.random.uniform(k, shape, jnp.float32, -scale, scale)

    # sinusoidal positional encoding (standard tutorial PositionalEncoding)
    position = jnp.arange(MAX_LEN, dtype=jnp.float32)[:, None]
    div_term = jnp.exp(jnp.arange(0, D, 2, dtype=jnp.float32) * (-math.log(10000.0) / D))
    pe = jnp.zeros((MAX_LEN, D), jnp.float32)
    pe = pe.at[:, 0::2].set(jnp.sin(position * div_term))
    pe = pe.at[:, 1::2].set(jnp.cos(position * div_term))

    s_d = 1.0 / math.sqrt(D)
    s_f = 1.0 / math.sqrt(FF)
    params = {
        "pe": pe,
        # attention projections, stored transposed as (in, out) for the kernel
        "wq": u(ks[0], (D, D), s_d), "wk": u(ks[1], (D, D), s_d), "wv": u(ks[2], (D, D), s_d),
        "bq": jnp.zeros((1, D), jnp.float32),
        "bk": jnp.zeros((1, D), jnp.float32),
        "bv": jnp.zeros((1, D), jnp.float32),
        "wo": u(ks[3], (D, D), s_d), "bo": jnp.zeros((1, D), jnp.float32),
        # feed-forward
        "w1": u(ks[4], (D, FF), s_d), "b1": u(ks[5], (1, FF), s_d),
        "w2": u(ks[6], (FF, D), s_f), "b2": u(ks[7], (1, D), s_f),
        # layernorms
        "g1": jnp.ones((1, D), jnp.float32), "be1": jnp.zeros((1, D), jnp.float32),
        "g2": jnp.ones((1, D), jnp.float32), "be2": jnp.zeros((1, D), jnp.float32),
        # decoder Linear(D, 1): uniform(-0.1, 0.1) weight, zero bias (init_weights)
        "wd": u(ks[8], (D, 1), 0.1), "bd": jnp.zeros((1, 1), jnp.float32),
    }
    return params


# ----------------------------------------------------------------------------- pure-JAX reference
def ref_forward(src, p):
    S, B, _ = src.shape
    x = jnp.transpose(src, (1, 0, 2)) + p["pe"][:S][None]

    def ln(y, g, b):
        mu = y.mean(-1, keepdims=True)
        var = ((y - mu) ** 2).mean(-1, keepdims=True)
        return (y - mu) / jnp.sqrt(var + EPS) * g + b

    q = (x @ p["wq"] + p["bq"]).reshape(B, S, H, DH)
    k = (x @ p["wk"] + p["bk"]).reshape(B, S, H, DH)
    v = (x @ p["wv"] + p["bv"]).reshape(B, S, H, DH)
    s = jnp.einsum("bqhd,bkhd->bhqk", q, k) / math.sqrt(DH)
    mask = jnp.tril(jnp.ones((S, S), bool))
    s = jnp.where(mask, s, -jnp.inf)
    pa = jax.nn.softmax(s, axis=-1)
    ctx = jnp.einsum("bhqk,bkhd->bqhd", pa, v).reshape(B, S, D)
    attn = ctx @ p["wo"] + p["bo"]
    x = ln(x + attn, p["g1"], p["be1"])
    ff = jnp.maximum(x @ p["w1"] + p["b1"], 0.0) @ p["w2"] + p["b2"]
    x = ln(x + ff, p["g2"], p["be2"])
    out = x @ p["wd"] + p["bd"]
    return jnp.transpose(out, (1, 0, 2))


# ----------------------------------------------------------------------------- main
if __name__ == "__main__":
    # TODO(synk): dropout layers are identity (eval mode); no stochastic dropout in-kernel.
    params = init_params()
    src = jax.random.normal(jax.random.PRNGKey(0), (SEQ, BATCH, D), jnp.float32)

    fwd = jax.jit(transam_forward)
    out = jax.block_until_ready(fwd(src, params))
    assert out.shape == (SEQ, BATCH, 1), out.shape

    ref = ref_forward(src, params)
    err = float(jnp.max(jnp.abs(out - ref)))
    # bf16 FFN + approx reciprocal vs. f32 reference -> allow 2e-2 (typ. observed ~1e-3..1e-2)
    assert err < 2e-2, f"max abs err {err}"

    print("KERNEL_OK")
</pallas_src>

<mosaic_0001>
module attributes {stable_mosaic.version = 11 : i64} {
  func.func @transam_kernel(%arg0: memref<16x200xf32, #tpu.memory_space<vmem>>, %arg1: memref<16x200xf32, #tpu.memory_space<vmem>>, %arg2: memref<200x600xf32, #tpu.memory_space<vmem>>, %arg3: memref<1x600xf32, #tpu.memory_space<vmem>>, %arg4: memref<200x200xf32, #tpu.memory_space<vmem>>, %arg5: memref<1x200xf32, #tpu.memory_space<vmem>>, %arg6: memref<200x2048xbf16, #tpu.memory_space<vmem>>, %arg7: memref<1x2048xf32, #tpu.memory_space<vmem>>, %arg8: memref<2048x200xbf16, #tpu.memory_space<vmem>>, %arg9: memref<1x200xf32, #tpu.memory_space<vmem>>, %arg10: memref<1x200xf32, #tpu.memory_space<vmem>>, %arg11: memref<1x200xf32, #tpu.memory_space<vmem>>, %arg12: memref<1x200xf32, #tpu.memory_space<vmem>>, %arg13: memref<1x200xf32, #tpu.memory_space<vmem>>, %arg14: memref<200x160xf32, #tpu.memory_space<vmem>>, %arg15: memref<160x200xf32, #tpu.memory_space<vmem>>, %arg16: memref<160x160xf32, #tpu.memory_space<vmem>>, %arg17: memref<16x160xf32, #tpu.memory_space<vmem>>, %arg18: memref<16x200xf32, #tpu.memory_space<vmem>>) attributes {dimension_semantics = [], scalar_prefetch = 0 : i64, scratch_operands = 0 : i64, tpu.core_type = #tpu.core_type<tc>} {
    %c0 = arith.constant 0 : index
    %c0_0 = arith.constant 0 : index
    %0 = vector.load %arg0[%c0, %c0_0] : memref<16x200xf32, #tpu.memory_space<vmem>>, vector<16x200xf32>
    %c0_1 = arith.constant 0 : index
    %c0_2 = arith.constant 0 : index
    %1 = vector.load %arg1[%c0_1, %c0_2] : memref<16x200xf32, #tpu.memory_space<vmem>>, vector<16x200xf32>
    %2 = arith.addf %0, %1 : vector<16x200xf32>
    %c0_3 = arith.constant 0 : index
    %c0_4 = arith.constant 0 : index
    %3 = vector.load %arg2[%c0_3, %c0_4] : memref<200x600xf32, #tpu.memory_space<vmem>>, vector<200x600xf32>
    %cst = arith.constant dense<0.000000e+00> : vector<16x600xf32>
    %4 = tpu.matmul %2, %3, %cst {dimension_numbers = #tpu.dot_dimension_numbers<[1], [0], [0], [1], [0, 0, 1, 1], [], []>} : vector<16x200xf32>, vector<200x600xf32>, vector<16x600xf32> -> vector<16x600xf32>
    %c0_5 = arith.constant 0 : index
    %c0_6 = arith.constant 0 : index
    %5 = vector.load %arg3[%c0_5, %c0_6] : memref<1x600xf32, #tpu.memory_space<vmem>>, vector<1x600xf32>
    %6 = vector.broadcast %5 : vector<1x600xf32> to vector<16x600xf32>
    %7 = arith.addf %4, %6 : vector<16x600xf32>
    %8 = vector.extract_strided_slice %7 {offsets = [0, 0], sizes = [16, 200], strides = [1, 1]} : vector<16x600xf32> to vector<16x200xf32>
    %cst_7 = arith.constant 0.223606795 : f32
    %9 = vector.broadcast %cst_7 : f32 to vector<16x200xf32>
    %10 = arith.mulf %8, %9 : vector<16x200xf32>
    %11 = vector.extract_strided_slice %7 {offsets = [0, 200], sizes = [16, 200], strides = [1, 1]} : vector<16x600xf32> to vector<16x200xf32>
    %12 = vector.extract_strided_slice %7 {offsets = [0, 400], sizes = [16, 200], strides = [1, 1]} : vector<16x600xf32> to vector<16x200xf32>
    %13 = tpu.transpose %11, [1, 0] : vector<16x200xf32> -> vector<200x16xf32>
    %14 = tpu.concatenate %13, %13, %13, %13, %13, %13, %13, %13, %13, %13 in 1 : vector<200x16xf32>, vector<200x16xf32>, vector<200x16xf32>, vector<200x16xf32>, vector<200x16xf32>, vector<200x16xf32>, vector<200x16xf32>, vector<200x16xf32>, vector<200x16xf32>, vector<200x16xf32> -> vector<200x160xf32>
    %c0_8 = arith.constant 0 : index
    %c0_9 = arith.constant 0 : index
    %15 = vector.load %arg14[%c0_8, %c0_9] : memref<200x160xf32, #tpu.memory_space<vmem>>, vector<200x160xf32>
    %16 = arith.mulf %14, %15 : vector<200x160xf32>
    %cst_10 = arith.constant dense<0.000000e+00> : vector<16x160xf32>
    %17 = tpu.matmul %10, %16, %cst_10 {dimension_numbers = #tpu.dot_dimension_numbers<[1], [0], [0], [1], [0, 0, 1, 1], [], []>} : vector<16x200xf32>, vector<200x160xf32>, vector<16x160xf32> -> vector<16x160xf32>
    %c0_11 = arith.constant 0 : index
    %c0_12 = arith.constant 0 : index
    %18 = vector.load %arg17[%c0_11, %c0_12] : memref<16x160xf32, #tpu.memory_space<vmem>>, vector<16x160xf32>
    %19 = arith.addf %17, %18 : vector<16x160xf32>
    %cst_13 = arith.constant dense<0xFF800000> : vector<16xf32>
    %20 = vector.multi_reduction <maximumf>, %19, %cst_13 [1] : vector<16x160xf32> to vector<16xf32>
    %21 = vector.shape_cast %20 : vector<16xf32> to vector<16x1xf32>
    %22 = vector.broadcast %21 : vector<16x1xf32> to vector<16x160xf32>
    %23 = arith.subf %19, %22 : vector<16x160xf32>
    %24 = math.exp %23 : vector<16x160xf32>
    %c0_14 = arith.constant 0 : index
    %c0_15 = arith.constant 0 : index
    %25 = vector.load %arg16[%c0_14, %c0_15] : memref<160x160xf32, #tpu.memory_space<vmem>>, vector<160x160xf32>
    %cst_16 = arith.constant dense<0.000000e+00> : vector<16x160xf32>
    %26 = tpu.matmul %24, %25, %cst_16 {dimension_numbers = #tpu.dot_dimension_numbers<[1], [0], [0], [1], [0, 0, 1, 1], [], []>} : vector<16x160xf32>, vector<160x160xf32>, vector<16x160xf32> -> vector<16x160xf32>
    %27 = tpu.reciprocal %26 {approx = true} : vector<16x160xf32> -> vector<16x160xf32>
    %28 = arith.mulf %24, %27 : vector<16x160xf32>
    %29 = tpu.concatenate %12, %12, %12, %12, %12, %12, %12, %12, %12, %12 in 0 : vector<16x200xf32>, vector<16x200xf32>, vector<16x200xf32>, vector<16x200xf32>, vector<16x200xf32>, vector<16x200xf32>, vector<16x200xf32>, vector<16x200xf32>, vector<16x200xf32>, vector<16x200xf32> -> vector<160x200xf32>
    %c0_17 = arith.constant 0 : index
    %c0_18 = arith.constant 0 : index
    %30 = vector.load %arg15[%c0_17, %c0_18] : memref<160x200xf32, #tpu.memory_space<vmem>>, vector<160x200xf32>
    %31 = arith.mulf %29, %30 : vector<160x200xf32>
    %cst_19 = arith.constant dense<0.000000e+00> : vector<16x200xf32>
    %32 = tpu.matmul %28, %31, %cst_19 {dimension_numbers = #tpu.dot_dimension_numbers<[1], [0], [0], [1], [0, 0, 1, 1], [], []>} : vector<16x160xf32>, vector<160x200xf32>, vector<16x200xf32> -> vector<16x200xf32>
    %c0_20 = arith.constant 0 : index
    %c0_21 = arith.constant 0 : index
    %33 = vector.load %arg4[%c0_20, %c0_21] : memref<200x200xf32, #tpu.memory_space<vmem>>, vector<200x200xf32>
    %cst_22 = arith.constant dense<0.000000e+00> : vector<16x200xf32>
    %34 = tpu.matmul %32, %33, %cst_22 {dimension_numbers = #tpu.dot_dimension_numbers<[1], [0], [0], [1], [0, 0, 1, 1], [], []>} : vector<16x200xf32>, vector<200x200xf32>, vector<16x200xf32> -> vector<16x200xf32>
    %c0_23 = arith.constant 0 : index
    %c0_24 = arith.constant 0 : index
    %35 = vector.load %arg5[%c0_23, %c0_24] : memref<1x200xf32, #tpu.memory_space<vmem>>, vector<1x200xf32>
    %36 = vector.broadcast %35 : vector<1x200xf32> to vector<16x200xf32>
    %37 = arith.addf %34, %36 : vector<16x200xf32>
    %38 = arith.addf %2, %37 : vector<16x200xf32>
    %c0_25 = arith.constant 0 : index
    %c0_26 = arith.constant 0 : index
    %39 = vector.load %arg10[%c0_25, %c0_26] : memref<1x200xf32, #tpu.memory_space<vmem>>, vector<1x200xf32>
    %c0_27 = arith.constant 0 : index
    %c0_28 = arith.constant 0 : index
    %40 = vector.load %arg11[%c0_27, %c0_28] : memref<1x200xf32, #tpu.memory_space<vmem>>, vector<1x200xf32>
    %cst_29 = arith.constant dense<0.000000e+00> : vector<16xf32>
    %41 = vector.multi_reduction <add>, %38, %cst_29 [1] : vector<16x200xf32> to vector<16xf32>
    %42 = vector.shape_cast %41 : vector<16xf32> to vector<16x1xf32>
    %cst_30 = arith.constant 2.000000e+02 : f32
    %43 = vector.broadcast %cst_30 : f32 to vector<16x1xf32>
    %44 = arith.divf %42, %43 : vector<16x1xf32>
    %45 = vector.broadcast %44 : vector<16x1xf32> to vector<16x200xf32>
    %46 = arith.subf %38, %45 : vector<16x200xf32>
    %47 = arith.mulf %46, %46 : vector<16x200xf32>
    %cst_31 = arith.constant dense<0.000000e+00> : vector<16xf32>
    %48 = vector.multi_reduction <add>, %47, %cst_31 [1] : vector<16x200xf32> to vector<16xf32>
    %49 = vector.shape_cast %48 : vector<16xf32> to vector<16x1xf32>
    %cst_32 = arith.constant 2.000000e+02 : f32
    %50 = vector.broadcast %cst_32 : f32 to vector<16x1xf32>
    %51 = arith.divf %49, %50 : vector<16x1xf32>
    %52 = vector.broadcast %44 : vector<16x1xf32> to vector<16x200xf32>
    %53 = arith.subf %38, %52 : vector<16x200xf32>
    %cst_33 = arith.constant 9.99999974E-6 : f32
    %54 = vector.broadcast %cst_33 : f32 to vector<16x1xf32>
    %55 = arith.addf %51, %54 : vector<16x1xf32>
    %56 = math.rsqrt %55 : vector<16x1xf32>
    %57 = vector.broadcast %56 : vector<16x1xf32> to vector<16x200xf32>
    %58 = arith.mulf %53, %57 : vector<16x200xf32>
    %59 = vector.broadcast %39 : vector<1x200xf32> to vector<16x200xf32>
    %60 = arith.mulf %58, %59 : vector<16x200xf32>
    %61 = vector.broadcast %40 : vector<1x200xf32> to vector<16x200xf32>
    %62 = arith.addf %60, %61 : vector<16x200xf32>
    %63 = arith.truncf %62 : vector<16x200xf32> to vector<16x200xbf16>
    %c0_34 = arith.constant 0 : index
    %c0_35 = arith.constant 0 : index
    %64 = vector.load %arg6[%c0_34, %c0_35] : memref<200x2048xbf16, #tpu.memory_space<vmem>>, vector<200x2048xbf16>
    %cst_36 = arith.constant dense<0.000000e+00> : vector<16x2048xf32>
    %65 = tpu.matmul %63, %64, %cst_36 {dimension_numbers = #tpu.dot_dimension_numbers<[1], [0], [0], [1], [0, 0, 1, 1], [], []>} : vector<16x200xbf16>, vector<200x2048xbf16>, vector<16x2048xf32> -> vector<16x2048xf32>
    %c0_37 = arith.constant 0 : index
    %c0_38 = arith.constant 0 : index
    %66 = vector.load %arg7[%c0_37, %c0_38] : memref<1x2048xf32, #tpu.memory_space<vmem>>, vector<1x2048xf32>
    %67 = vector.broadcast %66 : vector<1x2048xf32> to vector<16x2048xf32>
    %68 = arith.addf %65, %67 : vector<16x2048xf32>
    %cst_39 = arith.constant 0.000000e+00 : f32
    %69 = vector.broadcast %cst_39 : f32 to vector<16x2048xf32>
    %70 = arith.maximumf %68, %69 : vector<16x2048xf32>
    %71 = arith.truncf %70 : vector<16x2048xf32> to vector<16x2048xbf16>
    %c0_40 = arith.constant 0 : index
    %c0_41 = arith.constant 0 : index
    %72 = vector.load %arg8[%c0_40, %c0_41] : memref<2048x200xbf16, #tpu.memory_space<vmem>>, vector<2048x200xbf16>
    %cst_42 = arith.constant dense<0.000000e+00> : vector<16x200xf32>
    %73 = tpu.matmul %71, %72, %cst_42 {dimension_numbers = #tpu.dot_dimension_numbers<[1], [0], [0], [1], [0, 0, 1, 1], [], []>} : vector<16x2048xbf16>, vector<2048x200xbf16>, vector<16x200xf32> -> vector<16x200xf32>
    %c0_43 = arith.constant 0 : index
    %c0_44 = arith.constant 0 : index
    %74 = vector.load %arg9[%c0_43, %c0_44] : memref<1x200xf32, #tpu.memory_space<vmem>>, vector<1x200xf32>
    %75 = vector.broadcast %74 : vector<1x200xf32> to vector<16x200xf32>
    %76 = arith.addf %73, %75 : vector<16x200xf32>
    %77 = arith.addf %62, %76 : vector<16x200xf32>
    %c0_45 = arith.constant 0 : index
    %c0_46 = arith.constant 0 : index
    %78 = vector.load %arg12[%c0_45, %c0_46] : memref<1x200xf32, #tpu.memory_space<vmem>>, vector<1x200xf32>
    %c0_47 = arith.constant 0 : index
    %c0_48 = arith.constant 0 : index
    %79 = vector.load %arg13[%c0_47, %c0_48] : memref<1x200xf32, #tpu.memory_space<vmem>>, vector<1x200xf32>
    %cst_49 = arith.constant dense<0.000000e+00> : vector<16xf32>
    %80 = vector.multi_reduction <add>, %77, %cst_49 [1] : vector<16x200xf32> to vector<16xf32>
    %81 = vector.shape_cast %80 : vector<16xf32> to vector<16x1xf32>
    %cst_50 = arith.constant 2.000000e+02 : f32
    %82 = vector.broadcast %cst_50 : f32 to vector<16x1xf32>
    %83 = arith.divf %81, %82 : vector<16x1xf32>
    %84 = vector.broadcast %83 : vector<16x1xf32> to vector<16x200xf32>
    %85 = arith.subf %77, %84 : vector<16x200xf32>
    %86 = arith.mulf %85, %85 : vector<16x200xf32>
    %cst_51 = arith.constant dense<0.000000e+00> : vector<16xf32>
    %87 = vector.multi_reduction <add>, %86, %cst_51 [1] : vector<16x200xf32> to vector<16xf32>
    %88 = vector.shape_cast %87 : vector<16xf32> to vector<16x1xf32>
    %cst_52 = arith.constant 2.000000e+02 : f32
    %89 = vector.broadcast %cst_52 : f32 to vector<16x1xf32>
    %90 = arith.divf %88, %89 : vector<16x1xf32>
    %91 = vector.broadcast %83 : vector<16x1xf32> to vector<16x200xf32>
    %92 = arith.subf %77, %91 : vector<16x200xf32>
    %cst_53 = arith.constant 9.99999974E-6 : f32
    %93 = vector.broadcast %cst_53 : f32 to vector<16x1xf32>
    %94 = arith.addf %90, %93 : vector<16x1xf32>
    %95 = math.rsqrt %94 : vector<16x1xf32>
    %96 = vector.broadcast %95 : vector<16x1xf32> to vector<16x200xf32>
    %97 = arith.mulf %92, %96 : vector<16x200xf32>
    %98 = vector.broadcast %78 : vector<1x200xf32> to vector<16x200xf32>
    %99 = arith.mulf %97, %98 : vector<16x200xf32>
    %100 = vector.broadcast %79 : vector<1x200xf32> to vector<16x200xf32>
    %101 = arith.addf %99, %100 : vector<16x200xf32>
    %c0_54 = arith.constant 0 : index
    %c0_55 = arith.constant 0 : index
    %102 = vector.load %arg18[%c0_54, %c0_55] : memref<16x200xf32, #tpu.memory_space<vmem>>, vector<16x200xf32>
    tpu.vector_store %arg18[%c0_54, %c0_55], %101 {strides = array<i32>} : memref<16x200xf32, #tpu.memory_space<vmem>>, vector<16x200xf32>,
    return
  }
}

</mosaic_0001>

<llo_original>
// kernel: transam_forward.1
$region0: #{transam_forward.1}
  #allocation0 [shape = 'u32[]', space=smem, size = 0x4, offset = 0x4, fixed_abs, tag = 'smem constant byte address 0x4 - core index']
  #allocation1 [shape = 'u32[144,128]{1,0:T(1,128)}', space=vmem, size = 0x12000, scoped, tag = 'internal scratch']
  %s0 = inlined_call_operand.vmem [shape: f32[16,200], index: 0, kind: input, shape index: {}]
  %s1 = inlined_call_operand.vmem [shape: f32[16,200], index: 1, kind: input, shape index: {}]
  %s2 = inlined_call_operand.vmem [shape: f32[200,600], index: 2, kind: input, shape index: {}]
  %s3 = inlined_call_operand.vmem [shape: f32[1,600], index: 3, kind: input, shape index: {}]
  %s4 = inlined_call_operand.vmem [shape: f32[200,200], index: 4, kind: input, shape index: {}]
  %s5 = inlined_call_operand.vmem [shape: f32[1,200], index: 5, kind: input, shape index: {}]
  %s6 = inlined_call_operand.vmem [shape: bf16[200,2048], index: 6, kind: input, shape index: {}]
  %s7 = inlined_call_operand.vmem [shape: f32[1,2048], index: 7, kind: input, shape index: {}]
  %s8 = inlined_call_operand.vmem [shape: bf16[2048,200], index: 8, kind: input, shape index: {}]
  %s9 = inlined_call_operand.vmem [shape: f32[1,200], index: 9, kind: input, shape index: {}]
  %s10 = inlined_call_operand.vmem [shape: f32[1,200], index: 10, kind: input, shape index: {}]
  %s11 = inlined_call_operand.vmem [shape: f32[1,200], index: 11, kind: input, shape index: {}]
  %s12 = inlined_call_operand.vmem [shape: f32[1,200], index: 12, kind: input, shape index: {}]
  %s13 = inlined_call_operand.vmem [shape: f32[1,200], index: 13, kind: input, shape index: {}]
  %s14 = inlined_call_operand.vmem [shape: f32[200,160], index: 14, kind: input, shape index: {}]
  %s15 = inlined_call_operand.vmem [shape: f32[160,200], index: 15, kind: input, shape index: {}]
  %s16 = inlined_call_operand.vmem [shape: f32[160,160], index: 16, kind: input, shape index: {}]
  %s17 = inlined_call_operand.vmem [shape: f32[16,160], index: 17, kind: input, shape index: {}]
  %s18 = inlined_call_operand.vmem [shape: f32[16,200], index: 18, kind: output, shape index: {}]
  %s19 = sld [smem:[#allocation0]]
  $region82: #{transam_forward.1} parent=0
    _
  %s21 = ssub.s32 1, %s19
  %s22 = scalar_select 0, %s21, %s19
  // Predicated region
  $region2: #{transam_forward.1} parent=0 // pred_check
    _
  $region3: #{transam_forward.1} parent=0 // pred_check_branch
    %24 = sbr.rel (0) target = $region5
  $region4: #{transam_forward.1} parent=0 // pred_region
    _
  $region5: #{transam_forward.1} parent=0 // pred_fallthru
    _
  // Predicated region
  $region6: #{transam_forward.1} parent=0 // pred_check
    _
  $region7: #{transam_forward.1} parent=0 // pred_check_branch
    %26 = sbr.rel (0) target = $region9
  $region8: #{transam_forward.1} parent=0 // pred_region
    _
  $region9: #{transam_forward.1} parent=0 // pred_fallthru
    _
  // Predicated region
  $region10: #{transam_forward.1} parent=0 // pred_check
    _
  $region11: #{transam_forward.1} parent=0 // pred_check_branch
    %28 = sbr.rel (0) target = $region13
  $region12: #{transam_forward.1} parent=0 // pred_region
    _
  $region13: #{transam_forward.1} parent=0 // pred_fallthru
    _
  // Predicated region
  $region14: #{transam_forward.1} parent=0 // pred_check
    _
  $region15: #{transam_forward.1} parent=0 // pred_check_branch
    %30 = sbr.rel (0) target = $region17
  $region16: #{transam_forward.1} parent=0 // pred_region
    _
  $region17: #{transam_forward.1} parent=0 // pred_fallthru
    _
  // Predicated region
  $region18: #{transam_forward.1} parent=0 // pred_check
    _
  $region19: #{transam_forward.1} parent=0 // pred_check_branch
    %32 = sbr.rel (0) target = $region21
  $region20: #{transam_forward.1} parent=0 // pred_region
    _
  $region21: #{transam_forward.1} parent=0 // pred_fallthru
    _
  // Predicated region
  $region22: #{transam_forward.1} parent=0 // pred_check
    _
  $region23: #{transam_forward.1} parent=0 // pred_check_branch
    %34 = sbr.rel (0) target = $region25
  $region24: #{transam_forward.1} parent=0 // pred_region
    _
  $region25: #{transam_forward.1} parent=0 // pred_fallthru
    _
  // Predicated region
  $region26: #{transam_forward.1} parent=0 // pred_check
    _
  $region27: #{transam_forward.1} parent=0 // pred_check_branch
    %36 = sbr.rel (0) target = $region29
  $region28: #{transam_forward.1} parent=0 // pred_region
    _
  $region29: #{transam_forward.1} parent=0 // pred_fallthru
    _
  // Predicated region
  $region30: #{transam_forward.1} parent=0 // pred_check
    _
  $region31: #{transam_forward.1} parent=0 // pred_check_branch
    %38 = sbr.rel (0) target = $region33
  $region32: #{transam_forward.1} parent=0 // pred_region
    _
  $region33: #{transam_forward.1} parent=0 // pred_fallthru
    _
  // Predicated region
  $region34: #{transam_forward.1} parent=0 // pred_check
    _
  $region35: #{transam_forward.1} parent=0 // pred_check_branch
    %40 = sbr.rel (0) target = $region37
  $region36: #{transam_forward.1} parent=0 // pred_region
    _
  $region37: #{transam_forward.1} parent=0 // pred_fallthru
    _
  // Predicated region
  $region38: #{transam_forward.1} parent=0 // pred_check
    _
  $region39: #{transam_forward.1} parent=0 // pred_check_branch
    %42 = sbr.rel (0) target = $region41
  $region40: #{transam_forward.1} parent=0 // pred_region
    _
  $region41: #{transam_forward.1} parent=0 // pred_fallthru
    _
  // Predicated region
  $region42: #{transam_forward.1} parent=0 // pred_check
    _
  $region43: #{transam_forward.1} parent=0 // pred_check_branch
    %44 = sbr.rel (0) target = $region45
  $region44: #{transam_forward.1} parent=0 // pred_region
    _
  $region45: #{transam_forward.1} parent=0 // pred_fallthru
    _
  // Predicated region
  $region46: #{transam_forward.1} parent=0 // pred_check
    _
  $region47: #{transam_forward.1} parent=0 // pred_check_branch
    %46 = sbr.rel (0) target = $region49
  $region48: #{transam_forward.1} parent=0 // pred_region
    _
  $region49: #{transam_forward.1} parent=0 // pred_fallthru
    _
  // Predicated region
  $region50: #{transam_forward.1} parent=0 // pred_check
    _
  $region51: #{transam_forward.1} parent=0 // pred_check_branch
    %48 = sbr.rel (0) target = $region53
  $region52: #{transam_forward.1} parent=0 // pred_region
    _
  $region53: #{transam_forward.1} parent=0 // pred_fallthru
    _
  // Predicated region
  $region54: #{transam_forward.1} parent=0 // pred_check
    _
  $region55: #{transam_forward.1} parent=0 // pred_check_branch
    %50 = sbr.rel (0) target = $region57
  $region56: #{transam_forward.1} parent=0 // pred_region
    _
  $region57: #{transam_forward.1} parent=0 // pred_fallthru
    _
  // Predicated region
  $region58: #{transam_forward.1} parent=0 // pred_check
    _
  $region59: #{transam_forward.1} parent=0 // pred_check_branch
    %52 = sbr.rel (0) target = $region61
  $region60: #{transam_forward.1} parent=0 // pred_region
    _
  $region61: #{transam_forward.1} parent=0 // pred_fallthru
    _
  // Predicated region
  $region62: #{transam_forward.1} parent=0 // pred_check
    _
  $region63: #{transam_forward.1} parent=0 // pred_check_branch
    %54 = sbr.rel (0) target = $region65
  $region64: #{transam_forward.1} parent=0 // pred_region
    _
  $region65: #{transam_forward.1} parent=0 // pred_fallthru
    _
  // Predicated region
  $region66: #{transam_forward.1} parent=0 // pred_check
    _
  $region67: #{transam_forward.1} parent=0 // pred_check_branch
    %56 = sbr.rel (0) target = $region69
  $region68: #{transam_forward.1} parent=0 // pred_region
    _
  $region69: #{transam_forward.1} parent=0 // pred_fallthru
    _
  // Predicated region
  $region70: #{transam_forward.1} parent=0 // pred_check
    _
  $region71: #{transam_forward.1} parent=0 // pred_check_branch
    %58 = sbr.rel (0) target = $region73
  $region72: #{transam_forward.1} parent=0 // pred_region
    _
  $region73: #{transam_forward.1} parent=0 // pred_fallthru
    _
  %v60 = vld [vmem:[%s0] sm:$0xff]
  %v61 = vld [vmem:[%s0 + $0x8] sm:$0xff]
  %v62 = vld [vmem:[%s0 + $0x10] sm:$0xff]
  %v63 = vld [vmem:[%s0 + $0x18] sm:$0xff]
  %v64 = vld [vmem:[%s1] sm:$0xff]
  %v65 = vld [vmem:[%s1 + $0x8] sm:$0xff]
  %v66 = vld [vmem:[%s1 + $0x10] sm:$0xff]
  %v67 = vld [vmem:[%s1 + $0x18] sm:$0xff]
  %v68 = vadd.f32 %v60, %v64
  %v69 = vadd.f32 %v61, %v65
  %v70 = vadd.f32 %v62, %v66
  %v71 = vadd.f32 %v63, %v67
  %v72 = vld [vmem:[%s2] sm:$0xff]
  %v73 = vld [vmem:[%s2 + $0x8] sm:$0xff]
  %v74 = vld [vmem:[%s2 + $0x10] sm:$0xff]
  %v75 = vld [vmem:[%s2 + $0x18] sm:$0xff]
  %v76 = vld [vmem:[%s2 + $0x20] sm:$0xff]
  %v77 = vld [vmem:[%s2 + $0x28] sm:$0xff]
  %v78 = vld [vmem:[%s2 + $0x30] sm:$0xff]
  %v79 = vld [vmem:[%s2 + $0x38] sm:$0xff]
  %v80 = vld [vmem:[%s2 + $0x40] sm:$0xff]
  %v81 = vld [vmem:[%s2 + $0x48] sm:$0xff]
  %v82 = vld [vmem:[%s2 + $0x50] sm:$0xff]
  %v83 = vld [vmem:[%s2 + $0x58] sm:$0xff]
  %v84 = vld [vmem:[%s2 + $0x60] sm:$0xff]
  %v85 = vld [vmem:[%s2 + $0x68] sm:$0xff]
  %v86 = vld [vmem:[%s2 + $0x70] sm:$0xff]
  %v87 = vld [vmem:[%s2 + $0x78] sm:$0xff]
  %v88 = vld [vmem:[%s2 + $0x80] sm:$0xff]
  %v89 = vld [vmem:[%s2 + $0x88] sm:$0xff]
  %v90 = vld [vmem:[%s2 + $0x90] sm:$0xff]
  %v91 = vld [vmem:[%s2 + $0x98] sm:$0xff]
  %v92 = vld [vmem:[%s2 + $0xa0] sm:$0xff]
  %v93 = vld [vmem:[%s2 + $0xa8] sm:$0xff]
  %v94 = vld [vmem:[%s2 + $0xb0] sm:$0xff]
  %v95 = vld [vmem:[%s2 + $0xb8] sm:$0xff]
  %v96 = vld [vmem:[%s2 + $0xc0] sm:$0xff]
  %v97 = vld [vmem:[%s2 + $0xc8] sm:$0xff]
  %v98 = vld [vmem:[%s2 + $0xd0] sm:$0xff]
  %v99 = vld [vmem:[%s2 + $0xd8] sm:$0xff]
  %v100 = vld [vmem:[%s2 + $0xe0] sm:$0xff]
  %v101 = vld [vmem:[%s2 + $0xe8] sm:$0xff]
  %v102 = vld [vmem:[%s2 + $0xf0] sm:$0xff]
  %v103 = vld [vmem:[%s2 + $0xf8] sm:$0xff]
  %v104 = vld [vmem:[%s2 + $0x100] sm:$0xff]
  %v105 = vld [vmem:[%s2 + $0x108] sm:$0xff]
  %v106 = vld [vmem:[%s2 + $0x110] sm:$0xff]
  %v107 = vld [vmem:[%s2 + $0x118] sm:$0xff]
  %v108 = vld [vmem:[%s2 + $0x120] sm:$0xff]
  %v109 = vld [vmem:[%s2 + $0x128] sm:$0xff]
  %v110 = vld [vmem:[%s2 + $0x130] sm:$0xff]
  %v111 = vld [vmem:[%s2 + $0x138] sm:$0xff]
  %v112 = vld [vmem:[%s2 + $0x140] sm:$0xff]
  %v113 = vld [vmem:[%s2 + $0x148] sm:$0xff]
  %v114 = vld [vmem:[%s2 + $0x150] sm:$0xff]
  %v115 = vld [vmem:[%s2 + $0x158] sm:$0xff]
  %v116 = vld [vmem:[%s2 + $0x160] sm:$0xff]
  %v117 = vld [vmem:[%s2 + $0x168] sm:$0xff]
  %v118 = vld [vmem:[%s2 + $0x170] sm:$0xff]
  %v119 = vld [vmem:[%s2 + $0x178] sm:$0xff]
  %v120 = vld [vmem:[%s2 + $0x180] sm:$0xff]
  %v121 = vld [vmem:[%s2 + $0x188] sm:$0xff]
  %v122 = vld [vmem:[%s2 + $0x190] sm:$0xff]
  %v123 = vld [vmem:[%s2 + $0x198] sm:$0xff]
  %v124 = vld [vmem:[%s2 + $0x1a0] sm:$0xff]
  %v125 = vld [vmem:[%s2 + $0x1a8] sm:$0xff]
  %v126 = vld [vmem:[%s2 + $0x1b0] sm:$0xff]
  %v127 = vld [vmem:[%s2 + $0x1b8] sm:$0xff]
  %v128 = vld [vmem:[%s2 + $0x1c0] sm:$0xff]
  %v129 = vld [vmem:[%s2 + $0x1c8] sm:$0xff]
  %v130 = vld [vmem:[%s2 + $0x1d0] sm:$0xff]
  %v131 = vld [vmem:[%s2 + $0x1d8] sm:$0xff]
  %v132 = vld [vmem:[%s2 + $0x1e0] sm:$0xff]
  %v133 = vld [vmem:[%s2 + $0x1e8] sm:$0xff]
  %v134 = vld [vmem:[%s2 + $0x1f0] sm:$0xff]
  %v135 = vld [vmem:[%s2 + $0x1f8] sm:$0xff]
  %v136 = vld [vmem:[%s2 + $0x200] sm:$0xff]
  %v137 = vld [vmem:[%s2 + $0x208] sm:$0xff]
  %v138 = vld [vmem:[%s2 + $0x210] sm:$0xff]
  %v139 = vld [vmem:[%s2 + $0x218] sm:$0xff]
  %v140 = vld [vmem:[%s2 + $0x220] sm:$0xff]
  %v141 = vld [vmem:[%s2 + $0x228] sm:$0xff]
  %v142 = vld [vmem:[%s2 + $0x230] sm:$0xff]
  %v143 = vld [vmem:[%s2 + $0x238] sm:$0xff]
  %v144 = vld [vmem:[%s2 + $0x240] sm:$0xff]
  %v145 = vld [vmem:[%s2 + $0x248] sm:$0xff]
  %v146 = vld [vmem:[%s2 + $0x250] sm:$0xff]
  %v147 = vld [vmem:[%s2 + $0x258] sm:$0xff]
  %v148 = vld [vmem:[%s2 + $0x260] sm:$0xff]
  %v149 = vld [vmem:[%s2 + $0x268] sm:$0xff]
  %v150 = vld [vmem:[%s2 + $0x270] sm:$0xff]
  %v151 = vld [vmem:[%s2 + $0x278] sm:$0xff]
  %v152 = vld [vmem:[%s2 + $0x280] sm:$0xff]
  %v153 = vld [vmem:[%s2 + $0x288] sm:$0xff]
  %v154 = vld [vmem:[%s2 + $0x290] sm:$0xff]
  %v155 = vld [vmem:[%s2 + $0x298] sm:$0xff]
  %v156 = vld [vmem:[%s2 + $0x2a0] sm:$0xff]
  %v157 = vld [vmem:[%s2 + $0x2a8] sm:$0xff]
  %v158 = vld [vmem:[%s2 + $0x2b0] sm:$0xff]
  %v159 = vld [vmem:[%s2 + $0x2b8] sm:$0xff]
  %v160 = vld [vmem:[%s2 + $0x2c0] sm:$0xff]
  %v161 = vld [vmem:[%s2 + $0x2c8] sm:$0xff]
  %v162 = vld [vmem:[%s2 + $0x2d0] sm:$0xff]
  %v163 = vld [vmem:[%s2 + $0x2d8] sm:$0xff]
  %v164 = vld [vmem:[%s2 + $0x2e0] sm:$0xff]
  %v165 = vld [vmem:[%s2 + $0x2e8] sm:$0xff]
  %v166 = vld [vmem:[%s2 + $0x2f0] sm:$0xff]
  %v167 = vld [vmem:[%s2 + $0x2f8] sm:$0xff]
  %v168 = vld [vmem:[%s2 + $0x300] sm:$0xff]
  %v169 = vld [vmem:[%s2 + $0x308] sm:$0xff]
  %v170 = vld [vmem:[%s2 + $0x310] sm:$0xff]
  %v171 = vld [vmem:[%s2 + $0x318] sm:$0xff]
  %v172 = vld [vmem:[%s2 + $0x320] sm:$0xff]
  %v173 = vld [vmem:[%s2 + $0x328] sm:$0xff]
  %v174 = vld [vmem:[%s2 + $0x330] sm:$0xff]
  %v175 = vld [vmem:[%s2 + $0x338] sm:$0xff]
  %v176 = vld [vmem:[%s2 + $0x340] sm:$0xff]
  %v177 = vld [vmem:[%s2 + $0x348] sm:$0xff]
  %v178 = vld [vmem:[%s2 + $0x350] sm:$0xff]
  %v179 = vld [vmem:[%s2 + $0x358] sm:$0xff]
  %v180 = vld [vmem:[%s2 + $0x360] sm:$0xff]
  %v181 = vld [vmem:[%s2 + $0x368] sm:$0xff]
  %v182 = vld [vmem:[%s2 + $0x370] sm:$0xff]
  %v183 = vld [vmem:[%s2 + $0x378] sm:$0xff]
  %v184 = vld [vmem:[%s2 + $0x380] sm:$0xff]
  %v185 = vld [vmem:[%s2 + $0x388] sm:$0xff]
  %v186 = vld [vmem:[%s2 + $0x390] sm:$0xff]
  %v187 = vld [vmem:[%s2 + $0x398] sm:$0xff]
  %v188 = vld [vmem:[%s2 + $0x3a0] sm:$0xff]
  %v189 = vld [vmem:[%s2 + $0x3a8] sm:$0xff]
  %v190 = vld [vmem:[%s2 + $0x3b0] sm:$0xff]
  %v191 = vld [vmem:[%s2 + $0x3b8] sm:$0xff]
  %v192 = vld [vmem:[%s2 + $0x3c0] sm:$0xff]
  %v193 = vld [vmem:[%s2 + $0x3c8] sm:$0xff]
  %v194 = vld [vmem:[%s2 + $0x3d0] sm:$0xff]
  %v195 = vld [vmem:[%s2 + $0x3d8] sm:$0xff]
  %v196 = vld [vmem:[%s2 + $0x3e0] sm:$0xff]
  %v197 = vld [vmem:[%s3] sm:$0x1f]
  %v199 = vlaneseq
  %v200 = vshrl.u32 %v199, 7
  %v201 = vsub.s32 0, %v200
  %v202 = vrot.slane %v197, %v201
  %v203 = vlaneseq
  %v204 = vshrl.u32 %v203, 7
  %v205 = vsub.s32 1, %v204
  %v206 = vrot.slane %v197, %v205
  %v207 = vlaneseq
  %v208 = vshrl.u32 %v207, 7
  %v209 = vsub.s32 2, %v208
  %v210 = vrot.slane %v197, %v209
  %v211 = vlaneseq
  %v212 = vshrl.u32 %v211, 7
  %v213 = vsub.s32 3, %v212
  %v214 = vrot.slane %v197, %v213
  %v215 = vlaneseq
  %v216 = vshrl.u32 %v215, 7
  %v217 = vsub.s32 4, %v216
  %v218 = vrot.slane %v197, %v217
  %vm224 = vcmask 588800
  %v226 = vsel %vm224, %v69, 0
  %v229 = vsel %vm224, %v71, 0
  %231 = vmatprep.subr.mxu0 %v148
  %232 = vmatpush1.msra.mxu0 %v147
  %233 = vmatprep.subr.mxu0 %v143
  %234 = vmatpush1.msra.mxu0 %v142
  %235 = vmatprep.subr.mxu0 %v138
  %236 = vmatpush1.msra.mxu0 %v137
  %237 = vmatprep.subr.mxu0 %v133
  %238 = vmatpush1.msra.mxu0 %v132
  %239 = vmatprep.subr.mxu0 %v128
  %240 = vmatpush1.msra.mxu0 %v127
  %241 = vmatprep.subr.mxu0 %v123
  %242 = vmatpush1.msra.mxu0 %v122
  %243 = vmatprep.subr.mxu0 %v118
  %244 = vmatpush1.msra.mxu0 %v117
  %245 = vmatprep.subr.mxu0 %v113
  %246 = vmatpush1.msra.mxu0 %v112
  %247 = vmatprep.subr.mxu0 %v108
  %248 = vmatpush1.msra.mxu0 %v107
  %249 = vmatprep.subr.mxu0 %v103
  %250 = vmatpush1.msra.mxu0 %v102
  %251 = vmatprep.subr.mxu0 %v98
  %252 = vmatpush1.msra.mxu0 %v97
  %253 = vmatprep.subr.mxu0 %v93
  %254 = vmatpush1.msra.mxu0 %v92
  %255 = vmatprep.subr.mxu0 %v88
  %256 = vmatpush1.msra.mxu0 %v87
  %257 = vmatprep.subr.mxu0 %v83
  %258 = vmatpush1.msra.mxu0 %v82
  %259 = vmatprep.subr.mxu0 %v78
  %260 = vmatpush1.msra.mxu0 %v77
  %261 = vmatprep.subr.mxu0 %v73
  %262 = vmatpush1.msra.mxu0 %v72
  %263 = vmatprep.subr.mxu0 0.0
  %264 = vmatpush2.msra.mxu0 0.0
  %265 = vmatprep.subr.mxu0 0.0
  %266 = vmatpush2.msra.mxu0 0.0
  %267 = vmatprep.subr.mxu0 0.0
  %268 = vmatpush2.msra.mxu0 0.0
  %269 = vmatprep.subr.mxu0 0.0
  %270 = vmatpush2.msra.mxu0 0.0
  %271 = vmatprep.subr.mxu0 0.0
  %272 = vmatpush2.msra.mxu0 0.0
  %273 = vmatprep.subr.mxu0 0.0
  %274 = vmatpush2.msra.mxu0 0.0
  %275 = vmatprep.subr.mxu0 0.0
  %276 = vmatpush2.msra.mxu0 0.0
  %277 = vmatprep.subr.mxu0 %v193
  %278 = vmatpush2.msra.mxu0 %v192
  %279 = vmatprep.subr.mxu0 %v188
  %280 = vmatpush2.msra.mxu0 %v187
  %281 = vmatprep.subr.mxu0 %v183
  %282 = vmatpush2.msra.mxu0 %v182
  %283 = vmatprep.subr.mxu0 %v178
  %284 = vmatpush2.msra.mxu0 %v177
  %285 = vmatprep.subr.mxu0 %v173
  %286 = vmatpush2.msra.mxu0 %v172
  %287 = vmatprep.subr.mxu0 %v168
  %288 = vmatpush2.msra.mxu0 %v167
  %289 = vmatprep.subr.mxu0 %v163
  %290 = vmatpush2.msra.mxu0 %v162
  %291 = vmatprep.subr.mxu0 %v158
  %292 = vmatpush2.msra.mxu0 %v157
  %293 = vmatprep.subr.mxu0 %v153
  %294 = vmatpush2.msra.mxu0 %v152
  %295 = vmatprep.mubr.f32.mxu0 %v226
  %296 = vmatmul.mubr.f32.gmra.mxu0 %v68
  %v297 = vpop.f32.mrf.mxu0
  %v298 = vadd.f32 %v202, %v297
  %v299 = vpop.f32.mrf.mxu0
  %v300 = vadd.f32 %v206, %v299
  %301 = vmatprep.mubr.f32.mxu0 %v229
  %302 = vmatmul.mubr.f32.gmra.mxu0 %v70
  %v303 = vpop.f32.mrf.mxu0
  %v304 = vadd.f32 %v202, %v303
  %v305 = vpop.f32.mrf.mxu0
  %v306 = vadd.f32 %v206, %v305
  %307 = vdwg.mxu0
  %308 = vmatprep.subr.mxu0 %v150
  %309 = vmatpush1.msra.mxu0 %v149
  %310 = vmatprep.subr.mxu0 %v145
  %311 = vmatpush1.msra.mxu0 %v144
  %312 = vmatprep.subr.mxu0 %v140
  %313 = vmatpush1.msra.mxu0 %v139
  %314 = vmatprep.subr.mxu0 %v135
  %315 = vmatpush1.msra.mxu0 %v134
  %316 = vmatprep.subr.mxu0 %v130
  %317 = vmatpush1.msra.mxu0 %v129
  %318 = vmatprep.subr.mxu0 %v125
  %319 = vmatpush1.msra.mxu0 %v124
  %320 = vmatprep.subr.mxu0 %v120
  %321 = vmatpush1.msra.mxu0 %v119
  %322 = vmatprep.subr.mxu0 %v115
  %323 = vmatpush1.msra.mxu0 %v114
  %324 = vmatprep.subr.mxu0 %v110
  %325 = vmatpush1.msra.mxu0 %v109
  %326 = vmatprep.subr.mxu0 %v105
  %327 = vmatpush1.msra.mxu0 %v104
  %328 = vmatprep.subr.mxu0 %v100
  %329 = vmatpush1.msra.mxu0 %v99
  %330 = vmatprep.subr.mxu0 %v95
  %331 = vmatpush1.msra.mxu0 %v94
  %332 = vmatprep.subr.mxu0 %v90
  %333 = vmatpush1.msra.mxu0 %v89
  %334 = vmatprep.subr.mxu0 %v85
  %335 = vmatpush1.msra.mxu0 %v84
  %336 = vmatprep.subr.mxu0 %v80
  %337 = vmatpush1.msra.mxu0 %v79
  %338 = vmatprep.subr.mxu0 %v75
  %339 = vmatpush1.msra.mxu0 %v74
  %340 = vmatprep.subr.mxu0 0.0
  %341 = vmatpush2.msra.mxu0 0.0
  %342 = vmatprep.subr.mxu0 0.0
  %343 = vmatpush2.msra.mxu0 0.0
  %344 = vmatprep.subr.mxu0 0.0
  %345 = vmatpush2.msra.mxu0 0.0
  %346 = vmatprep.subr.mxu0 0.0
  %347 = vmatpush2.msra.mxu0 0.0
  %348 = vmatprep.subr.mxu0 0.0
  %349 = vmatpush2.msra.mxu0 0.0
  %350 = vmatprep.subr.mxu0 0.0
  %351 = vmatpush2.msra.mxu0 0.0
  %352 = vmatprep.subr.mxu0 0.0
  %353 = vmatpush2.msra.mxu0 0.0
  %354 = vmatprep.subr.mxu0 %v195
  %355 = vmatpush2.msra.mxu0 %v194
  %356 = vmatprep.subr.mxu0 %v190
  %357 = vmatpush2.msra.mxu0 %v189
  %358 = vmatprep.subr.mxu0 %v185
  %359 = vmatpush2.msra.mxu0 %v184
  %360 = vmatprep.subr.mxu0 %v180
  %361 = vmatpush2.msra.mxu0 %v179
  %362 = vmatprep.subr.mxu0 %v175
  %363 = vmatpush2.msra.mxu0 %v174
  %364 = vmatprep.subr.mxu0 %v170
  %365 = vmatpush2.msra.mxu0 %v169
  %366 = vmatprep.subr.mxu0 %v165
  %367 = vmatpush2.msra.mxu0 %v164
  %368 = vmatprep.subr.mxu0 %v160
  %369 = vmatpush2.msra.mxu0 %v159
  %370 = vmatprep.subr.mxu0 %v155
  %371 = vmatpush2.msra.mxu0 %v154
  %372 = vmatprep.mubr.f32.mxu0 %v226
  %373 = vmatmul.mubr.f32.gmra.mxu0 %v68
  %v374 = vpop.f32.mrf.mxu0
  %v375 = vadd.f32 %v210, %v374
  %v376 = vpop.f32.mrf.mxu0
  %v377 = vadd.f32 %v214, %v376
  %378 = vmatprep.mubr.f32.mxu0 %v229
  %379 = vmatmul.mubr.f32.gmra.mxu0 %v70
  %v380 = vpop.f32.mrf.mxu0
  %v381 = vadd.f32 %v210, %v380
  %v382 = vpop.f32.mrf.mxu0
  %v383 = vadd.f32 %v214, %v382
  %384 = vdwg.mxu0
  %385 = vmatprep.subr.mxu0 0.0
  %386 = vmatpush1.msra.mxu0 %v151
  %387 = vmatprep.subr.mxu0 0.0
  %388 = vmatpush1.msra.mxu0 %v146
  %389 = vmatprep.subr.mxu0 0.0
  %390 = vmatpush1.msra.mxu0 %v141
  %391 = vmatprep.subr.mxu0 0.0
  %392 = vmatpush1.msra.mxu0 %v136
  %393 = vmatprep.subr.mxu0 0.0
  %394 = vmatpush1.msra.mxu0 %v131
  %395 = vmatprep.subr.mxu0 0.0
  %396 = vmatpush1.msra.mxu0 %v126
  %397 = vmatprep.subr.mxu0 0.0
  %398 = vmatpush1.msra.mxu0 %v121
  %399 = vmatprep.subr.mxu0 0.0
  %400 = vmatpush1.msra.mxu0 %v116
  %401 = vmatprep.subr.mxu0 0.0
  %402 = vmatpush1.msra.mxu0 %v111
  %403 = vmatprep.subr.mxu0 0.0
  %404 = vmatpush1.msra.mxu0 %v106
  %405 = vmatprep.subr.mxu0 0.0
  %406 = vmatpush1.msra.mxu0 %v101
  %407 = vmatprep.subr.mxu0 0.0
  %408 = vmatpush1.msra.mxu0 %v96
  %409 = vmatprep.subr.mxu0 0.0
  %410 = vmatpush1.msra.mxu0 %v91
  %411 = vmatprep.subr.mxu0 0.0
  %412 = vmatpush1.msra.mxu0 %v86
  %413 = vmatprep.subr.mxu0 0.0
  %414 = vmatpush1.msra.mxu0 %v81
  %415 = vmatprep.subr.mxu0 0.0
  %416 = vmatpush1.msra.mxu0 %v76
  %417 = vmatprep.subr.mxu0 0.0
  %418 = vmatpush2.msra.mxu0 0.0
  %419 = vmatprep.subr.mxu0 0.0
  %420 = vmatpush2.msra.mxu0 0.0
  %421 = vmatprep.subr.mxu0 0.0
  %422 = vmatpush2.msra.mxu0 0.0
  %423 = vmatprep.subr.mxu0 0.0
  %424 = vmatpush2.msra.mxu0 0.0
  %425 = vmatprep.subr.mxu0 0.0
  %426 = vmatpush2.msra.mxu0 0.0
  %427 = vmatprep.subr.mxu0 0.0
  %428 = vmatpush2.msra.mxu0 0.0
  %429 = vmatprep.subr.mxu0 0.0
  %430 = vmatpush2.msra.mxu0 0.0
  %431 = vmatprep.subr.mxu0 0.0
  %432 = vmatpush2.msra.mxu0 %v196
  %433 = vmatprep.subr.mxu0 0.0
  %434 = vmatpush2.msra.mxu0 %v191
  %435 = vmatprep.subr.mxu0 0.0
  %436 = vmatpush2.msra.mxu0 %v186
  %437 = vmatprep.subr.mxu0 0.0
  %438 = vmatpush2.msra.mxu0 %v181
  %439 = vmatprep.subr.mxu0 0.0
  %440 = vmatpush2.msra.mxu0 %v176
  %441 = vmatprep.subr.mxu0 0.0
  %442 = vmatpush2.msra.mxu0 %v171
  %443 = vmatprep.subr.mxu0 0.0
  %444 = vmatpush2.msra.mxu0 %v166
  %445 = vmatprep.subr.mxu0 0.0
  %446 = vmatpush2.msra.mxu0 %v161
  %447 = vmatprep.subr.mxu0 0.0
  %448 = vmatpush2.msra.mxu0 %v156
  %449 = vmatprep.mubr.f32.mxu0 %v226
  %450 = vmatmul.mubr.f32.gmra.mxu0 %v68
  %v451 = vpop.f32.mrf.mxu0
  %v452 = vadd.f32 %v218, %v451
  %v453 = vpop.f32.mrf.mxu0
  %454 = vmatprep.mubr.f32.mxu0 %v229
  %455 = vmatmul.mubr.f32.gmra.mxu0 %v70
  %v456 = vpop.f32.mrf.mxu0
  %v457 = vadd.f32 %v218, %v456
  %v458 = vpop.f32.mrf.mxu0
  %459 = vdwg.mxu0
  %v460 = vmul.f32 %v298, 0.2236068
  %v461 = vmul.f32 %v300, 0.2236068
  %v462 = vmul.f32 %v304, 0.2236068
  %v463 = vmul.f32 %v306, 0.2236068
  %470 = vrot.lane.b32.xlu0 %v300, 56
  %v471 = vpop.permute.xlu0 %470
  %472 = vrot.lane.b32.xlu0 %v375, 56
  %v473 = vpop.permute.xlu0 %472
  %474 = vrot.lane.b32.xlu0 %v377, 56
  %v475 = vpop.permute.xlu0 %474
  %476 = vrot.lane.b32.xlu0 %v306, 56
  %v477 = vpop.permute.xlu0 %476
  %478 = vrot.lane.b32.xlu0 %v381, 56
  %v479 = vpop.permute.xlu0 %478
  %480 = vrot.lane.b32.xlu0 %v383, 56
  %v481 = vpop.permute.xlu0 %480
  %vm482 = vcmask 457728
  %v483 = vsel %vm482, %v471, %v473
  %v484 = vsel %vm482, %v473, %v475
  %v485 = vsel %vm482, %v477, %v479
  %v486 = vsel %vm482, %v479, %v481
  %491 = vxpose.xlu0.b32.start [1/16] %v483, 128
  %492 = vxpose.xlu0.b32.cont [2/16] %v485, 128
  %493 = vxpose.xlu0.b32.cont [3/16] 0.0, 128
  %494 = vxpose.xlu0.b32.cont [4/16] 0.0, 128
  %495 = vxpose.xlu0.b32.cont [5/16] 0.0, 128
  %496 = vxpose.xlu0.b32.cont [6/16] 0.0, 128
  %497 = vxpose.xlu0.b32.cont [7/16] 0.0, 128
  %498 = vxpose.xlu0.b32.cont [8/16] 0.0, 128
  %499 = vxpose.xlu0.b32.cont [9/16] 0.0, 128
  %500 = vxpose.xlu0.b32.cont [10/16] 0.0, 128
  %501 = vxpose.xlu0.b32.cont [11/16] 0.0, 128
  %502 = vxpose.xlu0.b32.cont [12/16] 0.0, 128
  %503 = vxpose.xlu0.b32.cont [13/16] 0.0, 128
  %504 = vxpose.xlu0.b32.cont [14/16] 0.0, 128
  %505 = vxpose.xlu0.b32.cont [15/16] 0.0, 128
  %506 = vxpose.xlu0.b32.end [16/16] 0.0, 128
  %v507 = vpop.trf.xlu0
  %v508 = vpop.trf.xlu0
  %v509 = vpop.trf.xlu0
  %v510 = vpop.trf.xlu0
  %v511 = vpop.trf.xlu0
  %v512 = vpop.trf.xlu0
  %v513 = vpop.trf.xlu0
  %v514 = vpop.trf.xlu0
  %v515 = vpop.trf.xlu0
  %v516 = vpop.trf.xlu0
  %v517 = vpop.trf.xlu0
  %v518 = vpop.trf.xlu0
  %v519 = vpop.trf.xlu0
  %v520 = vpop.trf.xlu0
  %v521 = vpop.trf.xlu0
  %v522 = vpop.trf.xlu0
  %523 = vxpose.xlu0.b32.start [1/16] %v484, 128
  %524 = vxpose.xlu0.b32.cont [2/16] %v486, 128
  %525 = vxpose.xlu0.b32.cont [3/16] 0.0, 128
  %526 = vxpose.xlu0.b32.cont [4/16] 0.0, 128
  %527 = vxpose.xlu0.b32.cont [5/16] 0.0, 128
  %528 = vxpose.xlu0.b32.cont [6/16] 0.0, 128
  %529 = vxpose.xlu0.b32.cont [7/16] 0.0, 128
  %530 = vxpose.xlu0.b32.cont [8/16] 0.0, 128
  %531 = vxpose.xlu0.b32.cont [9/16] 0.0, 128
  %532 = vxpose.xlu0.b32.cont [10/16] 0.0, 128
  %533 = vxpose.xlu0.b32.cont [11/16] 0.0, 128
  %534 = vxpose.xlu0.b32.cont [12/16] 0.0, 128
  %535 = vxpose.xlu0.b32.cont [13/16] 0.0, 128
  %536 = vxpose.xlu0.b32.cont [14/16] 0.0, 128
  %537 = vxpose.xlu0.b32.cont [15/16] 0.0, 128
  %538 = vxpose.xlu0.b32.end [16/16] 0.0, 128
  %v539 = vpop.trf.xlu0
  %v540 = vpop.trf.xlu0
  %v541 = vpop.trf.xlu0
  %v542 = vpop.trf.xlu0
  %v543 = vpop.trf.xlu0
  %v544 = vpop.trf.xlu0
  %v545 = vpop.trf.xlu0
  %v546 = vpop.trf.xlu0
  %v547 = vpop.trf.xlu0
  %v548 = vpop.trf.xlu0
  %v549 = vpop.trf.xlu0
  %v550 = vpop.trf.xlu0
  %v551 = vpop.trf.xlu0
  %v552 = vpop.trf.xlu0
  %v553 = vpop.trf.xlu0
  %v554 = vpop.trf.xlu0
  %580 = vrot.lane.b32.xlu0 %v507, 16
  %v581 = vpop.permute.xlu0 %580
  %582 = vrot.lane.b32.xlu0 %v508, 16
  %v583 = vpop.permute.xlu0 %582
  %584 = vrot.lane.b32.xlu0 %v509, 16
  %v585 = vpop.permute.xlu0 %584
  %586 = vrot.lane.b32.xlu0 %v510, 16
  %v587 = vpop.permute.xlu0 %586
  %588 = vrot.lane.b32.xlu0 %v511, 16
  %v589 = vpop.permute.xlu0 %588
  %590 = vrot.lane.b32.xlu0 %v512, 16
  %v591 = vpop.permute.xlu0 %590
  %592 = vrot.lane.b32.xlu0 %v513, 16
  %v593 = vpop.permute.xlu0 %592
  %594 = vrot.lane.b32.xlu0 %v514, 16
  %v595 = vpop.permute.xlu0 %594
  %596 = vrot.lane.b32.xlu0 %v515, 16
  %v597 = vpop.permute.xlu0 %596
  %598 = vrot.lane.b32.xlu0 %v516, 16
  %v599 = vpop.permute.xlu0 %598
  %600 = vrot.lane.b32.xlu0 %v517, 16
  %v601 = vpop.permute.xlu0 %600
  %602 = vrot.lane.b32.xlu0 %v518, 16
  %v603 = vpop.permute.xlu0 %602
  %604 = vrot.lane.b32.xlu0 %v519, 16
  %v605 = vpop.permute.xlu0 %604
  %606 = vrot.lane.b32.xlu0 %v520, 16
  %v607 = vpop.permute.xlu0 %606
  %608 = vrot.lane.b32.xlu0 %v521, 16
  %v609 = vpop.permute.xlu0 %608
  %610 = vrot.lane.b32.xlu0 %v522, 16
  %v611 = vpop.permute.xlu0 %610
  %612 = vrot.lane.b32.xlu0 %v539, 16
  %v613 = vpop.permute.xlu0 %612
  %614 = vrot.lane.b32.xlu0 %v540, 16
  %v615 = vpop.permute.xlu0 %614
  %616 = vrot.lane.b32.xlu0 %v541, 16
  %v617 = vpop.permute.xlu0 %616
  %618 = vrot.lane.b32.xlu0 %v542, 16
  %v619 = vpop.permute.xlu0 %618
  %620 = vrot.lane.b32.xlu0 %v543, 16
  %v621 = vpop.permute.xlu0 %620
  %622 = vrot.lane.b32.xlu0 %v544, 16
  %v623 = vpop.permute.xlu0 %622
  %624 = vrot.lane.b32.xlu0 %v545, 16
  %v625 = vpop.permute.xlu0 %624
  %626 = vrot.lane.b32.xlu0 %v546, 16
  %v627 = vpop.permute.xlu0 %626
  %628 = vrot.lane.b32.xlu0 %v547, 16
  %v629 = vpop.permute.xlu0 %628
  %655 = vrot.lane.b32.xlu0 %v507, 32
  %v656 = vpop.permute.xlu0 %655
  %657 = vrot.lane.b32.xlu0 %v508, 32
  %v658 = vpop.permute.xlu0 %657
  %659 = vrot.lane.b32.xlu0 %v509, 32
  %v660 = vpop.permute.xlu0 %659
  %661 = vrot.lane.b32.xlu0 %v510, 32
  %v662 = vpop.permute.xlu0 %661
  %663 = vrot.lane.b32.xlu0 %v511, 32
  %v664 = vpop.permute.xlu0 %663
  %665 = vrot.lane.b32.xlu0 %v512, 32
  %v666 = vpop.permute.xlu0 %665
  %667 = vrot.lane.b32.xlu0 %v513, 32
  %v668 = vpop.permute.xlu0 %667
  %669 = vrot.lane.b32.xlu0 %v514, 32
  %v670 = vpop.permute.xlu0 %669
  %671 = vrot.lane.b32.xlu0 %v515, 32
  %v672 = vpop.permute.xlu0 %671
  %673 = vrot.lane.b32.xlu0 %v516, 32
  %v674 = vpop.permute.xlu0 %673
  %675 = vrot.lane.b32.xlu0 %v517, 32
  %v676 = vpop.permute.xlu0 %675
  %677 = vrot.lane.b32.xlu0 %v518, 32
  %v678 = vpop.permute.xlu0 %677
  %679 = vrot.lane.b32.xlu0 %v519, 32
  %v680 = vpop.permute.xlu0 %679
  %681 = vrot.lane.b32.xlu0 %v520, 32
  %v682 = vpop.permute.xlu0 %681
  %683 = vrot.lane.b32.xlu0 %v521, 32
  %v684 = vpop.permute.xlu0 %683
  %685 = vrot.lane.b32.xlu0 %v522, 32
  %v686 = vpop.permute.xlu0 %685
  %687 = vrot.lane.b32.xlu0 %v539, 32
  %v688 = vpop.permute.xlu0 %687
  %689 = vrot.lane.b32.xlu0 %v540, 32
  %v690 = vpop.permute.xlu0 %689
  %691 = vrot.lane.b32.xlu0 %v541, 32
  %v692 = vpop.permute.xlu0 %691
  %693 = vrot.lane.b32.xlu0 %v542, 32
  %v694 = vpop.permute.xlu0 %693
  %695 = vrot.lane.b32.xlu0 %v543, 32
  %v696 = vpop.permute.xlu0 %695
  %697 = vrot.lane.b32.xlu0 %v544, 32
  %v698 = vpop.permute.xlu0 %697
  %699 = vrot.lane.b32.xlu0 %v545, 32
  %v700 = vpop.permute.xlu0 %699
  %701 = vrot.lane.b32.xlu0 %v546, 32
  %v702 = vpop.permute.xlu0 %701
  %703 = vrot.lane.b32.xlu0 %v547, 32
  %v704 = vpop.permute.xlu0 %703
  %730 = vrot.lane.b32.xlu0 %v507, 48
  %v731 = vpop.permute.xlu0 %730
  %732 = vrot.lane.b32.xlu0 %v508, 48
  %v733 = vpop.permute.xlu0 %732
  %734 = vrot.lane.b32.xlu0 %v509, 48
  %v735 = vpop.permute.xlu0 %734
  %736 = vrot.lane.b32.xlu0 %v510, 48
  %v737 = vpop.permute.xlu0 %736
  %738 = vrot.lane.b32.xlu0 %v511, 48
  %v739 = vpop.permute.xlu0 %738
  %740 = vrot.lane.b32.xlu0 %v512, 48
  %v741 = vpop.permute.xlu0 %740
  %742 = vrot.lane.b32.xlu0 %v513, 48
  %v743 = vpop.permute.xlu0 %742
  %744 = vrot.lane.b32.xlu0 %v514, 48
  %v745 = vpop.permute.xlu0 %744
  %746 = vrot.lane.b32.xlu0 %v515, 48
  %v747 = vpop.permute.xlu0 %746
  %748 = vrot.lane.b32.xlu0 %v516, 48
  %v749 = vpop.permute.xlu0 %748
  %750 = vrot.lane.b32.xlu0 %v517, 48
  %v751 = vpop.permute.xlu0 %750
  %752 = vrot.lane.b32.xlu0 %v518, 48
  %v753 = vpop.permute.xlu0 %752
  %754 = vrot.lane.b32.xlu0 %v519, 48
  %v755 = vpop.permute.xlu0 %754
  %756 = vrot.lane.b32.xlu0 %v520, 48
  %v757 = vpop.permute.xlu0 %756
  %758 = vrot.lane.b32.xlu0 %v521, 48
  %v759 = vpop.permute.xlu0 %758
  %760 = vrot.lane.b32.xlu0 %v522, 48
  %v761 = vpop.permute.xlu0 %760
  %762 = vrot.lane.b32.xlu0 %v539, 48
  %v763 = vpop.permute.xlu0 %762
  %764 = vrot.lane.b32.xlu0 %v540, 48
  %v765 = vpop.permute.xlu0 %764
  %766 = vrot.lane.b32.xlu0 %v541, 48
  %v767 = vpop.permute.xlu0 %766
  %768 = vrot.lane.b32.xlu0 %v542, 48
  %v769 = vpop.permute.xlu0 %768
  %770 = vrot.lane.b32.xlu0 %v543, 48
  %v771 = vpop.permute.xlu0 %770
  %772 = vrot.lane.b32.xlu0 %v544, 48
  %v773 = vpop.permute.xlu0 %772
  %774 = vrot.lane.b32.xlu0 %v545, 48
  %v775 = vpop.permute.xlu0 %774
  %776 = vrot.lane.b32.xlu0 %v546, 48
  %v777 = vpop.permute.xlu0 %776
  %778 = vrot.lane.b32.xlu0 %v547, 48
  %v779 = vpop.permute.xlu0 %778
  %805 = vrot.lane.b32.xlu0 %v507, 64
  %v806 = vpop.permute.xlu0 %805
  %807 = vrot.lane.b32.xlu0 %v508, 64
  %v808 = vpop.permute.xlu0 %807
  %809 = vrot.lane.b32.xlu0 %v509, 64
  %v810 = vpop.permute.xlu0 %809
  %811 = vrot.lane.b32.xlu0 %v510, 64
  %v812 = vpop.permute.xlu0 %811
  %813 = vrot.lane.b32.xlu0 %v511, 64
  %v814 = vpop.permute.xlu0 %813
  %815 = vrot.lane.b32.xlu0 %v512, 64
  %v816 = vpop.permute.xlu0 %815
  %817 = vrot.lane.b32.xlu0 %v513, 64
  %v818 = vpop.permute.xlu0 %817
  %819 = vrot.lane.b32.xlu0 %v514, 64
  %v820 = vpop.permute.xlu0 %819
  %821 = vrot.lane.b32.xlu0 %v515, 64
  %v822 = vpop.permute.xlu0 %821
  %823 = vrot.lane.b32.xlu0 %v516, 64
  %v824 = vpop.permute.xlu0 %823
  %825 = vrot.lane.b32.xlu0 %v517, 64
  %v826 = vpop.permute.xlu0 %825
  %827 = vrot.lane.b32.xlu0 %v518, 64
  %v828 = vpop.permute.xlu0 %827
  %829 = vrot.lane.b32.xlu0 %v519, 64
  %v830 = vpop.permute.xlu0 %829
  %831 = vrot.lane.b32.xlu0 %v520, 64
  %v832 = vpop.permute.xlu0 %831
  %833 = vrot.lane.b32.xlu0 %v521, 64
  %v834 = vpop.permute.xlu0 %833
  %835 = vrot.lane.b32.xlu0 %v522, 64
  %v836 = vpop.permute.xlu0 %835
  %837 = vrot.lane.b32.xlu0 %v539, 64
  %v838 = vpop.permute.xlu0 %837
  %839 = vrot.lane.b32.xlu0 %v540, 64
  %v840 = vpop.permute.xlu0 %839
  %841 = vrot.lane.b32.xlu0 %v541, 64
  %v842 = vpop.permute.xlu0 %841
  %843 = vrot.lane.b32.xlu0 %v542, 64
  %v844 = vpop.permute.xlu0 %843
  %845 = vrot.lane.b32.xlu0 %v543, 64
  %v846 = vpop.permute.xlu0 %845
  %847 = vrot.lane.b32.xlu0 %v544, 64
  %v848 = vpop.permute.xlu0 %847
  %849 = vrot.lane.b32.xlu0 %v545, 64
  %v850 = vpop.permute.xlu0 %849
  %851 = vrot.lane.b32.xlu0 %v546, 64
  %v852 = vpop.permute.xlu0 %851
  %853 = vrot.lane.b32.xlu0 %v547, 64
  %v854 = vpop.permute.xlu0 %853
  %880 = vrot.lane.b32.xlu0 %v507, 80
  %v881 = vpop.permute.xlu0 %880
  %882 = vrot.lane.b32.xlu0 %v508, 80
  %v883 = vpop.permute.xlu0 %882
  %884 = vrot.lane.b32.xlu0 %v509, 80
  %v885 = vpop.permute.xlu0 %884
  %886 = vrot.lane.b32.xlu0 %v510, 80
  %v887 = vpop.permute.xlu0 %886
  %888 = vrot.lane.b32.xlu0 %v511, 80
  %v889 = vpop.permute.xlu0 %888
  %890 = vrot.lane.b32.xlu0 %v512, 80
  %v891 = vpop.permute.xlu0 %890
  %892 = vrot.lane.b32.xlu0 %v513, 80
  %v893 = vpop.permute.xlu0 %892
  %894 = vrot.lane.b32.xlu0 %v514, 80
  %v895 = vpop.permute.xlu0 %894
  %896 = vrot.lane.b32.xlu0 %v515, 80
  %v897 = vpop.permute.xlu0 %896
  %898 = vrot.lane.b32.xlu0 %v516, 80
  %v899 = vpop.permute.xlu0 %898
  %900 = vrot.lane.b32.xlu0 %v517, 80
  %v901 = vpop.permute.xlu0 %900
  %902 = vrot.lane.b32.xlu0 %v518, 80
  %v903 = vpop.permute.xlu0 %902
  %904 = vrot.lane.b32.xlu0 %v519, 80
  %v905 = vpop.permute.xlu0 %904
  %906 = vrot.lane.b32.xlu0 %v520, 80
  %v907 = vpop.permute.xlu0 %906
  %908 = vrot.lane.b32.xlu0 %v521, 80
  %v909 = vpop.permute.xlu0 %908
  %910 = vrot.lane.b32.xlu0 %v522, 80
  %v911 = vpop.permute.xlu0 %910
  %912 = vrot.lane.b32.xlu0 %v539, 80
  %v913 = vpop.permute.xlu0 %912
  %914 = vrot.lane.b32.xlu0 %v540, 80
  %v915 = vpop.permute.xlu0 %914
  %916 = vrot.lane.b32.xlu0 %v541, 80
  %v917 = vpop.permute.xlu0 %916
  %918 = vrot.lane.b32.xlu0 %v542, 80
  %v919 = vpop.permute.xlu0 %918
  %920 = vrot.lane.b32.xlu0 %v543, 80
  %v921 = vpop.permute.xlu0 %920
  %922 = vrot.lane.b32.xlu0 %v544, 80
  %v923 = vpop.permute.xlu0 %922
  %924 = vrot.lane.b32.xlu0 %v545, 80
  %v925 = vpop.permute.xlu0 %924
  %926 = vrot.lane.b32.xlu0 %v546, 80
  %v927 = vpop.permute.xlu0 %926
  %928 = vrot.lane.b32.xlu0 %v547, 80
  %v929 = vpop.permute.xlu0 %928
  %955 = vrot.lane.b32.xlu0 %v507, 96
  %v956 = vpop.permute.xlu0 %955
  %957 = vrot.lane.b32.xlu0 %v508, 96
  %v958 = vpop.permute.xlu0 %957
  %959 = vrot.lane.b32.xlu0 %v509, 96
  %v960 = vpop.permute.xlu0 %959
  %961 = vrot.lane.b32.xlu0 %v510, 96
  %v962 = vpop.permute.xlu0 %961
  %963 = vrot.lane.b32.xlu0 %v511, 96
  %v964 = vpop.permute.xlu0 %963
  %965 = vrot.lane.b32.xlu0 %v512, 96
  %v966 = vpop.permute.xlu0 %965
  %967 = vrot.lane.b32.xlu0 %v513, 96
  %v968 = vpop.permute.xlu0 %967
  %969 = vrot.lane.b32.xlu0 %v514, 96
  %v970 = vpop.permute.xlu0 %969
  %971 = vrot.lane.b32.xlu0 %v515, 96
  %v972 = vpop.permute.xlu0 %971
  %973 = vrot.lane.b32.xlu0 %v516, 96
  %v974 = vpop.permute.xlu0 %973
  %975 = vrot.lane.b32.xlu0 %v517, 96
  %v976 = vpop.permute.xlu0 %975
  %977 = vrot.lane.b32.xlu0 %v518, 96
  %v978 = vpop.permute.xlu0 %977
  %979 = vrot.lane.b32.xlu0 %v519, 96
  %v980 = vpop.permute.xlu0 %979
  %981 = vrot.lane.b32.xlu0 %v520, 96
  %v982 = vpop.permute.xlu0 %981
  %983 = vrot.lane.b32.xlu0 %v521, 96
  %v984 = vpop.permute.xlu0 %983
  %985 = vrot.lane.b32.xlu0 %v522, 96
  %v986 = vpop.permute.xlu0 %985
  %987 = vrot.lane.b32.xlu0 %v539, 96
  %v988 = vpop.permute.xlu0 %987
  %989 = vrot.lane.b32.xlu0 %v540, 96
  %v990 = vpop.permute.xlu0 %989
  %991 = vrot.lane.b32.xlu0 %v541, 96
  %v992 = vpop.permute.xlu0 %991
  %993 = vrot.lane.b32.xlu0 %v542, 96
  %v994 = vpop.permute.xlu0 %993
  %995 = vrot.lane.b32.xlu0 %v543, 96
  %v996 = vpop.permute.xlu0 %995
  %997 = vrot.lane.b32.xlu0 %v544, 96
  %v998 = vpop.permute.xlu0 %997
  %999 = vrot.lane.b32.xlu0 %v545, 96
  %v1000 = vpop.permute.xlu0 %999
  %1001 = vrot.lane.b32.xlu0 %v546, 96
  %v1002 = vpop.permute.xlu0 %1001
  %1003 = vrot.lane.b32.xlu0 %v547, 96
  %v1004 = vpop.permute.xlu0 %1003
  %1030 = vrot.lane.b32.xlu0 %v507, 112
  %v1031 = vpop.permute.xlu0 %1030
  %1032 = vrot.lane.b32.xlu0 %v508, 112
  %v1033 = vpop.permute.xlu0 %1032
  %1034 = vrot.lane.b32.xlu0 %v509, 112
  %v1035 = vpop.permute.xlu0 %1034
  %1036 = vrot.lane.b32.xlu0 %v510, 112
  %v1037 = vpop.permute.xlu0 %1036
  %1038 = vrot.lane.b32.xlu0 %v511, 112
  %v1039 = vpop.permute.xlu0 %1038
  %1040 = vrot.lane.b32.xlu0 %v512, 112
  %v1041 = vpop.permute.xlu0 %1040
  %1042 = vrot.lane.b32.xlu0 %v513, 112
  %v1043 = vpop.permute.xlu0 %1042
  %1044 = vrot.lane.b32.xlu0 %v514, 112
  %v1045 = vpop.permute.xlu0 %1044
  %1046 = vrot.lane.b32.xlu0 %v515, 112
  %v1047 = vpop.permute.xlu0 %1046
  %1048 = vrot.lane.b32.xlu0 %v516, 112
  %v1049 = vpop.permute.xlu0 %1048
  %1050 = vrot.lane.b32.xlu0 %v517, 112
  %v1051 = vpop.permute.xlu0 %1050
  %1052 = vrot.lane.b32.xlu0 %v518, 112
  %v1053 = vpop.permute.xlu0 %1052
  %1054 = vrot.lane.b32.xlu0 %v519, 112
  %v1055 = vpop.permute.xlu0 %1054
  %1056 = vrot.lane.b32.xlu0 %v520, 112
  %v1057 = vpop.permute.xlu0 %1056
  %1058 = vrot.lane.b32.xlu0 %v521, 112
  %v1059 = vpop.permute.xlu0 %1058
  %1060 = vrot.lane.b32.xlu0 %v522, 112
  %v1061 = vpop.permute.xlu0 %1060
  %1062 = vrot.lane.b32.xlu0 %v539, 112
  %v1063 = vpop.permute.xlu0 %1062
  %1064 = vrot.lane.b32.xlu0 %v540, 112
  %v1065 = vpop.permute.xlu0 %1064
  %1066 = vrot.lane.b32.xlu0 %v541, 112
  %v1067 = vpop.permute.xlu0 %1066
  %1068 = vrot.lane.b32.xlu0 %v542, 112
  %v1069 = vpop.permute.xlu0 %1068
  %1070 = vrot.lane.b32.xlu0 %v543, 112
  %v1071 = vpop.permute.xlu0 %1070
  %1072 = vrot.lane.b32.xlu0 %v544, 112
  %v1073 = vpop.permute.xlu0 %1072
  %1074 = vrot.lane.b32.xlu0 %v545, 112
  %v1075 = vpop.permute.xlu0 %1074
  %1076 = vrot.lane.b32.xlu0 %v546, 112
  %v1077 = vpop.permute.xlu0 %1076
  %1078 = vrot.lane.b32.xlu0 %v547, 112
  %v1079 = vpop.permute.xlu0 %1078
  %vm1105 = vcmask 130048
  %v1106 = vsel %vm1105, %v507, %v581
  %v1107 = vsel %vm1105, %v508, %v583
  %v1108 = vsel %vm1105, %v509, %v585
  %v1109 = vsel %vm1105, %v510, %v587
  %v1110 = vsel %vm1105, %v511, %v589
  %v1111 = vsel %vm1105, %v512, %v591
  %v1112 = vsel %vm1105, %v513, %v593
  %v1113 = vsel %vm1105, %v514, %v595
  %v1114 = vsel %vm1105, %v515, %v597
  %v1115 = vsel %vm1105, %v516, %v599
  %v1116 = vsel %vm1105, %v517, %v601
  %v1117 = vsel %vm1105, %v518, %v603
  %v1118 = vsel %vm1105, %v519, %v605
  %v1119 = vsel %vm1105, %v520, %v607
  %v1120 = vsel %vm1105, %v521, %v609
  %v1121 = vsel %vm1105, %v522, %v611
  %v1122 = vsel %vm1105, %v539, %v613
  %v1123 = vsel %vm1105, %v540, %v615
  %v1124 = vsel %vm1105, %v541, %v617
  %v1125 = vsel %vm1105, %v542, %v619
  %v1126 = vsel %vm1105, %v543, %v621
  %v1127 = vsel %vm1105, %v544, %v623
  %v1128 = vsel %vm1105, %v545, %v625
  %v1129 = vsel %vm1105, %v546, %v627
  %v1130 = vsel %vm1105, %v547, %v629
  %vm1131 = vcmask 261120
  %v1132 = vsel %vm1131, %v1106, %v656
  %v1133 = vsel %vm1131, %v1107, %v658
  %v1134 = vsel %vm1131, %v1108, %v660
  %v1135 = vsel %vm1131, %v1109, %v662
  %v1136 = vsel %vm1131, %v1110, %v664
  %v1137 = vsel %vm1131, %v1111, %v666
  %v1138 = vsel %vm1131, %v1112, %v668
  %v1139 = vsel %vm1131, %v1113, %v670
  %v1140 = vsel %vm1131, %v1114, %v672
  %v1141 = vsel %vm1131, %v1115, %v674
  %v1142 = vsel %vm1131, %v1116, %v676
  %v1143 = vsel %vm1131, %v1117, %v678
  %v1144 = vsel %vm1131, %v1118, %v680
  %v1145 = vsel %vm1131, %v1119, %v682
  %v1146 = vsel %vm1131, %v1120, %v684
  %v1147 = vsel %vm1131, %v1121, %v686
  %v1148 = vsel %vm1131, %v1122, %v688
  %v1149 = vsel %vm1131, %v1123, %v690
  %v1150 = vsel %vm1131, %v1124, %v692
  %v1151 = vsel %vm1131, %v1125, %v694
  %v1152 = vsel %vm1131, %v1126, %v696
  %v1153 = vsel %vm1131, %v1127, %v698
  %v1154 = vsel %vm1131, %v1128, %v700
  %v1155 = vsel %vm1131, %v1129, %v702
  %v1156 = vsel %vm1131, %v1130, %v704
  %vm1157 = vcmask 392192
  %v1158 = vsel %vm1157, %v1132, %v731
  %v1159 = vsel %vm1157, %v1133, %v733
  %v1160 = vsel %vm1157, %v1134, %v735
  %v1161 = vsel %vm1157, %v1135, %v737
  %v1162 = vsel %vm1157, %v1136, %v739
  %v1163 = vsel %vm1157, %v1137, %v741
  %v1164 = vsel %vm1157, %v1138, %v743
  %v1165 = vsel %vm1157, %v1139, %v745
  %v1166 = vsel %vm1157, %v1140, %v747
  %v1167 = vsel %vm1157, %v1141, %v749
  %v1168 = vsel %vm1157, %v1142, %v751
  %v1169 = vsel %vm1157, %v1143, %v753
  %v1170 = vsel %vm1157, %v1144, %v755
  %v1171 = vsel %vm1157, %v1145, %v757
  %v1172 = vsel %vm1157, %v1146, %v759
  %v1173 = vsel %vm1157, %v1147, %v761
  %v1174 = vsel %vm1157, %v1148, %v763
  %v1175 = vsel %vm1157, %v1149, %v765
  %v1176 = vsel %vm1157, %v1150, %v767
  %v1177 = vsel %vm1157, %v1151, %v769
  %v1178 = vsel %vm1157, %v1152, %v771
  %v1179 = vsel %vm1157, %v1153, %v773
  %v1180 = vsel %vm1157, %v1154, %v775
  %v1181 = vsel %vm1157, %v1155, %v777
  %v1182 = vsel %vm1157, %v1156, %v779
  %vm1183 = vcmask 523264
  %v1184 = vsel %vm1183, %v1158, %v806
  %v1185 = vsel %vm1183, %v1159, %v808
  %v1186 = vsel %vm1183, %v1160, %v810
  %v1187 = vsel %vm1183, %v1161, %v812
  %v1188 = vsel %vm1183, %v1162, %v814
  %v1189 = vsel %vm1183, %v1163, %v816
  %v1190 = vsel %vm1183, %v1164, %v818
  %v1191 = vsel %vm1183, %v1165, %v820
  %v1192 = vsel %vm1183, %v1166, %v822
  %v1193 = vsel %vm1183, %v1167, %v824
  %v1194 = vsel %vm1183, %v1168, %v826
  %v1195 = vsel %vm1183, %v1169, %v828
  %v1196 = vsel %vm1183, %v1170, %v830
  %v1197 = vsel %vm1183, %v1171, %v832
  %v1198 = vsel %vm1183, %v1172, %v834
  %v1199 = vsel %vm1183, %v1173, %v836
  %v1200 = vsel %vm1183, %v1174, %v838
  %v1201 = vsel %vm1183, %v1175, %v840
  %v1202 = vsel %vm1183, %v1176, %v842
  %v1203 = vsel %vm1183, %v1177, %v844
  %v1204 = vsel %vm1183, %v1178, %v846
  %v1205 = vsel %vm1183, %v1179, %v848
  %v1206 = vsel %vm1183, %v1180, %v850
  %v1207 = vsel %vm1183, %v1181, %v852
  %v1208 = vsel %vm1183, %v1182, %v854
  %vm1209 = vcmask 654336
  %v1210 = vsel %vm1209, %v1184, %v881
  %v1211 = vsel %vm1209, %v1185, %v883
  %v1212 = vsel %vm1209, %v1186, %v885
  %v1213 = vsel %vm1209, %v1187, %v887
  %v1214 = vsel %vm1209, %v1188, %v889
  %v1215 = vsel %vm1209, %v1189, %v891
  %v1216 = vsel %vm1209, %v1190, %v893
  %v1217 = vsel %vm1209, %v1191, %v895
  %v1218 = vsel %vm1209, %v1192, %v897
  %v1219 = vsel %vm1209, %v1193, %v899
  %v1220 = vsel %vm1209, %v1194, %v901
  %v1221 = vsel %vm1209, %v1195, %v903
  %v1222 = vsel %vm1209, %v1196, %v905
  %v1223 = vsel %vm1209, %v1197, %v907
  %v1224 = vsel %vm1209, %v1198, %v909
  %v1225 = vsel %vm1209, %v1199, %v911
  %v1226 = vsel %vm1209, %v1200, %v913
  %v1227 = vsel %vm1209, %v1201, %v915
  %v1228 = vsel %vm1209, %v1202, %v917
  %v1229 = vsel %vm1209, %v1203, %v919
  %v1230 = vsel %vm1209, %v1204, %v921
  %v1231 = vsel %vm1209, %v1205, %v923
  %v1232 = vsel %vm1209, %v1206, %v925
  %v1233 = vsel %vm1209, %v1207, %v927
  %v1234 = vsel %vm1209, %v1208, %v929
  %vm1235 = vcmask 785408
  %v1236 = vsel %vm1235, %v1210, %v956
  %v1237 = vsel %vm1235, %v1211, %v958
  %v1238 = vsel %vm1235, %v1212, %v960
  %v1239 = vsel %vm1235, %v1213, %v962
  %v1240 = vsel %vm1235, %v1214, %v964
  %v1241 = vsel %vm1235, %v1215, %v966
  %v1242 = vsel %vm1235, %v1216, %v968
  %v1243 = vsel %vm1235, %v1217, %v970
  %v1244 = vsel %vm1235, %v1218, %v972
  %v1245 = vsel %vm1235, %v1219, %v974
  %v1246 = vsel %vm1235, %v1220, %v976
  %v1247 = vsel %vm1235, %v1221, %v978
  %v1248 = vsel %vm1235, %v1222, %v980
  %v1249 = vsel %vm1235, %v1223, %v982
  %v1250 = vsel %vm1235, %v1224, %v984
  %v1251 = vsel %vm1235, %v1225, %v986
  %v1252 = vsel %vm1235, %v1226, %v988
  %v1253 = vsel %vm1235, %v1227, %v990
  %v1254 = vsel %vm1235, %v1228, %v992
  %v1255 = vsel %vm1235, %v1229, %v994
  %v1256 = vsel %vm1235, %v1230, %v996
  %v1257 = vsel %vm1235, %v1231, %v998
  %v1258 = vsel %vm1235, %v1232, %v1000
  %v1259 = vsel %vm1235, %v1233, %v1002
  %v1260 = vsel %vm1235, %v1234, %v1004
  %vm1261 = vcmask 916480
  %v1262 = vsel %vm1261, %v1236, %v1031
  %v1263 = vsel %vm1261, %v1237, %v1033
  %v1264 = vsel %vm1261, %v1238, %v1035
  %v1265 = vsel %vm1261, %v1239, %v1037
  %v1266 = vsel %vm1261, %v1240, %v1039
  %v1267 = vsel %vm1261, %v1241, %v1041
  %v1268 = vsel %vm1261, %v1242, %v1043
  %v1269 = vsel %vm1261, %v1243, %v1045
  %v1270 = vsel %vm1261, %v1244, %v1047
  %v1271 = vsel %vm1261, %v1245, %v1049
  %v1272 = vsel %vm1261, %v1246, %v1051
  %v1273 = vsel %vm1261, %v1247, %v1053
  %v1274 = vsel %vm1261, %v1248, %v1055
  %v1275 = vsel %vm1261, %v1249, %v1057
  %v1276 = vsel %vm1261, %v1250, %v1059
  %v1277 = vsel %vm1261, %v1251, %v1061
  %v1278 = vsel %vm1261, %v1252, %v1063
  %v1279 = vsel %vm1261, %v1253, %v1065
  %v1280 = vsel %vm1261, %v1254, %v1067
  %v1281 = vsel %vm1261, %v1255, %v1069
  %v1282 = vsel %vm1261, %v1256, %v1071
  %v1283 = vsel %vm1261, %v1257, %v1073
  %v1284 = vsel %vm1261, %v1258, %v1075
  %v1285 = vsel %vm1261, %v1259, %v1077
  %v1286 = vsel %vm1261, %v1260, %v1079
  %v1287 = vld [vmem:[%s14] sm:$0xff]
  %v1288 = vld [vmem:[%s14 + $0x8] sm:$0xff]
  %v1289 = vld [vmem:[%s14 + $0x10] sm:$0xff]
  %v1290 = vld [vmem:[%s14 + $0x18] sm:$0xff]
  %v1291 = vld [vmem:[%s14 + $0x20] sm:$0xff]
  %v1292 = vld [vmem:[%s14 + $0x28] sm:$0xff]
  %v1293 = vld [vmem:[%s14 + $0x30] sm:$0xff]
  %v1294 = vld [vmem:[%s14 + $0x38] sm:$0xff]
  %v1295 = vld [vmem:[%s14 + $0x40] sm:$0xff]
  %v1296 = vld [vmem:[%s14 + $0x48] sm:$0xff]
  %v1297 = vld [vmem:[%s14 + $0x50] sm:$0xff]
  %v1298 = vld [vmem:[%s14 + $0x58] sm:$0xff]
  %v1299 = vld [vmem:[%s14 + $0x60] sm:$0xff]
  %v1300 = vld [vmem:[%s14 + $0x68] sm:$0xff]
  %v1301 = vld [vmem:[%s14 + $0x70] sm:$0xff]
  %v1302 = vld [vmem:[%s14 + $0x78] sm:$0xff]
  %v1303 = vld [vmem:[%s14 + $0x80] sm:$0xff]
  %v1304 = vld [vmem:[%s14 + $0x88] sm:$0xff]
  %v1305 = vld [vmem:[%s14 + $0x90] sm:$0xff]
  %v1306 = vld [vmem:[%s14 + $0x98] sm:$0xff]
  %v1307 = vld [vmem:[%s14 + $0xa0] sm:$0xff]
  %v1308 = vld [vmem:[%s14 + $0xa8] sm:$0xff]
  %v1309 = vld [vmem:[%s14 + $0xb0] sm:$0xff]
  %v1310 = vld [vmem:[%s14 + $0xb8] sm:$0xff]
  %v1311 = vld [vmem:[%s14 + $0xc0] sm:$0xff]
  %v1312 = vld [vmem:[%s14 + $0xc8] sm:$0xff]
  %v1313 = vld [vmem:[%s14 + $0xd0] sm:$0xff]
  %v1314 = vld [vmem:[%s14 + $0xd8] sm:$0xff]
  %v1315 = vld [vmem:[%s14 + $0xe0] sm:$0xff]
  %v1316 = vld [vmem:[%s14 + $0xe8] sm:$0xff]
  %v1317 = vld [vmem:[%s14 + $0xf0] sm:$0xff]
  %v1318 = vld [vmem:[%s14 + $0xf8] sm:$0xff]
  %v1319 = vld [vmem:[%s14 + $0x100] sm:$0xff]
  %v1320 = vld [vmem:[%s14 + $0x108] sm:$0xff]
  %v1321 = vld [vmem:[%s14 + $0x110] sm:$0xff]
  %v1322 = vld [vmem:[%s14 + $0x118] sm:$0xff]
  %v1323 = vld [vmem:[%s14 + $0x120] sm:$0xff]
  %v1324 = vld [vmem:[%s14 + $0x128] sm:$0xff]
  %v1325 = vld [vmem:[%s14 + $0x130] sm:$0xff]
  %v1326 = vld [vmem:[%s14 + $0x138] sm:$0xff]
  %v1327 = vld [vmem:[%s14 + $0x140] sm:$0xff]
  %v1328 = vld [vmem:[%s14 + $0x148] sm:$0xff]
  %v1329 = vld [vmem:[%s14 + $0x150] sm:$0xff]
  %v1330 = vld [vmem:[%s14 + $0x158] sm:$0xff]
  %v1331 = vld [vmem:[%s14 + $0x160] sm:$0xff]
  %v1332 = vld [vmem:[%s14 + $0x168] sm:$0xff]
  %v1333 = vld [vmem:[%s14 + $0x170] sm:$0xff]
  %v1334 = vld [vmem:[%s14 + $0x178] sm:$0xff]
  %v1335 = vld [vmem:[%s14 + $0x180] sm:$0xff]
  %v1336 = vld [vmem:[%s14 + $0x188] sm:$0xff]
  %v1337 = vmul.f32 %v1262, %v1287
  %v1338 = vmul.f32 %v1106, %v1288
  %v1339 = vmul.f32 %v1263, %v1289
  %v1340 = vmul.f32 %v1107, %v1290
  %v1341 = vmul.f32 %v1264, %v1291
  %v1342 = vmul.f32 %v1108, %v1292
  %v1343 = vmul.f32 %v1265, %v1293
  %v1344 = vmul.f32 %v1109, %v1294
  %v1345 = vmul.f32 %v1266, %v1295
  %v1346 = vmul.f32 %v1110, %v1296
  %v1347 = vmul.f32 %v1267, %v1297
  %v1348 = vmul.f32 %v1111, %v1298
  %v1349 = vmul.f32 %v1268, %v1299
  %v1350 = vmul.f32 %v1112, %v1300
  %v1351 = vmul.f32 %v1269, %v1301
  %v1352 = vmul.f32 %v1113, %v1302
  %v1353 = vmul.f32 %v1270, %v1303
  %v1354 = vmul.f32 %v1114, %v1304
  %v1355 = vmul.f32 %v1271, %v1305
  %v1356 = vmul.f32 %v1115, %v1306
  %v1357 = vmul.f32 %v1272, %v1307
  %v1358 = vmul.f32 %v1116, %v1308
  %v1359 = vmul.f32 %v1273, %v1309
  %v1360 = vmul.f32 %v1117, %v1310
  %v1361 = vmul.f32 %v1274, %v1311
  %v1362 = vmul.f32 %v1118, %v1312
  %v1363 = vmul.f32 %v1275, %v1313
  %v1364 = vmul.f32 %v1119, %v1314
  %v1365 = vmul.f32 %v1276, %v1315
  %v1366 = vmul.f32 %v1120, %v1316
  %v1367 = vmul.f32 %v1277, %v1317
  %v1368 = vmul.f32 %v1121, %v1318
  %v1369 = vmul.f32 %v1278, %v1319
  %v1370 = vmul.f32 %v1122, %v1320
  %v1371 = vmul.f32 %v1279, %v1321
  %v1372 = vmul.f32 %v1123, %v1322
  %v1373 = vmul.f32 %v1280, %v1323
  %v1374 = vmul.f32 %v1124, %v1324
  %v1375 = vmul.f32 %v1281, %v1325
  %v1376 = vmul.f32 %v1125, %v1326
  %v1377 = vmul.f32 %v1282, %v1327
  %v1378 = vmul.f32 %v1126, %v1328
  %v1379 = vmul.f32 %v1283, %v1329
  %v1380 = vmul.f32 %v1127, %v1330
  %v1381 = vmul.f32 %v1284, %v1331
  %v1382 = vmul.f32 %v1128, %v1332
  %v1383 = vmul.f32 %v1285, %v1333
  %v1384 = vmul.f32 %v1129, %v1334
  %v1385 = vmul.f32 %v1286, %v1335
  %v1386 = vmul.f32 %v1130, %v1336
  %v1387 = vld [vmem:[%s17] sm:$0xff]
  %v1388 = vld [vmem:[%s17 + $0x8] sm:$0xff]
  %v1389 = vld [vmem:[%s17 + $0x10] sm:$0xff]
  %v1390 = vld [vmem:[%s17 + $0x18] sm:$0xff]
  %v1392 = vsel %vm224, %v461, 0
  %v1395 = vsel %vm224, %v463, 0
  %1397 = vmatprep.subr.mxu0 %v1368
  %1398 = vmatpush1.msra.mxu0 %v1367
  %1399 = vmatprep.subr.mxu0 %v1366
  %1400 = vmatpush1.msra.mxu0 %v1365
  %1401 = vmatprep.subr.mxu0 %v1364
  %1402 = vmatpush1.msra.mxu0 %v1363
  %1403 = vmatprep.subr.mxu0 %v1362
  %1404 = vmatpush1.msra.mxu0 %v1361
  %1405 = vmatprep.subr.mxu0 %v1360
  %1406 = vmatpush1.msra.mxu0 %v1359
  %1407 = vmatprep.subr.mxu0 %v1358
  %1408 = vmatpush1.msra.mxu0 %v1357
  %1409 = vmatprep.subr.mxu0 %v1356
  %1410 = vmatpush1.msra.mxu0 %v1355
  %1411 = vmatprep.subr.mxu0 %v1354
  %1412 = vmatpush1.msra.mxu0 %v1353
  %1413 = vmatprep.subr.mxu0 %v1352
  %1414 = vmatpush1.msra.mxu0 %v1351
  %1415 = vmatprep.subr.mxu0 %v1350
  %1416 = vmatpush1.msra.mxu0 %v1349
  %1417 = vmatprep.subr.mxu0 %v1348
  %1418 = vmatpush1.msra.mxu0 %v1347
  %1419 = vmatprep.subr.mxu0 %v1346
  %1420 = vmatpush1.msra.mxu0 %v1345
  %1421 = vmatprep.subr.mxu0 %v1344
  %1422 = vmatpush1.msra.mxu0 %v1343
  %1423 = vmatprep.subr.mxu0 %v1342
  %1424 = vmatpush1.msra.mxu0 %v1341
  %1425 = vmatprep.subr.mxu0 %v1340
  %1426 = vmatpush1.msra.mxu0 %v1339
  %1427 = vmatprep.subr.mxu0 %v1338
  %1428 = vmatpush1.msra.mxu0 %v1337
  %1429 = vmatprep.subr.mxu0 0.0
  %1430 = vmatpush2.msra.mxu0 0.0
  %1431 = vmatprep.subr.mxu0 0.0
  %1432 = vmatpush2.msra.mxu0 0.0
  %1433 = vmatprep.subr.mxu0 0.0
  %1434 = vmatpush2.msra.mxu0 0.0
  %1435 = vmatprep.subr.mxu0 0.0
  %1436 = vmatpush2.msra.mxu0 0.0
  %1437 = vmatprep.subr.mxu0 0.0
  %1438 = vmatpush2.msra.mxu0 0.0
  %1439 = vmatprep.subr.mxu0 0.0
  %1440 = vmatpush2.msra.mxu0 0.0
  %1441 = vmatprep.subr.mxu0 0.0
  %1442 = vmatpush2.msra.mxu0 0.0
  %1443 = vmatprep.subr.mxu0 %v1386
  %1444 = vmatpush2.msra.mxu0 %v1385
  %1445 = vmatprep.subr.mxu0 %v1384
  %1446 = vmatpush2.msra.mxu0 %v1383
  %1447 = vmatprep.subr.mxu0 %v1382
  %1448 = vmatpush2.msra.mxu0 %v1381
  %1449 = vmatprep.subr.mxu0 %v1380
  %1450 = vmatpush2.msra.mxu0 %v1379
  %1451 = vmatprep.subr.mxu0 %v1378
  %1452 = vmatpush2.msra.mxu0 %v1377
  %1453 = vmatprep.subr.mxu0 %v1376
  %1454 = vmatpush2.msra.mxu0 %v1375
  %1455 = vmatprep.subr.mxu0 %v1374
  %1456 = vmatpush2.msra.mxu0 %v1373
  %1457 = vmatprep.subr.mxu0 %v1372
  %1458 = vmatpush2.msra.mxu0 %v1371
  %1459 = vmatprep.subr.mxu0 %v1370
  %1460 = vmatpush2.msra.mxu0 %v1369
  %1461 = vmatprep.mubr.f32.mxu0 %v1392
  %1462 = vmatmul.mubr.f32.gmra.mxu0 %v460
  %v1463 = vpop.f32.mrf.mxu0
  %v1464 = vadd.f32 %v1387, %v1463
  %v1465 = vpop.f32.mrf.mxu0
  %v1466 = vadd.f32 %v1388, %v1465
  %1467 = vmatprep.mubr.f32.mxu0 %v1395
  %1468 = vmatmul.mubr.f32.gmra.mxu0 %v462
  %v1469 = vpop.f32.mrf.mxu0
  %v1470 = vadd.f32 %v1389, %v1469
  %v1471 = vpop.f32.mrf.mxu0
  %v1472 = vadd.f32 %v1390, %v1471
  %1473 = vdwg.mxu0
  %v1474 = vsel %vm1131, %v1466, -inf
  %v1475 = vmax.f32 %v1464, %v1474
  %1476 = vmax.xlane.f32.xlu0 %v1475
  %v1477 = vpop.xlane.xlu0 %1476
  %v1478 = vsel %vm1131, %v1472, -inf
  %v1479 = vmax.f32 %v1470, %v1478
  %1480 = vmax.xlane.f32.xlu0 %v1479
  %v1481 = vpop.xlane.xlu0 %1480
  %v1482 = vsub.f32 %v1464, %v1477
  %v1483 = vsub.f32 %v1466, %v1477
  %v1484 = vsub.f32 %v1470, %v1481
  %v1485 = vsub.f32 %v1472, %v1481
  %v1486 = vmul.f32 %v1482, 1.442695
  %v1487 = vpow.pop %v1486
  %v1488 = vmul.f32 %v1483, 1.442695
  %v1489 = vpow.pop %v1488
  %v1490 = vmul.f32 %v1484, 1.442695
  %v1491 = vpow.pop %v1490
  %v1492 = vmul.f32 %v1485, 1.442695
  %v1493 = vpow.pop %v1492
  %v1494 = vld [vmem:[%s16] sm:$0xff]
  %v1495 = vld [vmem:[%s16 + $0x8] sm:$0xff]
  %v1496 = vld [vmem:[%s16 + $0x10] sm:$0xff]
  %v1497 = vld [vmem:[%s16 + $0x18] sm:$0xff]
  %v1498 = vld [vmem:[%s16 + $0x20] sm:$0xff]
  %v1499 = vld [vmem:[%s16 + $0x28] sm:$0xff]
  %v1500 = vld [vmem:[%s16 + $0x30] sm:$0xff]
  %v1501 = vld [vmem:[%s16 + $0x38] sm:$0xff]
  %v1502 = vld [vmem:[%s16 + $0x40] sm:$0xff]
  %v1503 = vld [vmem:[%s16 + $0x48] sm:$0xff]
  %v1504 = vld [vmem:[%s16 + $0x50] sm:$0xff]
  %v1505 = vld [vmem:[%s16 + $0x58] sm:$0xff]
  %v1506 = vld [vmem:[%s16 + $0x60] sm:$0xff]
  %v1507 = vld [vmem:[%s16 + $0x68] sm:$0xff]
  %v1508 = vld [vmem:[%s16 + $0x70] sm:$0xff]
  %v1509 = vld [vmem:[%s16 + $0x78] sm:$0xff]
  %v1510 = vld [vmem:[%s16 + $0x80] sm:$0xff]
  %v1511 = vld [vmem:[%s16 + $0x88] sm:$0xff]
  %v1512 = vld [vmem:[%s16 + $0x90] sm:$0xff]
  %v1513 = vld [vmem:[%s16 + $0x98] sm:$0xff]
  %v1514 = vld [vmem:[%s16 + $0xa0] sm:$0xff]
  %v1515 = vld [vmem:[%s16 + $0xa8] sm:$0xff]
  %v1516 = vld [vmem:[%s16 + $0xb0] sm:$0xff]
  %v1517 = vld [vmem:[%s16 + $0xb8] sm:$0xff]
  %v1518 = vld [vmem:[%s16 + $0xc0] sm:$0xff]
  %v1519 = vld [vmem:[%s16 + $0xc8] sm:$0xff]
  %v1520 = vld [vmem:[%s16 + $0xd0] sm:$0xff]
  %v1521 = vld [vmem:[%s16 + $0xd8] sm:$0xff]
  %v1522 = vld [vmem:[%s16 + $0xe0] sm:$0xff]
  %v1523 = vld [vmem:[%s16 + $0xe8] sm:$0xff]
  %v1524 = vld [vmem:[%s16 + $0xf0] sm:$0xff]
  %v1525 = vld [vmem:[%s16 + $0xf8] sm:$0xff]
  %v1526 = vld [vmem:[%s16 + $0x100] sm:$0xff]
  %v1527 = vld [vmem:[%s16 + $0x108] sm:$0xff]
  %v1528 = vld [vmem:[%s16 + $0x110] sm:$0xff]
  %v1529 = vld [vmem:[%s16 + $0x118] sm:$0xff]
  %v1530 = vld [vmem:[%s16 + $0x120] sm:$0xff]
  %v1531 = vld [vmem:[%s16 + $0x128] sm:$0xff]
  %v1532 = vld [vmem:[%s16 + $0x130] sm:$0xff]
  %v1533 = vld [vmem:[%s16 + $0x138] sm:$0xff]
  %v1535 = vsel %vm1131, %v1489, 0
  %v1538 = vsel %vm1131, %v1493, 0
  %1540 = vmatprep.subr.mxu0 %v1525
  %1541 = vmatpush1.msra.mxu0 %v1524
  %1542 = vmatprep.subr.mxu0 %v1523
  %1543 = vmatpush1.msra.mxu0 %v1522
  %1544 = vmatprep.subr.mxu0 %v1521
  %1545 = vmatpush1.msra.mxu0 %v1520
  %1546 = vmatprep.subr.mxu0 %v1519
  %1547 = vmatpush1.msra.mxu0 %v1518
  %1548 = vmatprep.subr.mxu0 %v1517
  %1549 = vmatpush1.msra.mxu0 %v1516
  %1550 = vmatprep.subr.mxu0 %v1515
  %1551 = vmatpush1.msra.mxu0 %v1514
  %1552 = vmatprep.subr.mxu0 %v1513
  %1553 = vmatpush1.msra.mxu0 %v1512
  %1554 = vmatprep.subr.mxu0 %v1511
  %1555 = vmatpush1.msra.mxu0 %v1510
  %1556 = vmatprep.subr.mxu0 %v1509
  %1557 = vmatpush1.msra.mxu0 %v1508
  %1558 = vmatprep.subr.mxu0 %v1507
  %1559 = vmatpush1.msra.mxu0 %v1506
  %1560 = vmatprep.subr.mxu0 %v1505
  %1561 = vmatpush1.msra.mxu0 %v1504
  %1562 = vmatprep.subr.mxu0 %v1503
  %1563 = vmatpush1.msra.mxu0 %v1502
  %1564 = vmatprep.subr.mxu0 %v1501
  %1565 = vmatpush1.msra.mxu0 %v1500
  %1566 = vmatprep.subr.mxu0 %v1499
  %1567 = vmatpush1.msra.mxu0 %v1498
  %1568 = vmatprep.subr.mxu0 %v1497
  %1569 = vmatpush1.msra.mxu0 %v1496
  %1570 = vmatprep.subr.mxu0 %v1495
  %1571 = vmatpush1.msra.mxu0 %v1494
  %1572 = vmatprep.subr.mxu0 0.0
  %1573 = vmatpush2.msra.mxu0 0.0
  %1574 = vmatprep.subr.mxu0 0.0
  %1575 = vmatpush2.msra.mxu0 0.0
  %1576 = vmatprep.subr.mxu0 0.0
  %1577 = vmatpush2.msra.mxu0 0.0
  %1578 = vmatprep.subr.mxu0 0.0
  %1579 = vmatpush2.msra.mxu0 0.0
  %1580 = vmatprep.subr.mxu0 0.0
  %1581 = vmatpush2.msra.mxu0 0.0
  %1582 = vmatprep.subr.mxu0 0.0
  %1583 = vmatpush2.msra.mxu0 0.0
  %1584 = vmatprep.subr.mxu0 0.0
  %1585 = vmatpush2.msra.mxu0 0.0
  %1586 = vmatprep.subr.mxu0 0.0
  %1587 = vmatpush2.msra.mxu0 0.0
  %1588 = vmatprep.subr.mxu0 0.0
  %1589 = vmatpush2.msra.mxu0 0.0
  %1590 = vmatprep.subr.mxu0 0.0
  %1591 = vmatpush2.msra.mxu0 0.0
  %1592 = vmatprep.subr.mxu0 0.0
  %1593 = vmatpush2.msra.mxu0 0.0
  %1594 = vmatprep.subr.mxu0 0.0
  %1595 = vmatpush2.msra.mxu0 0.0
  %1596 = vmatprep.subr.mxu0 %v1533
  %1597 = vmatpush2.msra.mxu0 %v1532
  %1598 = vmatprep.subr.mxu0 %v1531
  %1599 = vmatpush2.msra.mxu0 %v1530
  %1600 = vmatprep.subr.mxu0 %v1529
  %1601 = vmatpush2.msra.mxu0 %v1528
  %1602 = vmatprep.subr.mxu0 %v1527
  %1603 = vmatpush2.msra.mxu0 %v1526
  %1604 = vmatprep.mubr.f32.mxu0 %v1535
  %1605 = vmatmul.mubr.f32.gmra.mxu0 %v1487
  %v1606 = vpop.f32.mrf.mxu0
  %v1607 = vadd.f32 0.0, %v1606
  %v1608 = vpop.f32.mrf.mxu0
  %v1609 = vadd.f32 0.0, %v1608
  %1610 = vmatprep.mubr.f32.mxu0 %v1538
  %1611 = vmatmul.mubr.f32.gmra.mxu0 %v1491
  %v1612 = vpop.f32.mrf.mxu0
  %v1613 = vadd.f32 0.0, %v1612
  %v1614 = vpop.f32.mrf.mxu0
  %v1615 = vadd.f32 0.0, %v1614
  %1616 = vdwg.mxu0
  %v1617 = vrcp.pop %v1607
  %v1618 = vrcp.pop %v1609
  %v1619 = vrcp.pop %v1613
  %v1620 = vrcp.pop %v1615
  %v1621 = vmul.f32 %v1487, %v1617
  %v1622 = vmul.f32 %v1489, %v1618
  %v1623 = vmul.f32 %v1491, %v1619
  %v1624 = vmul.f32 %v1493, %v1620
  %v1625 = vld [vmem:[%s15] sm:$0xff]
  %v1626 = vld [vmem:[%s15 + $0x8] sm:$0xff]
  %v1627 = vld [vmem:[%s15 + $0x10] sm:$0xff]
  %v1628 = vld [vmem:[%s15 + $0x18] sm:$0xff]
  %v1629 = vld [vmem:[%s15 + $0x20] sm:$0xff]
  %v1630 = vld [vmem:[%s15 + $0x28] sm:$0xff]
  %v1631 = vld [vmem:[%s15 + $0x30] sm:$0xff]
  %v1632 = vld [vmem:[%s15 + $0x38] sm:$0xff]
  %v1633 = vld [vmem:[%s15 + $0x40] sm:$0xff]
  %v1634 = vld [vmem:[%s15 + $0x48] sm:$0xff]
  %v1635 = vld [vmem:[%s15 + $0x50] sm:$0xff]
  %v1636 = vld [vmem:[%s15 + $0x58] sm:$0xff]
  %v1637 = vld [vmem:[%s15 + $0x60] sm:$0xff]
  %v1638 = vld [vmem:[%s15 + $0x68] sm:$0xff]
  %v1639 = vld [vmem:[%s15 + $0x70] sm:$0xff]
  %v1640 = vld [vmem:[%s15 + $0x78] sm:$0xff]
  %v1641 = vld [vmem:[%s15 + $0x80] sm:$0xff]
  %v1642 = vld [vmem:[%s15 + $0x88] sm:$0xff]
  %v1643 = vld [vmem:[%s15 + $0x90] sm:$0xff]
  %v1644 = vld [vmem:[%s15 + $0x98] sm:$0xff]
  %v1645 = vld [vmem:[%s15 + $0xa0] sm:$0xff]
  %v1646 = vld [vmem:[%s15 + $0xa8] sm:$0xff]
  %v1647 = vld [vmem:[%s15 + $0xb0] sm:$0xff]
  %v1648 = vld [vmem:[%s15 + $0xb8] sm:$0xff]
  %v1649 = vld [vmem:[%s15 + $0xc0] sm:$0xff]
  %v1650 = vld [vmem:[%s15 + $0xc8] sm:$0xff]
  %v1651 = vld [vmem:[%s15 + $0xd0] sm:$0xff]
  %v1652 = vld [vmem:[%s15 + $0xd8] sm:$0xff]
  %v1653 = vld [vmem:[%s15 + $0xe0] sm:$0xff]
  %v1654 = vld [vmem:[%s15 + $0xe8] sm:$0xff]
  %v1655 = vld [vmem:[%s15 + $0xf0] sm:$0xff]
  %v1656 = vld [vmem:[%s15 + $0xf8] sm:$0xff]
  %v1657 = vld [vmem:[%s15 + $0x100] sm:$0xff]
  %v1658 = vld [vmem:[%s15 + $0x108] sm:$0xff]
  %v1659 = vld [vmem:[%s15 + $0x110] sm:$0xff]
  %v1660 = vld [vmem:[%s15 + $0x118] sm:$0xff]
  %v1661 = vld [vmem:[%s15 + $0x120] sm:$0xff]
  %v1662 = vld [vmem:[%s15 + $0x128] sm:$0xff]
  %v1663 = vld [vmem:[%s15 + $0x130] sm:$0xff]
  %v1664 = vld [vmem:[%s15 + $0x138] sm:$0xff]
  %1705 = vrot.lane.b32.xlu0 %v1625, 16
  %v1706 = vpop.permute.xlu0 %1705
  %1707 = vrot.lane.b32.xlu0 %v1626, 16
  %v1708 = vpop.permute.xlu0 %1707
  %1709 = vrot.lane.b32.xlu0 %v1627, 16
  %v1710 = vpop.permute.xlu0 %1709
  %1711 = vrot.lane.b32.xlu0 %v1628, 16
  %v1712 = vpop.permute.xlu0 %1711
  %1713 = vrot.lane.b32.xlu0 %v1629, 16
  %v1714 = vpop.permute.xlu0 %1713
  %1715 = vrot.lane.b32.xlu0 %v1630, 16
  %v1716 = vpop.permute.xlu0 %1715
  %1717 = vrot.lane.b32.xlu0 %v1631, 16
  %v1718 = vpop.permute.xlu0 %1717
  %1719 = vrot.lane.b32.xlu0 %v1632, 16
  %v1720 = vpop.permute.xlu0 %1719
  %1721 = vrot.lane.b32.xlu0 %v1633, 16
  %v1722 = vpop.permute.xlu0 %1721
  %1723 = vrot.lane.b32.xlu0 %v1634, 16
  %v1724 = vpop.permute.xlu0 %1723
  %1725 = vrot.lane.b32.xlu0 %v1635, 16
  %v1726 = vpop.permute.xlu0 %1725
  %1727 = vrot.lane.b32.xlu0 %v1636, 16
  %v1728 = vpop.permute.xlu0 %1727
  %1729 = vrot.lane.b32.xlu0 %v1637, 16
  %v1730 = vpop.permute.xlu0 %1729
  %1731 = vrot.lane.b32.xlu0 %v1638, 16
  %v1732 = vpop.permute.xlu0 %1731
  %1733 = vrot.lane.b32.xlu0 %v1639, 16
  %v1734 = vpop.permute.xlu0 %1733
  %1735 = vrot.lane.b32.xlu0 %v1640, 16
  %v1736 = vpop.permute.xlu0 %1735
  %1737 = vrot.lane.b32.xlu0 %v1641, 16
  %v1738 = vpop.permute.xlu0 %1737
  %1739 = vrot.lane.b32.xlu0 %v1642, 16
  %v1740 = vpop.permute.xlu0 %1739
  %1741 = vrot.lane.b32.xlu0 %v1643, 16
  %v1742 = vpop.permute.xlu0 %1741
  %1743 = vrot.lane.b32.xlu0 %v1644, 16
  %v1744 = vpop.permute.xlu0 %1743
  %1745 = vrot.lane.b32.xlu0 %v1645, 16
  %v1746 = vpop.permute.xlu0 %1745
  %1747 = vrot.lane.b32.xlu0 %v1646, 16
  %v1748 = vpop.permute.xlu0 %1747
  %1749 = vrot.lane.b32.xlu0 %v1647, 16
  %v1750 = vpop.permute.xlu0 %1749
  %1751 = vrot.lane.b32.xlu0 %v1648, 16
  %v1752 = vpop.permute.xlu0 %1751
  %1753 = vrot.lane.b32.xlu0 %v1649, 16
  %v1754 = vpop.permute.xlu0 %1753
  %1755 = vrot.lane.b32.xlu0 %v1650, 16
  %v1756 = vpop.permute.xlu0 %1755
  %1757 = vrot.lane.b32.xlu0 %v1651, 16
  %v1758 = vpop.permute.xlu0 %1757
  %1759 = vrot.lane.b32.xlu0 %v1652, 16
  %v1760 = vpop.permute.xlu0 %1759
  %1761 = vrot.lane.b32.xlu0 %v1653, 16
  %v1762 = vpop.permute.xlu0 %1761
  %1763 = vrot.lane.b32.xlu0 %v1654, 16
  %v1764 = vpop.permute.xlu0 %1763
  %1765 = vrot.lane.b32.xlu0 %v1655, 16
  %v1766 = vpop.permute.xlu0 %1765
  %1767 = vrot.lane.b32.xlu0 %v1656, 16
  %v1768 = vpop.permute.xlu0 %1767
  %1769 = vrot.lane.b32.xlu0 %v1657, 16
  %v1770 = vpop.permute.xlu0 %1769
  %1771 = vrot.lane.b32.xlu0 %v1658, 16
  %v1772 = vpop.permute.xlu0 %1771
  %1773 = vrot.lane.b32.xlu0 %v1659, 16
  %v1774 = vpop.permute.xlu0 %1773
  %1775 = vrot.lane.b32.xlu0 %v1660, 16
  %v1776 = vpop.permute.xlu0 %1775
  %1777 = vrot.lane.b32.xlu0 %v1661, 16
  %v1778 = vpop.permute.xlu0 %1777
  %1779 = vrot.lane.b32.xlu0 %v1662, 16
  %v1780 = vpop.permute.xlu0 %1779
  %1781 = vrot.lane.b32.xlu0 %v1663, 16
  %v1782 = vpop.permute.xlu0 %1781
  %1783 = vrot.lane.b32.xlu0 %v1664, 16
  %v1784 = vpop.permute.xlu0 %1783
  %v1785 = vsel %vm1105, %v1706, %v1708
  %v1786 = vsel %vm1105, %v1710, %v1712
  %v1787 = vsel %vm1105, %v1714, %v1716
  %v1788 = vsel %vm1105, %v1718, %v1720
  %v1789 = vsel %vm1105, %v1722, %v1724
  %v1790 = vsel %vm1105, %v1726, %v1728
  %v1791 = vsel %vm1105, %v1730, %v1732
  %v1792 = vsel %vm1105, %v1734, %v1736
  %v1793 = vsel %vm1105, %v1738, %v1740
  %v1794 = vsel %vm1105, %v1742, %v1744
  %v1795 = vsel %vm1105, %v1746, %v1748
  %v1796 = vsel %vm1105, %v1750, %v1752
  %v1797 = vsel %vm1105, %v1754, %v1756
  %v1798 = vsel %vm1105, %v1758, %v1760
  %v1799 = vsel %vm1105, %v1762, %v1764
  %v1800 = vsel %vm1105, %v1766, %v1768
  %v1801 = vsel %vm1105, %v1770, %v1772
  %v1802 = vsel %vm1105, %v1774, %v1776
  %v1803 = vsel %vm1105, %v1778, %v1780
  %v1804 = vsel %vm1105, %v1782, %v1784
  %v1845 = vmul.f32 %v377, %v1706
  %v1846 = vmul.f32 %v452, %v1785
  %v1847 = vmul.f32 %v383, %v1710
  %v1848 = vmul.f32 %v457, %v1786
  %v1849 = vmul.f32 %v377, %v1714
  %v1850 = vmul.f32 %v452, %v1787
  %v1851 = vmul.f32 %v383, %v1718
  %v1852 = vmul.f32 %v457, %v1788
  %v1853 = vmul.f32 %v377, %v1722
  %v1854 = vmul.f32 %v452, %v1789
  %v1855 = vmul.f32 %v383, %v1726
  %v1856 = vmul.f32 %v457, %v1790
  %v1857 = vmul.f32 %v377, %v1730
  %v1858 = vmul.f32 %v452, %v1791
  %v1859 = vmul.f32 %v383, %v1734
  %v1860 = vmul.f32 %v457, %v1792
  %v1861 = vmul.f32 %v377, %v1738
  %v1862 = vmul.f32 %v452, %v1793
  %v1863 = vmul.f32 %v383, %v1742
  %v1864 = vmul.f32 %v457, %v1794
  %v1865 = vmul.f32 %v377, %v1746
  %v1866 = vmul.f32 %v452, %v1795
  %v1867 = vmul.f32 %v383, %v1750
  %v1868 = vmul.f32 %v457, %v1796
  %v1869 = vmul.f32 %v377, %v1754
  %v1870 = vmul.f32 %v452, %v1797
  %v1871 = vmul.f32 %v383, %v1758
  %v1872 = vmul.f32 %v457, %v1798
  %v1873 = vmul.f32 %v377, %v1762
  %v1874 = vmul.f32 %v452, %v1799
  %v1875 = vmul.f32 %v383, %v1766
  %v1876 = vmul.f32 %v457, %v1800
  %v1877 = vmul.f32 %v377, %v1770
  %v1878 = vmul.f32 %v452, %v1801
  %v1879 = vmul.f32 %v383, %v1774
  %v1880 = vmul.f32 %v457, %v1802
  %v1881 = vmul.f32 %v377, %v1778
  %v1882 = vmul.f32 %v452, %v1803
  %v1883 = vmul.f32 %v383, %v1782
  %v1884 = vmul.f32 %v457, %v1804
  %1925 = vrot.lane.b32.xlu0 %v1845, 112
  %v1926 = vpop.permute.xlu0 %1925
  %1927 = vrot.lane.b32.xlu0 %v1846, 112
  %v1928 = vpop.permute.xlu0 %1927
  %1929 = vrot.lane.b32.xlu0 %v1847, 112
  %v1930 = vpop.permute.xlu0 %1929
  %1931 = vrot.lane.b32.xlu0 %v1848, 112
  %v1932 = vpop.permute.xlu0 %1931
  %1933 = vrot.lane.b32.xlu0 %v1849, 112
  %v1934 = vpop.permute.xlu0 %1933
  %1935 = vrot.lane.b32.xlu0 %v1850, 112
  %v1936 = vpop.permute.xlu0 %1935
  %1937 = vrot.lane.b32.xlu0 %v1851, 112
  %v1938 = vpop.permute.xlu0 %1937
  %1939 = vrot.lane.b32.xlu0 %v1852, 112
  %v1940 = vpop.permute.xlu0 %1939
  %1941 = vrot.lane.b32.xlu0 %v1853, 112
  %v1942 = vpop.permute.xlu0 %1941
  %1943 = vrot.lane.b32.xlu0 %v1854, 112
  %v1944 = vpop.permute.xlu0 %1943
  %1945 = vrot.lane.b32.xlu0 %v1855, 112
  %v1946 = vpop.permute.xlu0 %1945
  %1947 = vrot.lane.b32.xlu0 %v1856, 112
  %v1948 = vpop.permute.xlu0 %1947
  %1949 = vrot.lane.b32.xlu0 %v1857, 112
  %v1950 = vpop.permute.xlu0 %1949
  %1951 = vrot.lane.b32.xlu0 %v1858, 112
  %v1952 = vpop.permute.xlu0 %1951
  %1953 = vrot.lane.b32.xlu0 %v1859, 112
  %v1954 = vpop.permute.xlu0 %1953
  %1955 = vrot.lane.b32.xlu0 %v1860, 112
  %v1956 = vpop.permute.xlu0 %1955
  %1957 = vrot.lane.b32.xlu0 %v1861, 112
  %v1958 = vpop.permute.xlu0 %1957
  %1959 = vrot.lane.b32.xlu0 %v1862, 112
  %v1960 = vpop.permute.xlu0 %1959
  %1961 = vrot.lane.b32.xlu0 %v1863, 112
  %v1962 = vpop.permute.xlu0 %1961
  %1963 = vrot.lane.b32.xlu0 %v1864, 112
  %v1964 = vpop.permute.xlu0 %1963
  %1965 = vrot.lane.b32.xlu0 %v1865, 112
  %v1966 = vpop.permute.xlu0 %1965
  %1967 = vrot.lane.b32.xlu0 %v1866, 112
  %v1968 = vpop.permute.xlu0 %1967
  %1969 = vrot.lane.b32.xlu0 %v1867, 112
  %v1970 = vpop.permute.xlu0 %1969
  %1971 = vrot.lane.b32.xlu0 %v1868, 112
  %v1972 = vpop.permute.xlu0 %1971
  %1973 = vrot.lane.b32.xlu0 %v1869, 112
  %v1974 = vpop.permute.xlu0 %1973
  %1975 = vrot.lane.b32.xlu0 %v1870, 112
  %v1976 = vpop.permute.xlu0 %1975
  %1977 = vrot.lane.b32.xlu0 %v1871, 112
  %v1978 = vpop.permute.xlu0 %1977
  %1979 = vrot.lane.b32.xlu0 %v1872, 112
  %v1980 = vpop.permute.xlu0 %1979
  %1981 = vrot.lane.b32.xlu0 %v1873, 112
  %v1982 = vpop.permute.xlu0 %1981
  %1983 = vrot.lane.b32.xlu0 %v1874, 112
  %v1984 = vpop.permute.xlu0 %1983
  %1985 = vrot.lane.b32.xlu0 %v1875, 112
  %v1986 = vpop.permute.xlu0 %1985
  %1987 = vrot.lane.b32.xlu0 %v1876, 112
  %v1988 = vpop.permute.xlu0 %1987
  %1989 = vrot.lane.b32.xlu0 %v1877, 112
  %v1990 = vpop.permute.xlu0 %1989
  %1991 = vrot.lane.b32.xlu0 %v1878, 112
  %v1992 = vpop.permute.xlu0 %1991
  %1993 = vrot.lane.b32.xlu0 %v1879, 112
  %v1994 = vpop.permute.xlu0 %1993
  %1995 = vrot.lane.b32.xlu0 %v1880, 112
  %v1996 = vpop.permute.xlu0 %1995
  %1997 = vrot.lane.b32.xlu0 %v1881, 112
  %v1998 = vpop.permute.xlu0 %1997
  %1999 = vrot.lane.b32.xlu0 %v1882, 112
  %v2000 = vpop.permute.xlu0 %1999
  %2001 = vrot.lane.b32.xlu0 %v1883, 112
  %v2002 = vpop.permute.xlu0 %2001
  %2003 = vrot.lane.b32.xlu0 %v1884, 112
  %v2004 = vpop.permute.xlu0 %2003
  %v2005 = vsel %vm1261, %v1926, %v1928
  %v2006 = vsel %vm1261, %v1930, %v1932
  %v2007 = vsel %vm1261, %v1934, %v1936
  %v2008 = vsel %vm1261, %v1938, %v1940
  %v2009 = vsel %vm1261, %v1942, %v1944
  %v2010 = vsel %vm1261, %v1946, %v1948
  %v2011 = vsel %vm1261, %v1950, %v1952
  %v2012 = vsel %vm1261, %v1954, %v1956
  %v2013 = vsel %vm1261, %v1958, %v1960
  %v2014 = vsel %vm1261, %v1962, %v1964
  %v2015 = vsel %vm1261, %v1966, %v1968
  %v2016 = vsel %vm1261, %v1970, %v1972
  %v2017 = vsel %vm1261, %v1974, %v1976
  %v2018 = vsel %vm1261, %v1978, %v1980
  %v2019 = vsel %vm1261, %v1982, %v1984
  %v2020 = vsel %vm1261, %v1986, %v1988
  %v2021 = vsel %vm1261, %v1990, %v1992
  %v2022 = vsel %vm1261, %v1994, %v1996
  %v2023 = vsel %vm1261, %v1998, %v2000
  %v2024 = vsel %vm1261, %v2002, %v2004
  %v2066 = vsel %vm1131, %v1622, 0
  %v2069 = vsel %vm1131, %v1624, 0
  %2071 = vmatprep.subr.mxu0 %v1988
  %2072 = vmatpush1.msra.mxu0 %v2020
  %2073 = vmatprep.subr.mxu0 %v1984
  %2074 = vmatpush1.msra.mxu0 %v2019
  %2075 = vmatprep.subr.mxu0 %v1980
  %2076 = vmatpush1.msra.mxu0 %v2018
  %2077 = vmatprep.subr.mxu0 %v1976
  %2078 = vmatpush1.msra.mxu0 %v2017
  %2079 = vmatprep.subr.mxu0 %v1972
  %2080 = vmatpush1.msra.mxu0 %v2016
  %2081 = vmatprep.subr.mxu0 %v1968
  %2082 = vmatpush1.msra.mxu0 %v2015
  %2083 = vmatprep.subr.mxu0 %v1964
  %2084 = vmatpush1.msra.mxu0 %v2014
  %2085 = vmatprep.subr.mxu0 %v1960
  %2086 = vmatpush1.msra.mxu0 %v2013
  %2087 = vmatprep.subr.mxu0 %v1956
  %2088 = vmatpush1.msra.mxu0 %v2012
  %2089 = vmatprep.subr.mxu0 %v1952
  %2090 = vmatpush1.msra.mxu0 %v2011
  %2091 = vmatprep.subr.mxu0 %v1948
  %2092 = vmatpush1.msra.mxu0 %v2010
  %2093 = vmatprep.subr.mxu0 %v1944
  %2094 = vmatpush1.msra.mxu0 %v2009
  %2095 = vmatprep.subr.mxu0 %v1940
  %2096 = vmatpush1.msra.mxu0 %v2008
  %2097 = vmatprep.subr.mxu0 %v1936
  %2098 = vmatpush1.msra.mxu0 %v2007
  %2099 = vmatprep.subr.mxu0 %v1932
  %2100 = vmatpush1.msra.mxu0 %v2006
  %2101 = vmatprep.subr.mxu0 %v1928
  %2102 = vmatpush1.msra.mxu0 %v2005
  %2103 = vmatprep.subr.mxu0 0.0
  %2104 = vmatpush2.msra.mxu0 0.0
  %2105 = vmatprep.subr.mxu0 0.0
  %2106 = vmatpush2.msra.mxu0 0.0
  %2107 = vmatprep.subr.mxu0 0.0
  %2108 = vmatpush2.msra.mxu0 0.0
  %2109 = vmatprep.subr.mxu0 0.0
  %2110 = vmatpush2.msra.mxu0 0.0
  %2111 = vmatprep.subr.mxu0 0.0
  %2112 = vmatpush2.msra.mxu0 0.0
  %2113 = vmatprep.subr.mxu0 0.0
  %2114 = vmatpush2.msra.mxu0 0.0
  %2115 = vmatprep.subr.mxu0 0.0
  %2116 = vmatpush2.msra.mxu0 0.0
  %2117 = vmatprep.subr.mxu0 0.0
  %2118 = vmatpush2.msra.mxu0 0.0
  %2119 = vmatprep.subr.mxu0 0.0
  %2120 = vmatpush2.msra.mxu0 0.0
  %2121 = vmatprep.subr.mxu0 0.0
  %2122 = vmatpush2.msra.mxu0 0.0
  %2123 = vmatprep.subr.mxu0 0.0
  %2124 = vmatpush2.msra.mxu0 0.0
  %2125 = vmatprep.subr.mxu0 0.0
  %2126 = vmatpush2.msra.mxu0 0.0
  %2127 = vmatprep.subr.mxu0 %v2004
  %2128 = vmatpush2.msra.mxu0 %v2024
  %2129 = vmatprep.subr.mxu0 %v2000
  %2130 = vmatpush2.msra.mxu0 %v2023
  %2131 = vmatprep.subr.mxu0 %v1996
  %2132 = vmatpush2.msra.mxu0 %v2022
  %2133 = vmatprep.subr.mxu0 %v1992
  %2134 = vmatpush2.msra.mxu0 %v2021
  %2135 = vmatprep.mubr.f32.mxu0 %v2066
  %2136 = vmatmul.mubr.f32.gmra.mxu0 %v1621
  %v2137 = vpop.f32.mrf.mxu0
  %v2138 = vadd.f32 0.0, %v2137
  %v2139 = vpop.f32.mrf.mxu0
  %v2140 = vadd.f32 0.0, %v2139
  %2141 = vmatprep.mubr.f32.mxu0 %v2069
  %2142 = vmatmul.mubr.f32.gmra.mxu0 %v1623
  %v2143 = vpop.f32.mrf.mxu0
  %v2144 = vadd.f32 0.0, %v2143
  %v2145 = vpop.f32.mrf.mxu0
  %v2146 = vadd.f32 0.0, %v2145
  %2147 = vdwg.mxu0
  %v2148 = vld [vmem:[%s4] sm:$0xff]
  %v2149 = vld [vmem:[%s4 + $0x8] sm:$0xff]
  %v2150 = vld [vmem:[%s4 + $0x10] sm:$0xff]
  %v2151 = vld [vmem:[%s4 + $0x18] sm:$0xff]
  %v2152 = vld [vmem:[%s4 + $0x20] sm:$0xff]
  %v2153 = vld [vmem:[%s4 + $0x28] sm:$0xff]
  %v2154 = vld [vmem:[%s4 + $0x30] sm:$0xff]
  %v2155 = vld [vmem:[%s4 + $0x38] sm:$0xff]
  %v2156 = vld [vmem:[%s4 + $0x40] sm:$0xff]
  %v2157 = vld [vmem:[%s4 + $0x48] sm:$0xff]
  %v2158 = vld [vmem:[%s4 + $0x50] sm:$0xff]
  %v2159 = vld [vmem:[%s4 + $0x58] sm:$0xff]
  %v2160 = vld [vmem:[%s4 + $0x60] sm:$0xff]
  %v2161 = vld [vmem:[%s4 + $0x68] sm:$0xff]
  %v2162 = vld [vmem:[%s4 + $0x70] sm:$0xff]
  %v2163 = vld [vmem:[%s4 + $0x78] sm:$0xff]
  %v2164 = vld [vmem:[%s4 + $0x80] sm:$0xff]
  %v2165 = vld [vmem:[%s4 + $0x88] sm:$0xff]
  %v2166 = vld [vmem:[%s4 + $0x90] sm:$0xff]
  %v2167 = vld [vmem:[%s4 + $0x98] sm:$0xff]
  %v2168 = vld [vmem:[%s4 + $0xa0] sm:$0xff]
  %v2169 = vld [vmem:[%s4 + $0xa8] sm:$0xff]
  %v2170 = vld [vmem:[%s4 + $0xb0] sm:$0xff]
  %v2171 = vld [vmem:[%s4 + $0xb8] sm:$0xff]
  %v2172 = vld [vmem:[%s4 + $0xc0] sm:$0xff]
  %v2173 = vld [vmem:[%s4 + $0xc8] sm:$0xff]
  %v2174 = vld [vmem:[%s4 + $0xd0] sm:$0xff]
  %v2175 = vld [vmem:[%s4 + $0xd8] sm:$0xff]
  %v2176 = vld [vmem:[%s4 + $0xe0] sm:$0xff]
  %v2177 = vld [vmem:[%s4 + $0xe8] sm:$0xff]
  %v2178 = vld [vmem:[%s4 + $0xf0] sm:$0xff]
  %v2179 = vld [vmem:[%s4 + $0xf8] sm:$0xff]
  %v2180 = vld [vmem:[%s4 + $0x100] sm:$0xff]
  %v2181 = vld [vmem:[%s4 + $0x108] sm:$0xff]
  %v2182 = vld [vmem:[%s4 + $0x110] sm:$0xff]
  %v2183 = vld [vmem:[%s4 + $0x118] sm:$0xff]
  %v2184 = vld [vmem:[%s4 + $0x120] sm:$0xff]
  %v2185 = vld [vmem:[%s4 + $0x128] sm:$0xff]
  %v2186 = vld [vmem:[%s4 + $0x130] sm:$0xff]
  %v2187 = vld [vmem:[%s4 + $0x138] sm:$0xff]
  %v2188 = vld [vmem:[%s4 + $0x140] sm:$0xff]
  %v2189 = vld [vmem:[%s4 + $0x148] sm:$0xff]
  %v2190 = vld [vmem:[%s4 + $0x150] sm:$0xff]
  %v2191 = vld [vmem:[%s4 + $0x158] sm:$0xff]
  %v2192 = vld [vmem:[%s4 + $0x160] sm:$0xff]
  %v2193 = vld [vmem:[%s4 + $0x168] sm:$0xff]
  %v2194 = vld [vmem:[%s4 + $0x170] sm:$0xff]
  %v2195 = vld [vmem:[%s4 + $0x178] sm:$0xff]
  %v2196 = vld [vmem:[%s4 + $0x180] sm:$0xff]
  %v2197 = vld [vmem:[%s4 + $0x188] sm:$0xff]
  %v2198 = vld [vmem:[%s5] sm:$0x3]
  %v2200 = vlaneseq
  %v2201 = vshrl.u32 %v2200, 7
  %v2202 = vsub.s32 0, %v2201
  %v2203 = vrot.slane %v2198, %v2202
  %v2204 = vlaneseq
  %v2205 = vshrl.u32 %v2204, 7
  %v2206 = vsub.s32 1, %v2205
  %v2207 = vrot.slane %v2198, %v2206
  %v2211 = vsel %vm224, %v2140, 0
  %v2214 = vsel %vm224, %v2146, 0
  %2216 = vmatprep.subr.mxu0 %v2179
  %2217 = vmatpush1.msra.mxu0 %v2178
  %2218 = vmatprep.subr.mxu0 %v2177
  %2219 = vmatpush1.msra.mxu0 %v2176
  %2220 = vmatprep.subr.mxu0 %v2175
  %2221 = vmatpush1.msra.mxu0 %v2174
  %2222 = vmatprep.subr.mxu0 %v2173
  %2223 = vmatpush1.msra.mxu0 %v2172
  %2224 = vmatprep.subr.mxu0 %v2171
  %2225 = vmatpush1.msra.mxu0 %v2170
  %2226 = vmatprep.subr.mxu0 %v2169
  %2227 = vmatpush1.msra.mxu0 %v2168
  %2228 = vmatprep.subr.mxu0 %v2167
  %2229 = vmatpush1.msra.mxu0 %v2166
  %2230 = vmatprep.subr.mxu0 %v2165
  %2231 = vmatpush1.msra.mxu0 %v2164
  %2232 = vmatprep.subr.mxu0 %v2163
  %2233 = vmatpush1.msra.mxu0 %v2162
  %2234 = vmatprep.subr.mxu0 %v2161
  %2235 = vmatpush1.msra.mxu0 %v2160
  %2236 = vmatprep.subr.mxu0 %v2159
  %2237 = vmatpush1.msra.mxu0 %v2158
  %2238 = vmatprep.subr.mxu0 %v2157
  %2239 = vmatpush1.msra.mxu0 %v2156
  %2240 = vmatprep.subr.mxu0 %v2155
  %2241 = vmatpush1.msra.mxu0 %v2154
  %2242 = vmatprep.subr.mxu0 %v2153
  %2243 = vmatpush1.msra.mxu0 %v2152
  %2244 = vmatprep.subr.mxu0 %v2151
  %2245 = vmatpush1.msra.mxu0 %v2150
  %2246 = vmatprep.subr.mxu0 %v2149
  %2247 = vmatpush1.msra.mxu0 %v2148
  %2248 = vmatprep.subr.mxu0 0.0
  %2249 = vmatpush2.msra.mxu0 0.0
  %2250 = vmatprep.subr.mxu0 0.0
  %2251 = vmatpush2.msra.mxu0 0.0
  %2252 = vmatprep.subr.mxu0 0.0
  %2253 = vmatpush2.msra.mxu0 0.0
  %2254 = vmatprep.subr.mxu0 0.0
  %2255 = vmatpush2.msra.mxu0 0.0
  %2256 = vmatprep.subr.mxu0 0.0
  %2257 = vmatpush2.msra.mxu0 0.0
  %2258 = vmatprep.subr.mxu0 0.0
  %2259 = vmatpush2.msra.mxu0 0.0
  %2260 = vmatprep.subr.mxu0 0.0
  %2261 = vmatpush2.msra.mxu0 0.0
  %2262 = vmatprep.subr.mxu0 %v2197
  %2263 = vmatpush2.msra.mxu0 %v2196
  %2264 = vmatprep.subr.mxu0 %v2195
  %2265 = vmatpush2.msra.mxu0 %v2194
  %2266 = vmatprep.subr.mxu0 %v2193
  %2267 = vmatpush2.msra.mxu0 %v2192
  %2268 = vmatprep.subr.mxu0 %v2191
  %2269 = vmatpush2.msra.mxu0 %v2190
  %2270 = vmatprep.subr.mxu0 %v2189
  %2271 = vmatpush2.msra.mxu0 %v2188
  %2272 = vmatprep.subr.mxu0 %v2187
  %2273 = vmatpush2.msra.mxu0 %v2186
  %2274 = vmatprep.subr.mxu0 %v2185
  %2275 = vmatpush2.msra.mxu0 %v2184
  %2276 = vmatprep.subr.mxu0 %v2183
  %2277 = vmatpush2.msra.mxu0 %v2182
  %2278 = vmatprep.subr.mxu0 %v2181
  %2279 = vmatpush2.msra.mxu0 %v2180
  %2280 = vmatprep.mubr.f32.mxu0 %v2211
  %2281 = vmatmul.mubr.f32.gmra.mxu0 %v2138
  %v2282 = vpop.f32.mrf.mxu0
  %v2283 = vadd.f32 %v2203, %v2282
  %v2284 = vpop.f32.mrf.mxu0
  %v2285 = vadd.f32 %v2207, %v2284
  %2286 = vmatprep.mubr.f32.mxu0 %v2214
  %2287 = vmatmul.mubr.f32.gmra.mxu0 %v2144
  %v2288 = vpop.f32.mrf.mxu0
  %v2289 = vadd.f32 %v2203, %v2288
  %v2290 = vpop.f32.mrf.mxu0
  %v2291 = vadd.f32 %v2207, %v2290
  %2292 = vdwg.mxu0
  %v2293 = vadd.f32 %v68, %v2283
  %v2294 = vadd.f32 %v69, %v2285
  %v2295 = vadd.f32 %v70, %v2289
  %v2296 = vadd.f32 %v71, %v2291
  %v2297 = vld [vmem:[%s10] sm:$0x3]
  %v2298 = vld [vmem:[%s11] sm:$0x3]
  %v2299 = vsel %vm224, %v2294, 0.0
  %v2300 = vadd.f32 %v2293, %v2299
  %2301 = vadd.xlane.f32.xlu0 %v2300
  %v2302 = vpop.xlane.xlu0 %2301
  %v2303 = vsel %vm224, %v2296, 0.0
  %v2304 = vadd.f32 %v2295, %v2303
  %2305 = vadd.xlane.f32.xlu0 %v2304
  %v2306 = vpop.xlane.xlu0 %2305
  %v2307 = vrcp.pop 200.0
  %v2308 = vmul.f32 %v2302, %v2307
  %v2309 = vmul.f32 %v2306, %v2307
  %v2310 = vsub.f32 %v2293, %v2308
  %v2311 = vsub.f32 %v2294, %v2308
  %v2312 = vsub.f32 %v2295, %v2309
  %v2313 = vsub.f32 %v2296, %v2309
  %v2314 = vmul.f32 %v2310, %v2310
  %v2315 = vmul.f32 %v2311, %v2311
  %v2316 = vmul.f32 %v2312, %v2312
  %v2317 = vmul.f32 %v2313, %v2313
  %v2318 = vsel %vm224, %v2315, 0.0
  %v2319 = vadd.f32 %v2314, %v2318
  %2320 = vadd.xlane.f32.xlu0 %v2319
  %v2321 = vpop.xlane.xlu0 %2320
  %v2322 = vsel %vm224, %v2317, 0.0
  %v2323 = vadd.f32 %v2316, %v2322
  %2324 = vadd.xlane.f32.xlu0 %v2323
  %v2325 = vpop.xlane.xlu0 %2324
  %v2326 = vmul.f32 %v2321, %v2307
  %v2327 = vmul.f32 %v2325, %v2307
  %v2328 = vadd.f32 %v2326, 1e-05
  %v2329 = vadd.f32 %v2327, 1e-05
  %v2330 = vrsqrt.pop %v2328
  %v2331 = vrsqrt.pop %v2329
  %v2332 = vmul.f32 %v2310, %v2330
  %v2333 = vmul.f32 %v2311, %v2330
  %v2334 = vmul.f32 %v2312, %v2331
  %v2335 = vmul.f32 %v2313, %v2331
  %v2337 = vlaneseq
  %v2338 = vshrl.u32 %v2337, 7
  %v2339 = vsub.s32 0, %v2338
  %v2340 = vrot.slane %v2297, %v2339
  %v2341 = vlaneseq
  %v2342 = vshrl.u32 %v2341, 7
  %v2343 = vsub.s32 1, %v2342
  %v2344 = vrot.slane %v2297, %v2343
  %v2347 = vmul.f32 %v2332, %v2340
  %v2348 = vmul.f32 %v2333, %v2344
  %v2349 = vmul.f32 %v2334, %v2340
  %v2350 = vmul.f32 %v2335, %v2344
  %v2352 = vlaneseq
  %v2353 = vshrl.u32 %v2352, 7
  %v2354 = vsub.s32 0, %v2353
  %v2355 = vrot.slane %v2298, %v2354
  %v2356 = vlaneseq
  %v2357 = vshrl.u32 %v2356, 7
  %v2358 = vsub.s32 1, %v2357
  %v2359 = vrot.slane %v2298, %v2358
  %v2362 = vadd.f32 %v2347, %v2355
  %v2363 = vadd.f32 %v2348, %v2359
  %v2364 = vadd.f32 %v2349, %v2355
  %v2365 = vadd.f32 %v2350, %v2359
  %v2366 = vpack.c.bf16 %v2364, %v2362
  %v2367 = vpack.c.bf16 %v2365, %v2363
  %v2368 = vld [vmem:[%s6] sm:$0xff]
  %v2369 = vld [vmem:[%s6 + $0x8] sm:$0xff]
  %v2370 = vld [vmem:[%s6 + $0x10] sm:$0xff]
  %v2371 = vld [vmem:[%s6 + $0x18] sm:$0xff]
  %v2372 = vld [vmem:[%s6 + $0x20] sm:$0xff]
  %v2373 = vld [vmem:[%s6 + $0x28] sm:$0xff]
  %v2374 = vld [vmem:[%s6 + $0x30] sm:$0xff]
  %v2375 = vld [vmem:[%s6 + $0x38] sm:$0xff]
  %v2376 = vld [vmem:[%s6 + $0x40] sm:$0xff]
  %v2377 = vld [vmem:[%s6 + $0x48] sm:$0xff]
  %v2378 = vld [vmem:[%s6 + $0x50] sm:$0xff]
  %v2379 = vld [vmem:[%s6 + $0x58] sm:$0xff]
  %v2380 = vld [vmem:[%s6 + $0x60] sm:$0xff]
  %v2381 = vld [vmem:[%s6 + $0x68] sm:$0xff]
  %v2382 = vld [vmem:[%s6 + $0x70] sm:$0xff]
  %v2383 = vld [vmem:[%s6 + $0x78] sm:$0xff]
  %v2384 = vld [vmem:[%s6 + $0x80] sm:$0xff]
  %v2385 = vld [vmem:[%s6 + $0x88] sm:$0xff]
  %v2386 = vld [vmem:[%s6 + $0x90] sm:$0xff]
  %v2387 = vld [vmem:[%s6 + $0x98] sm:$0xff]
  %v2388 = vld [vmem:[%s6 + $0xa0] sm:$0xff]
  %v2389 = vld [vmem:[%s6 + $0xa8] sm:$0xff]
  %v2390 = vld [vmem:[%s6 + $0xb0] sm:$0xff]
  %v2391 = vld [vmem:[%s6 + $0xb8] sm:$0xff]
  %v2392 = vld [vmem:[%s6 + $0xc0] sm:$0xff]
  %v2393 = vld [vmem:[%s6 + $0xc8] sm:$0xff]
  %v2394 = vld [vmem:[%s6 + $0xd0] sm:$0xff]
  %v2395 = vld [vmem:[%s6 + $0xd8] sm:$0xff]
  %v2396 = vld [vmem:[%s6 + $0xe0] sm:$0xff]
  %v2397 = vld [vmem:[%s6 + $0xe8] sm:$0xff]
  %v2398 = vld [vmem:[%s6 + $0xf0] sm:$0xff]
  %v2399 = vld [vmem:[%s6 + $0xf8] sm:$0xff]
  %v2400 = vld [vmem:[%s6 + $0x100] sm:$0xff]
  %v2401 = vld [vmem:[%s6 + $0x108] sm:$0xff]
  %v2402 = vld [vmem:[%s6 + $0x110] sm:$0xff]
  %v2403 = vld [vmem:[%s6 + $0x118] sm:$0xff]
  %v2404 = vld [vmem:[%s6 + $0x120] sm:$0xff]
  %v2405 = vld [vmem:[%s6 + $0x128] sm:$0xff]
  %v2406 = vld [vmem:[%s6 + $0x130] sm:$0xff]
  %v2407 = vld [vmem:[%s6 + $0x138] sm:$0xff]
  %v2408 = vld [vmem:[%s6 + $0x140] sm:$0xff]
  %v2409 = vld [vmem:[%s6 + $0x148] sm:$0xff]
  %v2410 = vld [vmem:[%s6 + $0x150] sm:$0xff]
  %v2411 = vld [vmem:[%s6 + $0x158] sm:$0xff]
  %v2412 = vld [vmem:[%s6 + $0x160] sm:$0xff]
  %v2413 = vld [vmem:[%s6 + $0x168] sm:$0xff]
  %v2414 = vld [vmem:[%s6 + $0x170] sm:$0xff]
  %v2415 = vld [vmem:[%s6 + $0x178] sm:$0xff]
  %v2416 = vld [vmem:[%s6 + $0x180] sm:$0xff]
  %v2417 = vld [vmem:[%s6 + $0x188] sm:$0xff]
  %v2418 = vld [vmem:[%s6 + $0x190] sm:$0xff]
  %v2419 = vld [vmem:[%s6 + $0x198] sm:$0xff]
  %v2420 = vld [vmem:[%s6 + $0x1a0] sm:$0xff]
  %v2421 = vld [vmem:[%s6 + $0x1a8] sm:$0xff]
  %v2422 = vld [vmem:[%s6 + $0x1b0] sm:$0xff]
  %v2423 = vld [vmem:[%s6 + $0x1b8] sm:$0xff]
  %v2424 = vld [vmem:[%s6 + $0x1c0] sm:$0xff]
  %v2425 = vld [vmem:[%s6 + $0x1c8] sm:$0xff]
  %v2426 = vld [vmem:[%s6 + $0x1d0] sm:$0xff]
  %v2427 = vld [vmem:[%s6 + $0x1d8] sm:$0xff]
  %v2428 = vld [vmem:[%s6 + $0x1e0] sm:$0xff]
  %v2429 = vld [vmem:[%s6 + $0x1e8] sm:$0xff]
  %v2430 = vld [vmem:[%s6 + $0x1f0] sm:$0xff]
  %v2431 = vld [vmem:[%s6 + $0x1f8] sm:$0xff]
  %v2432 = vld [vmem:[%s6 + $0x200] sm:$0xff]
  %v2433 = vld [vmem:[%s6 + $0x208] sm:$0xff]
  %v2434 = vld [vmem:[%s6 + $0x210] sm:$0xff]
  %v2435 = vld [vmem:[%s6 + $0x218] sm:$0xff]
  %v2436 = vld [vmem:[%s6 + $0x220] sm:$0xff]
  %v2437 = vld [vmem:[%s6 + $0x228] sm:$0xff]
  %v2438 = vld [vmem:[%s6 + $0x230] sm:$0xff]
  %v2439 = vld [vmem:[%s6 + $0x238] sm:$0xff]
  %v2440 = vld [vmem:[%s6 + $0x240] sm:$0xff]
  %v2441 = vld [vmem:[%s6 + $0x248] sm:$0xff]
  %v2442 = vld [vmem:[%s6 + $0x250] sm:$0xff]
  %v2443 = vld [vmem:[%s6 + $0x258] sm:$0xff]
  %v2444 = vld [vmem:[%s6 + $0x260] sm:$0xff]
  %v2445 = vld [vmem:[%s6 + $0x268] sm:$0xff]
  %v2446 = vld [vmem:[%s6 + $0x270] sm:$0xff]
  %v2447 = vld [vmem:[%s6 + $0x278] sm:$0xff]
  %v2448 = vld [vmem:[%s6 + $0x280] sm:$0xff]
  %v2449 = vld [vmem:[%s6 + $0x288] sm:$0xff]
  %v2450 = vld [vmem:[%s6 + $0x290] sm:$0xff]
  %v2451 = vld [vmem:[%s6 + $0x298] sm:$0xff]
  %v2452 = vld [vmem:[%s6 + $0x2a0] sm:$0xff]
  %v2453 = vld [vmem:[%s6 + $0x2a8] sm:$0xff]
  %v2454 = vld [vmem:[%s6 + $0x2b0] sm:$0xff]
  %v2455 = vld [vmem:[%s6 + $0x2b8] sm:$0xff]
  %v2456 = vld [vmem:[%s6 + $0x2c0] sm:$0xff]
  %v2457 = vld [vmem:[%s6 + $0x2c8] sm:$0xff]
  %v2458 = vld [vmem:[%s6 + $0x2d0] sm:$0xff]
  %v2459 = vld [vmem:[%s6 + $0x2d8] sm:$0xff]
  %v2460 = vld [vmem:[%s6 + $0x2e0] sm:$0xff]
  %v2461 = vld [vmem:[%s6 + $0x2e8] sm:$0xff]
  %v2462 = vld [vmem:[%s6 + $0x2f0] sm:$0xff]
  %v2463 = vld [vmem:[%s6 + $0x2f8] sm:$0xff]
  %v2464 = vld [vmem:[%s6 + $0x300] sm:$0xff]
  %v2465 = vld [vmem:[%s6 + $0x308] sm:$0xff]
  %v2466 = vld [vmem:[%s6 + $0x310] sm:$0xff]
  %v2467 = vld [vmem:[%s6 + $0x318] sm:$0xff]
  %v2468 = vld [vmem:[%s6 + $0x320] sm:$0xff]
  %v2469 = vld [vmem:[%s6 + $0x328] sm:$0xff]
  %v2470 = vld [vmem:[%s6 + $0x330] sm:$0xff]
  %v2471 = vld [vmem:[%s6 + $0x338] sm:$0xff]
  %v2472 = vld [vmem:[%s6 + $0x340] sm:$0xff]
  %v2473 = vld [vmem:[%s6 + $0x348] sm:$0xff]
  %v2474 = vld [vmem:[%s6 + $0x350] sm:$0xff]
  %v2475 = vld [vmem:[%s6 + $0x358] sm:$0xff]
  %v2476 = vld [vmem:[%s6 + $0x360] sm:$0xff]
  %v2477 = vld [vmem:[%s6 + $0x368] sm:$0xff]
  %v2478 = vld [vmem:[%s6 + $0x370] sm:$0xff]
  %v2479 = vld [vmem:[%s6 + $0x378] sm:$0xff]
  %v2480 = vld [vmem:[%s6 + $0x380] sm:$0xff]
  %v2481 = vld [vmem:[%s6 + $0x388] sm:$0xff]
  %v2482 = vld [vmem:[%s6 + $0x390] sm:$0xff]
  %v2483 = vld [vmem:[%s6 + $0x398] sm:$0xff]
  %v2484 = vld [vmem:[%s6 + $0x3a0] sm:$0xff]
  %v2485 = vld [vmem:[%s6 + $0x3a8] sm:$0xff]
  %v2486 = vld [vmem:[%s6 + $0x3b0] sm:$0xff]
  %v2487 = vld [vmem:[%s6 + $0x3b8] sm:$0xff]
  %v2488 = vld [vmem:[%s6 + $0x3c0] sm:$0xff]
  %v2489 = vld [vmem:[%s6 + $0x3c8] sm:$0xff]
  %v2490 = vld [vmem:[%s6 + $0x3d0] sm:$0xff]
  %v2491 = vld [vmem:[%s6 + $0x3d8] sm:$0xff]
  %v2492 = vld [vmem:[%s6 + $0x3e0] sm:$0xff]
  %v2493 = vld [vmem:[%s6 + $0x3e8] sm:$0xff]
  %v2494 = vld [vmem:[%s6 + $0x3f0] sm:$0xff]
  %v2495 = vld [vmem:[%s6 + $0x3f8] sm:$0xff]
  %v2496 = vld [vmem:[%s6 + $0x400] sm:$0xff]
  %v2497 = vld [vmem:[%s6 + $0x408] sm:$0xff]
  %v2498 = vld [vmem:[%s6 + $0x410] sm:$0xff]
  %v2499 = vld [vmem:[%s6 + $0x418] sm:$0xff]
  %v2500 = vld [vmem:[%s6 + $0x420] sm:$0xff]
  %v2501 = vld [vmem:[%s6 + $0x428] sm:$0xff]
  %v2502 = vld [vmem:[%s6 + $0x430] sm:$0xff]
  %v2503 = vld [vmem:[%s6 + $0x438] sm:$0xff]
  %v2504 = vld [vmem:[%s6 + $0x440] sm:$0xff]
  %v2505 = vld [vmem:[%s6 + $0x448] sm:$0xff]
  %v2506 = vld [vmem:[%s6 + $0x450] sm:$0xff]
  %v2507 = vld [vmem:[%s6 + $0x458] sm:$0xff]
  %v2508 = vld [vmem:[%s6 + $0x460] sm:$0xff]
  %v2509 = vld [vmem:[%s6 + $0x468] sm:$0xff]
  %v2510 = vld [vmem:[%s6 + $0x470] sm:$0xff]
  %v2511 = vld [vmem:[%s6 + $0x478] sm:$0xff]
  %v2512 = vld [vmem:[%s6 + $0x480] sm:$0xff]
  %v2513 = vld [vmem:[%s6 + $0x488] sm:$0xff]
  %v2514 = vld [vmem:[%s6 + $0x490] sm:$0xff]
  %v2515 = vld [vmem:[%s6 + $0x498] sm:$0xff]
  %v2516 = vld [vmem:[%s6 + $0x4a0] sm:$0xff]
  %v2517 = vld [vmem:[%s6 + $0x4a8] sm:$0xff]
  %v2518 = vld [vmem:[%s6 + $0x4b0] sm:$0xff]
  %v2519 = vld [vmem:[%s6 + $0x4b8] sm:$0xff]
  %v2520 = vld [vmem:[%s6 + $0x4c0] sm:$0xff]
  %v2521 = vld [vmem:[%s6 + $0x4c8] sm:$0xff]
  %v2522 = vld [vmem:[%s6 + $0x4d0] sm:$0xff]
  %v2523 = vld [vmem:[%s6 + $0x4d8] sm:$0xff]
  %v2524 = vld [vmem:[%s6 + $0x4e0] sm:$0xff]
  %v2525 = vld [vmem:[%s6 + $0x4e8] sm:$0xff]
  %v2526 = vld [vmem:[%s6 + $0x4f0] sm:$0xff]
  %v2527 = vld [vmem:[%s6 + $0x4f8] sm:$0xff]
  %v2528 = vld [vmem:[%s6 + $0x500] sm:$0xff]
  %v2529 = vld [vmem:[%s6 + $0x508] sm:$0xff]
  %v2530 = vld [vmem:[%s6 + $0x510] sm:$0xff]
  %v2531 = vld [vmem:[%s6 + $0x518] sm:$0xff]
  %v2532 = vld [vmem:[%s6 + $0x520] sm:$0xff]
  %v2533 = vld [vmem:[%s6 + $0x528] sm:$0xff]
  %v2534 = vld [vmem:[%s6 + $0x530] sm:$0xff]
  %v2535 = vld [vmem:[%s6 + $0x538] sm:$0xff]
  %v2536 = vld [vmem:[%s6 + $0x540] sm:$0xff]
  %v2537 = vld [vmem:[%s6 + $0x548] sm:$0xff]
  %v2538 = vld [vmem:[%s6 + $0x550] sm:$0xff]
  %v2539 = vld [vmem:[%s6 + $0x558] sm:$0xff]
  %v2540 = vld [vmem:[%s6 + $0x560] sm:$0xff]
  %v2541 = vld [vmem:[%s6 + $0x568] sm:$0xff]
  %v2542 = vld [vmem:[%s6 + $0x570] sm:$0xff]
  %v2543 = vld [vmem:[%s6 + $0x578] sm:$0xff]
  %v2544 = vld [vmem:[%s6 + $0x580] sm:$0xff]
  %v2545 = vld [vmem:[%s6 + $0x588] sm:$0xff]
  %v2546 = vld [vmem:[%s6 + $0x590] sm:$0xff]
  %v2547 = vld [vmem:[%s6 + $0x598] sm:$0xff]
  %v2548 = vld [vmem:[%s6 + $0x5a0] sm:$0xff]
  %v2549 = vld [vmem:[%s6 + $0x5a8] sm:$0xff]
  %v2550 = vld [vmem:[%s6 + $0x5b0] sm:$0xff]
  %v2551 = vld [vmem:[%s6 + $0x5b8] sm:$0xff]
  %v2552 = vld [vmem:[%s6 + $0x5c0] sm:$0xff]
  %v2553 = vld [vmem:[%s6 + $0x5c8] sm:$0xff]
  %v2554 = vld [vmem:[%s6 + $0x5d0] sm:$0xff]
  %v2555 = vld [vmem:[%s6 + $0x5d8] sm:$0xff]
  %v2556 = vld [vmem:[%s6 + $0x5e0] sm:$0xff]
  %v2557 = vld [vmem:[%s6 + $0x5e8] sm:$0xff]
  %v2558 = vld [vmem:[%s6 + $0x5f0] sm:$0xff]
  %v2559 = vld [vmem:[%s6 + $0x5f8] sm:$0xff]
  %v2560 = vld [vmem:[%s6 + $0x600] sm:$0xff]
  %v2561 = vld [vmem:[%s6 + $0x608] sm:$0xff]
  %v2562 = vld [vmem:[%s6 + $0x610] sm:$0xff]
  %v2563 = vld [vmem:[%s6 + $0x618] sm:$0xff]
  %v2564 = vld [vmem:[%s6 + $0x620] sm:$0xff]
  %v2565 = vld [vmem:[%s6 + $0x628] sm:$0xff]
  %v2566 = vld [vmem:[%s6 + $0x630] sm:$0xff]
  %v2567 = vld [vmem:[%s6 + $0x638] sm:$0xff]
  %v2568 = vld [vmem:[%s7] sm:$0xff]
  %v2569 = vld [vmem:[%s7 + $0x8] sm:$0xff]
  %v2572 = vlaneseq
  %v2573 = vshrl.u32 %v2572, 7
  %v2574 = vsub.s32 0, %v2573
  %v2575 = vrot.slane %v2568, %v2574
  %v2576 = vlaneseq
  %v2577 = vshrl.u32 %v2576, 7
  %v2578 = vsub.s32 1, %v2577
  %v2579 = vrot.slane %v2568, %v2578
  %v2580 = vlaneseq
  %v2581 = vshrl.u32 %v2580, 7
  %v2582 = vsub.s32 2, %v2581
  %v2583 = vrot.slane %v2568, %v2582
  %v2584 = vlaneseq
  %v2585 = vshrl.u32 %v2584, 7
  %v2586 = vsub.s32 3, %v2585
  %v2587 = vrot.slane %v2568, %v2586
  %v2588 = vlaneseq
  %v2589 = vshrl.u32 %v2588, 7
  %v2590 = vsub.s32 4, %v2589
  %v2591 = vrot.slane %v2568, %v2590
  %v2592 = vlaneseq
  %v2593 = vshrl.u32 %v2592, 7
  %v2594 = vsub.s32 5, %v2593
  %v2595 = vrot.slane %v2568, %v2594
  %v2596 = vlaneseq
  %v2597 = vshrl.u32 %v2596, 7
  %v2598 = vsub.s32 6, %v2597
  %v2599 = vrot.slane %v2568, %v2598
  %v2600 = vlaneseq
  %v2601 = vshrl.u32 %v2600, 7
  %v2602 = vsub.s32 7, %v2601
  %v2603 = vrot.slane %v2568, %v2602
  %v2604 = vlaneseq
  %v2605 = vshrl.u32 %v2604, 7
  %v2606 = vsub.s32 0, %v2605
  %v2607 = vrot.slane %v2569, %v2606
  %v2608 = vlaneseq
  %v2609 = vshrl.u32 %v2608, 7
  %v2610 = vsub.s32 1, %v2609
  %v2611 = vrot.slane %v2569, %v2610
  %v2612 = vlaneseq
  %v2613 = vshrl.u32 %v2612, 7
  %v2614 = vsub.s32 2, %v2613
  %v2615 = vrot.slane %v2569, %v2614
  %v2616 = vlaneseq
  %v2617 = vshrl.u32 %v2616, 7
  %v2618 = vsub.s32 3, %v2617
  %v2619 = vrot.slane %v2569, %v2618
  %v2620 = vlaneseq
  %v2621 = vshrl.u32 %v2620, 7
  %v2622 = vsub.s32 4, %v2621
  %v2623 = vrot.slane %v2569, %v2622
  %v2624 = vlaneseq
  %v2625 = vshrl.u32 %v2624, 7
  %v2626 = vsub.s32 5, %v2625
  %v2627 = vrot.slane %v2569, %v2626
  %v2628 = vlaneseq
  %v2629 = vshrl.u32 %v2628, 7
  %v2630 = vsub.s32 6, %v2629
  %v2631 = vrot.slane %v2569, %v2630
  %v2632 = vlaneseq
  %v2633 = vshrl.u32 %v2632, 7
  %v2634 = vsub.s32 7, %v2633
  %v2635 = vrot.slane %v2569, %v2634
  %v2852 = vunpack.c.l.b16 %v2368
  %v2853 = vunpack.c.h.b16 %v2368
  %v2854 = vunpack.c.l.b16 %v2369
  %v2855 = vunpack.c.h.b16 %v2369
  %v2856 = vunpack.c.l.b16 %v2370
  %v2857 = vunpack.c.h.b16 %v2370
  %v2858 = vunpack.c.l.b16 %v2371
  %v2859 = vunpack.c.h.b16 %v2371
  %v2860 = vunpack.c.l.b16 %v2372
  %v2861 = vunpack.c.h.b16 %v2372
  %v2862 = vunpack.c.l.b16 %v2373
  %v2863 = vunpack.c.h.b16 %v2373
  %v2864 = vunpack.c.l.b16 %v2374
  %v2865 = vunpack.c.h.b16 %v2374
  %v2866 = vunpack.c.l.b16 %v2375
  %v2867 = vunpack.c.h.b16 %v2375
  %v2868 = vunpack.c.l.b16 %v2376
  %v2869 = vunpack.c.h.b16 %v2376
  %v2870 = vunpack.c.l.b16 %v2377
  %v2871 = vunpack.c.h.b16 %v2377
  %v2872 = vunpack.c.l.b16 %v2378
  %v2873 = vunpack.c.h.b16 %v2378
  %v2874 = vunpack.c.l.b16 %v2379
  %v2875 = vunpack.c.h.b16 %v2379
  %v2876 = vunpack.c.l.b16 %v2380
  %v2877 = vunpack.c.h.b16 %v2380
  %v2878 = vunpack.c.l.b16 %v2381
  %v2879 = vunpack.c.h.b16 %v2381
  %v2880 = vunpack.c.l.b16 %v2382
  %v2881 = vunpack.c.h.b16 %v2382
  %v2882 = vunpack.c.l.b16 %v2383
  %v2883 = vunpack.c.h.b16 %v2383
  %v2884 = vunpack.c.l.b16 %v2384
  %v2885 = vunpack.c.h.b16 %v2384
  %v2886 = vunpack.c.l.b16 %v2385
  %v2887 = vunpack.c.h.b16 %v2385
  %v2888 = vunpack.c.l.b16 %v2386
  %v2889 = vunpack.c.h.b16 %v2386
  %v2890 = vunpack.c.l.b16 %v2387
  %v2891 = vunpack.c.h.b16 %v2387
  %v2892 = vunpack.c.l.b16 %v2388
  %v2893 = vunpack.c.h.b16 %v2388
  %v2894 = vunpack.c.l.b16 %v2389
  %v2895 = vunpack.c.h.b16 %v2389
  %v2896 = vunpack.c.l.b16 %v2390
  %v2897 = vunpack.c.h.b16 %v2390
  %v2898 = vunpack.c.l.b16 %v2391
  %v2899 = vunpack.c.h.b16 %v2391
  %v2900 = vunpack.c.l.b16 %v2392
  %v2901 = vunpack.c.h.b16 %v2392
  %v2902 = vunpack.c.l.b16 %v2393
  %v2903 = vunpack.c.h.b16 %v2393
  %v2904 = vunpack.c.l.b16 %v2394
  %v2905 = vunpack.c.h.b16 %v2394
  %v2906 = vunpack.c.l.b16 %v2395
  %v2907 = vunpack.c.h.b16 %v2395
  %v2908 = vunpack.c.l.b16 %v2396
  %v2909 = vunpack.c.h.b16 %v2396
  %v2910 = vunpack.c.l.b16 %v2397
  %v2911 = vunpack.c.h.b16 %v2397
  %v2912 = vunpack.c.l.b16 %v2398
  %v2913 = vunpack.c.h.b16 %v2398
  %v2914 = vunpack.c.l.b16 %v2399
  %v2915 = vunpack.c.h.b16 %v2399
  %v2916 = vunpack.c.l.b16 %v2400
  %v2917 = vunpack.c.h.b16 %v2400
  %v2918 = vunpack.c.l.b16 %v2401
  %v2919 = vunpack.c.h.b16 %v2401
  %v2920 = vunpack.c.l.b16 %v2402
  %v2921 = vunpack.c.h.b16 %v2402
  %v2922 = vunpack.c.l.b16 %v2403
  %v2923 = vunpack.c.h.b16 %v2403
  %v2924 = vunpack.c.l.b16 %v2404
  %v2925 = vunpack.c.h.b16 %v2404
  %v2926 = vunpack.c.l.b16 %v2405
  %v2927 = vunpack.c.h.b16 %v2405
  %v2928 = vunpack.c.l.b16 %v2406
  %v2929 = vunpack.c.h.b16 %v2406
  %v2930 = vunpack.c.l.b16 %v2407
  %v2931 = vunpack.c.h.b16 %v2407
  %v2932 = vunpack.c.l.b16 %v2408
  %v2933 = vunpack.c.h.b16 %v2408
  %v2934 = vunpack.c.l.b16 %v2409
  %v2935 = vunpack.c.h.b16 %v2409
  %v2936 = vunpack.c.l.b16 %v2410
  %v2937 = vunpack.c.h.b16 %v2410
  %v2938 = vunpack.c.l.b16 %v2411
  %v2939 = vunpack.c.h.b16 %v2411
  %v2940 = vunpack.c.l.b16 %v2412
  %v2941 = vunpack.c.h.b16 %v2412
  %v2942 = vunpack.c.l.b16 %v2413
  %v2943 = vunpack.c.h.b16 %v2413
  %v2944 = vunpack.c.l.b16 %v2414
  %v2945 = vunpack.c.h.b16 %v2414
  %v2946 = vunpack.c.l.b16 %v2415
  %v2947 = vunpack.c.h.b16 %v2415
  %v2948 = vunpack.c.l.b16 %v2416
  %v2949 = vunpack.c.h.b16 %v2416
  %v2950 = vunpack.c.l.b16 %v2417
  %v2951 = vunpack.c.h.b16 %v2417
  %v2952 = vunpack.c.l.b16 %v2418
  %v2953 = vunpack.c.h.b16 %v2418
  %v2954 = vunpack.c.l.b16 %v2419
  %v2955 = vunpack.c.h.b16 %v2419
  %v2956 = vunpack.c.l.b16 %v2420
  %v2957 = vunpack.c.h.b16 %v2420
  %v2958 = vunpack.c.l.b16 %v2421
  %v2959 = vunpack.c.h.b16 %v2421
  %v2960 = vunpack.c.l.b16 %v2422
  %v2961 = vunpack.c.h.b16 %v2422
  %v2962 = vunpack.c.l.b16 %v2423
  %v2963 = vunpack.c.h.b16 %v2423
  %v2964 = vunpack.c.l.b16 %v2424
  %v2965 = vunpack.c.h.b16 %v2424
  %v2966 = vunpack.c.l.b16 %v2425
  %v2967 = vunpack.c.h.b16 %v2425
  %v2968 = vunpack.c.l.b16 %v2426
  %v2969 = vunpack.c.h.b16 %v2426
  %v2970 = vunpack.c.l.b16 %v2427
  %v2971 = vunpack.c.h.b16 %v2427
  %v2972 = vunpack.c.l.b16 %v2428
  %v2973 = vunpack.c.h.b16 %v2428
  %v2974 = vunpack.c.l.b16 %v2429
  %v2975 = vunpack.c.h.b16 %v2429
  %v2976 = vunpack.c.l.b16 %v2430
  %v2977 = vunpack.c.h.b16 %v2430
  %v2978 = vunpack.c.l.b16 %v2431
  %v2979 = vunpack.c.h.b16 %v2431
  %v2980 = vunpack.c.l.b16 %v2432
  %v2981 = vunpack.c.h.b16 %v2432
  %v2982 = vunpack.c.l.b16 %v2433
  %v2983 = vunpack.c.h.b16 %v2433
  %v2984 = vunpack.c.l.b16 %v2434
  %v2985 = vunpack.c.h.b16 %v2434
  %v2986 = vunpack.c.l.b16 %v2435
  %v2987 = vunpack.c.h.b16 %v2435
  %v2988 = vunpack.c.l.b16 %v2436
  %v2989 = vunpack.c.h.b16 %v2436
  %v2990 = vunpack.c.l.b16 %v2437
  %v2991 = vunpack.c.h.b16 %v2437
  %v2992 = vunpack.c.l.b16 %v2438
  %v2993 = vunpack.c.h.b16 %v2438
  %v2994 = vunpack.c.l.b16 %v2439
  %v2995 = vunpack.c.h.b16 %v2439
  %v2996 = vunpack.c.l.b16 %v2440
  %v2997 = vunpack.c.h.b16 %v2440
  %v2998 = vunpack.c.l.b16 %v2441
  %v2999 = vunpack.c.h.b16 %v2441
  %v3000 = vunpack.c.l.b16 %v2442
  %v3001 = vunpack.c.h.b16 %v2442
  %v3002 = vunpack.c.l.b16 %v2443
  %v3003 = vunpack.c.h.b16 %v2443
  %v3004 = vunpack.c.l.b16 %v2444
  %v3005 = vunpack.c.h.b16 %v2444
  %v3006 = vunpack.c.l.b16 %v2445
  %v3007 = vunpack.c.h.b16 %v2445
  %v3008 = vunpack.c.l.b16 %v2446
  %v3009 = vunpack.c.h.b16 %v2446
  %v3010 = vunpack.c.l.b16 %v2447
  %v3011 = vunpack.c.h.b16 %v2447
  %v3012 = vunpack.c.l.b16 %v2448
  %v3013 = vunpack.c.h.b16 %v2448
  %v3014 = vunpack.c.l.b16 %v2449
  %v3015 = vunpack.c.h.b16 %v2449
  %v3016 = vunpack.c.l.b16 %v2450
  %v3017 = vunpack.c.h.b16 %v2450
  %v3018 = vunpack.c.l.b16 %v2451
  %v3019 = vunpack.c.h.b16 %v2451
  %v3020 = vunpack.c.l.b16 %v2452
  %v3021 = vunpack.c.h.b16 %v2452
  %v3022 = vunpack.c.l.b16 %v2453
  %v3023 = vunpack.c.h.b16 %v2453
  %v3024 = vunpack.c.l.b16 %v2454
  %v3025 = vunpack.c.h.b16 %v2454
  %v3026 = vunpack.c.l.b16 %v2455
  %v3027 = vunpack.c.h.b16 %v2455
  %v3028 = vunpack.c.l.b16 %v2456
  %v3029 = vunpack.c.h.b16 %v2456
  %v3030 = vunpack.c.l.b16 %v2457
  %v3031 = vunpack.c.h.b16 %v2457
  %v3032 = vunpack.c.l.b16 %v2458
  %v3033 = vunpack.c.h.b16 %v2458
  %v3034 = vunpack.c.l.b16 %v2459
  %v3035 = vunpack.c.h.b16 %v2459
  %v3036 = vunpack.c.l.b16 %v2460
  %v3037 = vunpack.c.h.b16 %v2460
  %v3038 = vunpack.c.l.b16 %v2461
  %v3039 = vunpack.c.h.b16 %v2461
  %v3040 = vunpack.c.l.b16 %v2462
  %v3041 = vunpack.c.h.b16 %v2462
  %v3042 = vunpack.c.l.b16 %v2463
  %v3043 = vunpack.c.h.b16 %v2463
  %v3044 = vunpack.c.l.b16 %v2464
  %v3045 = vunpack.c.h.b16 %v2464
  %v3046 = vunpack.c.l.b16 %v2465
  %v3047 = vunpack.c.h.b16 %v2465
  %v3048 = vunpack.c.l.b16 %v2466
  %v3049 = vunpack.c.h.b16 %v2466
  %v3050 = vunpack.c.l.b16 %v2467
  %v3051 = vunpack.c.h.b16 %v2467
  %v3052 = vunpack.c.l.b16 %v2468
  %v3053 = vunpack.c.h.b16 %v2468
  %v3054 = vunpack.c.l.b16 %v2469
  %v3055 = vunpack.c.h.b16 %v2469
  %v3056 = vunpack.c.l.b16 %v2470
  %v3057 = vunpack.c.h.b16 %v2470
  %v3058 = vunpack.c.l.b16 %v2471
  %v3059 = vunpack.c.h.b16 %v2471
  %v3060 = vunpack.c.l.b16 %v2472
  %v3061 = vunpack.c.h.b16 %v2472
  %v3062 = vunpack.c.l.b16 %v2473
  %v3063 = vunpack.c.h.b16 %v2473
  %v3064 = vunpack.c.l.b16 %v2474
  %v3065 = vunpack.c.h.b16 %v2474
  %v3066 = vunpack.c.l.b16 %v2475
  %v3067 = vunpack.c.h.b16 %v2475
  %v3068 = vunpack.c.l.b16 %v2476
  %v3069 = vunpack.c.h.b16 %v2476
  %v3070 = vunpack.c.l.b16 %v2477
  %v3071 = vunpack.c.h.b16 %v2477
  %v3072 = vunpack.c.l.b16 %v2478
  %v3073 = vunpack.c.h.b16 %v2478
  %v3074 = vunpack.c.l.b16 %v2479
  %v3075 = vunpack.c.h.b16 %v2479
  %v3076 = vunpack.c.l.b16 %v2480
  %v3077 = vunpack.c.h.b16 %v2480
  %v3078 = vunpack.c.l.b16 %v2481
  %v3079 = vunpack.c.h.b16 %v2481
  %v3080 = vunpack.c.l.b16 %v2482
  %v3081 = vunpack.c.h.b16 %v2482
  %v3082 = vunpack.c.l.b16 %v2483
  %v3083 = vunpack.c.h.b16 %v2483
  %v3084 = vunpack.c.l.b16 %v2484
  %v3085 = vunpack.c.h.b16 %v2484
  %v3086 = vunpack.c.l.b16 %v2485
  %v3087 = vunpack.c.h.b16 %v2485
  %v3088 = vunpack.c.l.b16 %v2486
  %v3089 = vunpack.c.h.b16 %v2486
  %v3090 = vunpack.c.l.b16 %v2487
  %v3091 = vunpack.c.h.b16 %v2487
  %v3092 = vunpack.c.l.b16 %v2488
  %v3093 = vunpack.c.h.b16 %v2488
  %v3094 = vunpack.c.l.b16 %v2489
  %v3095 = vunpack.c.h.b16 %v2489
  %v3096 = vunpack.c.l.b16 %v2490
  %v3097 = vunpack.c.h.b16 %v2490
  %v3098 = vunpack.c.l.b16 %v2491
  %v3099 = vunpack.c.h.b16 %v2491
  %v3100 = vunpack.c.l.b16 %v2492
  %v3101 = vunpack.c.h.b16 %v2492
  %v3102 = vunpack.c.l.b16 %v2493
  %v3103 = vunpack.c.h.b16 %v2493
  %v3104 = vunpack.c.l.b16 %v2494
  %v3105 = vunpack.c.h.b16 %v2494
  %v3106 = vunpack.c.l.b16 %v2495
  %v3107 = vunpack.c.h.b16 %v2495
  %v3108 = vunpack.c.l.b16 %v2496
  %v3109 = vunpack.c.h.b16 %v2496
  %v3110 = vunpack.c.l.b16 %v2497
  %v3111 = vunpack.c.h.b16 %v2497
  %v3112 = vunpack.c.l.b16 %v2498
  %v3113 = vunpack.c.h.b16 %v2498
  %v3114 = vunpack.c.l.b16 %v2499
  %v3115 = vunpack.c.h.b16 %v2499
  %v3116 = vunpack.c.l.b16 %v2500
  %v3117 = vunpack.c.h.b16 %v2500
  %v3118 = vunpack.c.l.b16 %v2501
  %v3119 = vunpack.c.h.b16 %v2501
  %v3120 = vunpack.c.l.b16 %v2502
  %v3121 = vunpack.c.h.b16 %v2502
  %v3122 = vunpack.c.l.b16 %v2503
  %v3123 = vunpack.c.h.b16 %v2503
  %v3124 = vunpack.c.l.b16 %v2504
  %v3125 = vunpack.c.h.b16 %v2504
  %v3126 = vunpack.c.l.b16 %v2505
  %v3127 = vunpack.c.h.b16 %v2505
  %v3128 = vunpack.c.l.b16 %v2506
  %v3129 = vunpack.c.h.b16 %v2506
  %v3130 = vunpack.c.l.b16 %v2507
  %v3131 = vunpack.c.h.b16 %v2507
  %v3132 = vunpack.c.l.b16 %v2508
  %v3133 = vunpack.c.h.b16 %v2508
  %v3134 = vunpack.c.l.b16 %v2509
  %v3135 = vunpack.c.h.b16 %v2509
  %v3136 = vunpack.c.l.b16 %v2510
  %v3137 = vunpack.c.h.b16 %v2510
  %v3138 = vunpack.c.l.b16 %v2511
  %v3139 = vunpack.c.h.b16 %v2511
  %v3140 = vunpack.c.l.b16 %v2512
  %v3141 = vunpack.c.h.b16 %v2512
  %v3142 = vunpack.c.l.b16 %v2513
  %v3143 = vunpack.c.h.b16 %v2513
  %v3144 = vunpack.c.l.b16 %v2514
  %v3145 = vunpack.c.h.b16 %v2514
  %v3146 = vunpack.c.l.b16 %v2515
  %v3147 = vunpack.c.h.b16 %v2515
  %v3148 = vunpack.c.l.b16 %v2516
  %v3149 = vunpack.c.h.b16 %v2516
  %v3150 = vunpack.c.l.b16 %v2517
  %v3151 = vunpack.c.h.b16 %v2517
  %v3152 = vunpack.c.l.b16 %v2518
  %v3153 = vunpack.c.h.b16 %v2518
  %v3154 = vunpack.c.l.b16 %v2519
  %v3155 = vunpack.c.h.b16 %v2519
  %v3156 = vunpack.c.l.b16 %v2520
  %v3157 = vunpack.c.h.b16 %v2520
  %v3158 = vunpack.c.l.b16 %v2521
  %v3159 = vunpack.c.h.b16 %v2521
  %v3160 = vunpack.c.l.b16 %v2522
  %v3161 = vunpack.c.h.b16 %v2522
  %v3162 = vunpack.c.l.b16 %v2523
  %v3163 = vunpack.c.h.b16 %v2523
  %v3164 = vunpack.c.l.b16 %v2524
  %v3165 = vunpack.c.h.b16 %v2524
  %v3166 = vunpack.c.l.b16 %v2525
  %v3167 = vunpack.c.h.b16 %v2525
  %v3168 = vunpack.c.l.b16 %v2526
  %v3169 = vunpack.c.h.b16 %v2526
  %v3170 = vunpack.c.l.b16 %v2527
  %v3171 = vunpack.c.h.b16 %v2527
  %v3172 = vunpack.c.l.b16 %v2528
  %v3173 = vunpack.c.h.b16 %v2528
  %v3174 = vunpack.c.l.b16 %v2529
  %v3175 = vunpack.c.h.b16 %v2529
  %v3176 = vunpack.c.l.b16 %v2530
  %v3177 = vunpack.c.h.b16 %v2530
  %v3178 = vunpack.c.l.b16 %v2531
  %v3179 = vunpack.c.h.b16 %v2531
  %v3180 = vunpack.c.l.b16 %v2532
  %v3181 = vunpack.c.h.b16 %v2532
  %v3182 = vunpack.c.l.b16 %v2533
  %v3183 = vunpack.c.h.b16 %v2533
  %v3184 = vunpack.c.l.b16 %v2534
  %v3185 = vunpack.c.h.b16 %v2534
  %v3186 = vunpack.c.l.b16 %v2535
  %v3187 = vunpack.c.h.b16 %v2535
  %v3188 = vunpack.c.l.b16 %v2536
  %v3189 = vunpack.c.h.b16 %v2536
  %v3190 = vunpack.c.l.b16 %v2537
  %v3191 = vunpack.c.h.b16 %v2537
  %v3192 = vunpack.c.l.b16 %v2538
  %v3193 = vunpack.c.h.b16 %v2538
  %v3194 = vunpack.c.l.b16 %v2539
  %v3195 = vunpack.c.h.b16 %v2539
  %v3196 = vunpack.c.l.b16 %v2540
  %v3197 = vunpack.c.h.b16 %v2540
  %v3198 = vunpack.c.l.b16 %v2541
  %v3199 = vunpack.c.h.b16 %v2541
  %v3200 = vunpack.c.l.b16 %v2542
  %v3201 = vunpack.c.h.b16 %v2542
  %v3202 = vunpack.c.l.b16 %v2543
  %v3203 = vunpack.c.h.b16 %v2543
  %v3204 = vunpack.c.l.b16 %v2544
  %v3205 = vunpack.c.h.b16 %v2544
  %v3206 = vunpack.c.l.b16 %v2545
  %v3207 = vunpack.c.h.b16 %v2545
  %v3208 = vunpack.c.l.b16 %v2546
  %v3209 = vunpack.c.h.b16 %v2546
  %v3210 = vunpack.c.l.b16 %v2547
  %v3211 = vunpack.c.h.b16 %v2547
  %v3212 = vunpack.c.l.b16 %v2548
  %v3213 = vunpack.c.h.b16 %v2548
  %v3214 = vunpack.c.l.b16 %v2549
  %v3215 = vunpack.c.h.b16 %v2549
  %v3216 = vunpack.c.l.b16 %v2550
  %v3217 = vunpack.c.h.b16 %v2550
  %v3218 = vunpack.c.l.b16 %v2551
  %v3219 = vunpack.c.h.b16 %v2551
  %v3220 = vunpack.c.l.b16 %v2552
  %v3221 = vunpack.c.h.b16 %v2552
  %v3222 = vunpack.c.l.b16 %v2553
  %v3223 = vunpack.c.h.b16 %v2553
  %v3224 = vunpack.c.l.b16 %v2554
  %v3225 = vunpack.c.h.b16 %v2554
  %v3226 = vunpack.c.l.b16 %v2555
  %v3227 = vunpack.c.h.b16 %v2555
  %v3228 = vunpack.c.l.b16 %v2556
  %v3229 = vunpack.c.h.b16 %v2556
  %v3230 = vunpack.c.l.b16 %v2557
  %v3231 = vunpack.c.h.b16 %v2557
  %v3232 = vunpack.c.l.b16 %v2558
  %v3233 = vunpack.c.h.b16 %v2558
  %v3234 = vunpack.c.l.b16 %v2559
  %v3235 = vunpack.c.h.b16 %v2559
  %v3236 = vunpack.c.l.b16 %v2560
  %v3237 = vunpack.c.h.b16 %v2560
  %v3238 = vunpack.c.l.b16 %v2561
  %v3239 = vunpack.c.h.b16 %v2561
  %v3240 = vunpack.c.l.b16 %v2562
  %v3241 = vunpack.c.h.b16 %v2562
  %v3242 = vunpack.c.l.b16 %v2563
  %v3243 = vunpack.c.h.b16 %v2563
  %v3244 = vunpack.c.l.b16 %v2564
  %v3245 = vunpack.c.h.b16 %v2564
  %v3246 = vunpack.c.l.b16 %v2565
  %v3247 = vunpack.c.h.b16 %v2565
  %v3248 = vunpack.c.l.b16 %v2566
  %v3249 = vunpack.c.h.b16 %v2566
  %v3250 = vunpack.c.l.b16 %v2567
  %v3251 = vunpack.c.h.b16 %v2567
  %v3252 = vpack.c.b16 %v2868, %v2852
  %v3253 = vpack.c.b16 %v2869, %v2853
  %v3254 = vpack.c.b16 %v2870, %v2854
  %v3255 = vpack.c.b16 %v2871, %v2855
  %v3256 = vpack.c.b16 %v2872, %v2856
  %v3257 = vpack.c.b16 %v2873, %v2857
  %v3258 = vpack.c.b16 %v2874, %v2858
  %v3259 = vpack.c.b16 %v2875, %v2859
  %v3260 = vpack.c.b16 %v2876, %v2860
  %v3261 = vpack.c.b16 %v2877, %v2861
  %v3262 = vpack.c.b16 %v2878, %v2862
  %v3263 = vpack.c.b16 %v2879, %v2863
  %v3264 = vpack.c.b16 %v2880, %v2864
  %v3265 = vpack.c.b16 %v2881, %v2865
  %v3266 = vpack.c.b16 %v2882, %v2866
  %v3267 = vpack.c.b16 %v2883, %v2867
  %v3268 = vpack.c.b16 %v2900, %v2884
  %v3269 = vpack.c.b16 %v2901, %v2885
  %v3270 = vpack.c.b16 %v2902, %v2886
  %v3271 = vpack.c.b16 %v2903, %v2887
  %v3272 = vpack.c.b16 %v2904, %v2888
  %v3273 = vpack.c.b16 %v2905, %v2889
  %v3274 = vpack.c.b16 %v2906, %v2890
  %v3275 = vpack.c.b16 %v2907, %v2891
  %v3276 = vpack.c.b16 %v2908, %v2892
  %v3277 = vpack.c.b16 %v2909, %v2893
  %v3278 = vpack.c.b16 %v2910, %v2894
  %v3279 = vpack.c.b16 %v2911, %v2895
  %v3280 = vpack.c.b16 %v2912, %v2896
  %v3281 = vpack.c.b16 %v2913, %v2897
  %v3282 = vpack.c.b16 %v2914, %v2898
  %v3283 = vpack.c.b16 %v2915, %v2899
  %v3284 = vpack.c.b16 %v2932, %v2916
  %v3285 = vpack.c.b16 %v2933, %v2917
  %v3286 = vpack.c.b16 %v2934, %v2918
  %v3287 = vpack.c.b16 %v2935, %v2919
  %v3288 = vpack.c.b16 %v2936, %v2920
  %v3289 = vpack.c.b16 %v2937, %v2921
  %v3290 = vpack.c.b16 %v2938, %v2922
  %v3291 = vpack.c.b16 %v2939, %v2923
  %v3292 = vpack.c.b16 %v2940, %v2924
  %v3293 = vpack.c.b16 %v2941, %v2925
  %v3294 = vpack.c.b16 %v2942, %v2926
  %v3295 = vpack.c.b16 %v2943, %v2927
  %v3296 = vpack.c.b16 %v2944, %v2928
  %v3297 = vpack.c.b16 %v2945, %v2929
  %v3298 = vpack.c.b16 %v2946, %v2930
  %v3299 = vpack.c.b16 %v2947, %v2931
  %v3300 = vpack.c.b16 %v2964, %v2948
  %v3301 = vpack.c.b16 %v2965, %v2949
  %v3302 = vpack.c.b16 %v2966, %v2950
  %v3303 = vpack.c.b16 %v2967, %v2951
  %v3304 = vpack.c.b16 %v2968, %v2952
  %v3305 = vpack.c.b16 %v2969, %v2953
  %v3306 = vpack.c.b16 %v2970, %v2954
  %v3307 = vpack.c.b16 %v2971, %v2955
  %v3308 = vpack.c.b16 %v2972, %v2956
  %v3309 = vpack.c.b16 %v2973, %v2957
  %v3310 = vpack.c.b16 %v2974, %v2958
  %v3311 = vpack.c.b16 %v2975, %v2959
  %v3312 = vpack.c.b16 %v2976, %v2960
  %v3313 = vpack.c.b16 %v2977, %v2961
  %v3314 = vpack.c.b16 %v2978, %v2962
  %v3315 = vpack.c.b16 %v2979, %v2963
  %v3316 = vpack.c.b16 %v2996, %v2980
  %v3317 = vpack.c.b16 %v2997, %v2981
  %v3318 = vpack.c.b16 %v2998, %v2982
  %v3319 = vpack.c.b16 %v2999, %v2983
  %v3320 = vpack.c.b16 %v3000, %v2984
  %v3321 = vpack.c.b16 %v3001, %v2985
  %v3322 = vpack.c.b16 %v3002, %v2986
  %v3323 = vpack.c.b16 %v3003, %v2987
  %v3324 = vpack.c.b16 %v3004, %v2988
  %v3325 = vpack.c.b16 %v3005, %v2989
  %v3326 = vpack.c.b16 %v3006, %v2990
  %v3327 = vpack.c.b16 %v3007, %v2991
  %v3328 = vpack.c.b16 %v3008, %v2992
  %v3329 = vpack.c.b16 %v3009, %v2993
  %v3330 = vpack.c.b16 %v3010, %v2994
  %v3331 = vpack.c.b16 %v3011, %v2995
  %v3332 = vpack.c.b16 %v3028, %v3012
  %v3333 = vpack.c.b16 %v3029, %v3013
  %v3334 = vpack.c.b16 %v3030, %v3014
  %v3335 = vpack.c.b16 %v3031, %v3015
  %v3336 = vpack.c.b16 %v3032, %v3016
  %v3337 = vpack.c.b16 %v3033, %v3017
  %v3338 = vpack.c.b16 %v3034, %v3018
  %v3339 = vpack.c.b16 %v3035, %v3019
  %v3340 = vpack.c.b16 %v3036, %v3020
  %v3341 = vpack.c.b16 %v3037, %v3021
  %v3342 = vpack.c.b16 %v3038, %v3022
  %v3343 = vpack.c.b16 %v3039, %v3023
  %v3344 = vpack.c.b16 %v3040, %v3024
  %v3345 = vpack.c.b16 %v3041, %v3025
  %v3346 = vpack.c.b16 %v3042, %v3026
  %v3347 = vpack.c.b16 %v3043, %v3027
  %v3348 = vpack.c.b16 %v3060, %v3044
  %v3349 = vpack.c.b16 %v3061, %v3045
  %v3350 = vpack.c.b16 %v3062, %v3046
  %v3351 = vpack.c.b16 %v3063, %v3047
  %v3352 = vpack.c.b16 %v3064, %v3048
  %v3353 = vpack.c.b16 %v3065, %v3049
  %v3354 = vpack.c.b16 %v3066, %v3050
  %v3355 = vpack.c.b16 %v3067, %v3051
  %v3356 = vpack.c.b16 %v3068, %v3052
  %v3357 = vpack.c.b16 %v3069, %v3053
  %v3358 = vpack.c.b16 %v3070, %v3054
  %v3359 = vpack.c.b16 %v3071, %v3055
  %v3360 = vpack.c.b16 %v3072, %v3056
  %v3361 = vpack.c.b16 %v3073, %v3057
  %v3362 = vpack.c.b16 %v3074, %v3058
  %v3363 = vpack.c.b16 %v3075, %v3059
  %v3364 = vpack.c.b16 %v3092, %v3076
  %v3365 = vpack.c.b16 %v3093, %v3077
  %v3366 = vpack.c.b16 %v3094, %v3078
  %v3367 = vpack.c.b16 %v3095, %v3079
  %v3368 = vpack.c.b16 %v3096, %v3080
  %v3369 = vpack.c.b16 %v3097, %v3081
  %v3370 = vpack.c.b16 %v3098, %v3082
  %v3371 = vpack.c.b16 %v3099, %v3083
  %v3372 = vpack.c.b16 %v3100, %v3084
  %v3373 = vpack.c.b16 %v3101, %v3085
  %v3374 = vpack.c.b16 %v3102, %v3086
  %v3375 = vpack.c.b16 %v3103, %v3087
  %v3376 = vpack.c.b16 %v3104, %v3088
  %v3377 = vpack.c.b16 %v3105, %v3089
  %v3378 = vpack.c.b16 %v3106, %v3090
  %v3379 = vpack.c.b16 %v3107, %v3091
  %v3380 = vpack.c.b16 %v3124, %v3108
  %v3381 = vpack.c.b16 %v3125, %v3109
  %v3382 = vpack.c.b16 %v3126, %v3110
  %v3383 = vpack.c.b16 %v3127, %v3111
  %v3384 = vpack.c.b16 %v3128, %v3112
  %v3385 = vpack.c.b16 %v3129, %v3113
  %v3386 = vpack.c.b16 %v3130, %v3114
  %v3387 = vpack.c.b16 %v3131, %v3115
  %v3388 = vpack.c.b16 %v3132, %v3116
  %v3389 = vpack.c.b16 %v3133, %v3117
  %v3390 = vpack.c.b16 %v3134, %v3118
  %v3391 = vpack.c.b16 %v3135, %v3119
  %v3392 = vpack.c.b16 %v3136, %v3120
  %v3393 = vpack.c.b16 %v3137, %v3121
  %v3394 = vpack.c.b16 %v3138, %v3122
  %v3395 = vpack.c.b16 %v3139, %v3123
  %v3396 = vpack.c.b16 %v3156, %v3140
  %v3397 = vpack.c.b16 %v3157, %v3141
  %v3398 = vpack.c.b16 %v3158, %v3142
  %v3399 = vpack.c.b16 %v3159, %v3143
  %v3400 = vpack.c.b16 %v3160, %v3144
  %v3401 = vpack.c.b16 %v3161, %v3145
  %v3402 = vpack.c.b16 %v3162, %v3146
  %v3403 = vpack.c.b16 %v3163, %v3147
  %v3404 = vpack.c.b16 %v3164, %v3148
  %v3405 = vpack.c.b16 %v3165, %v3149
  %v3406 = vpack.c.b16 %v3166, %v3150
  %v3407 = vpack.c.b16 %v3167, %v3151
  %v3408 = vpack.c.b16 %v3168, %v3152
  %v3409 = vpack.c.b16 %v3169, %v3153
  %v3410 = vpack.c.b16 %v3170, %v3154
  %v3411 = vpack.c.b16 %v3171, %v3155
  %v3412 = vpack.c.b16 %v3188, %v3172
  %v3413 = vpack.c.b16 %v3189, %v3173
  %v3414 = vpack.c.b16 %v3190, %v3174
  %v3415 = vpack.c.b16 %v3191, %v3175
  %v3416 = vpack.c.b16 %v3192, %v3176
  %v3417 = vpack.c.b16 %v3193, %v3177
  %v3418 = vpack.c.b16 %v3194, %v3178
  %v3419 = vpack.c.b16 %v3195, %v3179
  %v3420 = vpack.c.b16 %v3196, %v3180
  %v3421 = vpack.c.b16 %v3197, %v3181
  %v3422 = vpack.c.b16 %v3198, %v3182
  %v3423 = vpack.c.b16 %v3199, %v3183
  %v3424 = vpack.c.b16 %v3200, %v3184
  %v3425 = vpack.c.b16 %v3201, %v3185
  %v3426 = vpack.c.b16 %v3202, %v3186
  %v3427 = vpack.c.b16 %v3203, %v3187
  %v3428 = vpack.c.b16 %v3220, %v3204
  %v3429 = vpack.c.b16 %v3221, %v3205
  %v3430 = vpack.c.b16 %v3222, %v3206
  %v3431 = vpack.c.b16 %v3223, %v3207
  %v3432 = vpack.c.b16 %v3224, %v3208
  %v3433 = vpack.c.b16 %v3225, %v3209
  %v3434 = vpack.c.b16 %v3226, %v3210
  %v3435 = vpack.c.b16 %v3227, %v3211
  %v3436 = vpack.c.b16 %v3228, %v3212
  %v3437 = vpack.c.b16 %v3229, %v3213
  %v3438 = vpack.c.b16 %v3230, %v3214
  %v3439 = vpack.c.b16 %v3231, %v3215
  %v3440 = vpack.c.b16 %v3232, %v3216
  %v3441 = vpack.c.b16 %v3233, %v3217
  %v3442 = vpack.c.b16 %v3234, %v3218
  %v3443 = vpack.c.b16 %v3235, %v3219
  %v3444 = vpack.c.b16 %v3236, %v3236
  %v3445 = vpack.c.b16 %v3237, %v3237
  %v3446 = vpack.c.b16 %v3238, %v3238
  %v3447 = vpack.c.b16 %v3239, %v3239
  %v3448 = vpack.c.b16 %v3240, %v3240
  %v3449 = vpack.c.b16 %v3241, %v3241
  %v3450 = vpack.c.b16 %v3242, %v3242
  %v3451 = vpack.c.b16 %v3243, %v3243
  %v3452 = vpack.c.b16 %v3244, %v3244
  %v3453 = vpack.c.b16 %v3245, %v3245
  %v3454 = vpack.c.b16 %v3246, %v3246
  %v3455 = vpack.c.b16 %v3247, %v3247
  %v3456 = vpack.c.b16 %v3248, %v3248
  %v3457 = vpack.c.b16 %v3249, %v3249
  %v3458 = vpack.c.b16 %v3250, %v3250
  %v3459 = vpack.c.b16 %v3251, %v3251
  %v3653 = vsel %vm224, %v2367, 0
  %vm3655 = vcmask 1043456
  %v3657 = vsel %vm3655, %v3444, 0
  %v3660 = vsel %vm3655, %v3445, 0
  %v3663 = vsel %vm3655, %v3446, 0
  %v3666 = vsel %vm3655, %v3447, 0
  %v3669 = vsel %vm3655, %v3448, 0
  %v3672 = vsel %vm3655, %v3449, 0
  %v3675 = vsel %vm3655, %v3450, 0
  %v3678 = vsel %vm3655, %v3451, 0
  %v3681 = vsel %vm3655, %v3452, 0
  %v3684 = vsel %vm3655, %v3453, 0
  %v3687 = vsel %vm3655, %v3454, 0
  %v3690 = vsel %vm3655, %v3455, 0
  %v3693 = vsel %vm3655, %v3456, 0
  %v3696 = vsel %vm3655, %v3457, 0
  %v3699 = vsel %vm3655, %v3458, 0
  %v3702 = vsel %vm3655, %v3459, 0
  %3704 = vmatprep.subr.bf16.mxu0 %v3365
  %3705 = vmatpush1.bf16.msra.mxu0 %v3364
  %3706 = vmatprep.subr.bf16.mxu0 %v3349
  %3707 = vmatpush1.bf16.msra.mxu0 %v3348
  %3708 = vmatprep.subr.bf16.mxu0 %v3333
  %3709 = vmatpush1.bf16.msra.mxu0 %v3332
  %3710 = vmatprep.subr.bf16.mxu0 %v3317
  %3711 = vmatpush1.bf16.msra.mxu0 %v3316
  %3712 = vmatprep.subr.bf16.mxu0 %v3301
  %3713 = vmatpush1.bf16.msra.mxu0 %v3300
  %3714 = vmatprep.subr.bf16.mxu0 %v3285
  %3715 = vmatpush1.bf16.msra.mxu0 %v3284
  %3716 = vmatprep.subr.bf16.mxu0 %v3269
  %3717 = vmatpush1.bf16.msra.mxu0 %v3268
  %3718 = vmatprep.subr.bf16.mxu0 %v3253
  %3719 = vmatpush1.bf16.msra.mxu0 %v3252
  %3720 = vmatprep.subr.bf16.mxu0 0
  %3721 = vmatpush2.bf16.msra.mxu0 0
  %3722 = vmatprep.subr.bf16.mxu0 0
  %3723 = vmatpush2.bf16.msra.mxu0 0
  %3724 = vmatprep.subr.bf16.mxu0 0
  %3725 = vmatpush2.bf16.msra.mxu0 0
  %3726 = vmatprep.subr.bf16.mxu0 %v3660
  %3727 = vmatpush2.bf16.msra.mxu0 %v3657
  %3728 = vmatprep.subr.bf16.mxu0 %v3429
  %3729 = vmatpush2.bf16.msra.mxu0 %v3428
  %3730 = vmatprep.subr.bf16.mxu0 %v3413
  %3731 = vmatpush2.bf16.msra.mxu0 %v3412
  %3732 = vmatprep.subr.bf16.mxu0 %v3397
  %3733 = vmatpush2.bf16.msra.mxu0 %v3396
  %3734 = vmatprep.subr.bf16.mxu0 %v3381
  %3735 = vmatpush2.bf16.msra.mxu0 %v3380
  %3736 = vmatprep.mubr.bf16.mxu0 %v3653
  %3737 = vmatmul.mubr.bf16.gmra.mxu0 %v2366
  %v3738 = vpop.f32.mrf.mxu0
  %v3739 = vadd.f32 %v2575, %v3738
  %v3740 = vpop.f32.mrf.mxu0
  %v3741 = vadd.f32 %v2579, %v3740
  %v3742 = vpop.f32.mrf.mxu0
  %v3743 = vadd.f32 %v2575, %v3742
  %v3744 = vpop.f32.mrf.mxu0
  %v3745 = vadd.f32 %v2579, %v3744
  %3746 = vdwg.mxu0
  %3747 = vmatprep.subr.bf16.mxu0 %v3367
  %3748 = vmatpush1.bf16.msra.mxu0 %v3366
  %3749 = vmatprep.subr.bf16.mxu0 %v3351
  %3750 = vmatpush1.bf16.msra.mxu0 %v3350
  %3751 = vmatprep.subr.bf16.mxu0 %v3335
  %3752 = vmatpush1.bf16.msra.mxu0 %v3334
  %3753 = vmatprep.subr.bf16.mxu0 %v3319
  %3754 = vmatpush1.bf16.msra.mxu0 %v3318
  %3755 = vmatprep.subr.bf16.mxu0 %v3303
  %3756 = vmatpush1.bf16.msra.mxu0 %v3302
  %3757 = vmatprep.subr.bf16.mxu0 %v3287
  %3758 = vmatpush1.bf16.msra.mxu0 %v3286
  %3759 = vmatprep.subr.bf16.mxu0 %v3271
  %3760 = vmatpush1.bf16.msra.mxu0 %v3270
  %3761 = vmatprep.subr.bf16.mxu0 %v3255
  %3762 = vmatpush1.bf16.msra.mxu0 %v3254
  %3763 = vmatprep.subr.bf16.mxu0 0
  %3764 = vmatpush2.bf16.msra.mxu0 0
  %3765 = vmatprep.subr.bf16.mxu0 0
  %3766 = vmatpush2.bf16.msra.mxu0 0
  %3767 = vmatprep.subr.bf16.mxu0 0
  %3768 = vmatpush2.bf16.msra.mxu0 0
  %3769 = vmatprep.subr.bf16.mxu0 %v3666
  %3770 = vmatpush2.bf16.msra.mxu0 %v3663
  %3771 = vmatprep.subr.bf16.mxu0 %v3431
  %3772 = vmatpush2.bf16.msra.mxu0 %v3430
  %3773 = vmatprep.subr.bf16.mxu0 %v3415
  %3774 = vmatpush2.bf16.msra.mxu0 %v3414
  %3775 = vmatprep.subr.bf16.mxu0 %v3399
  %3776 = vmatpush2.bf16.msra.mxu0 %v3398
  %3777 = vmatprep.subr.bf16.mxu0 %v3383
  %3778 = vmatpush2.bf16.msra.mxu0 %v3382
  %3779 = vmatprep.mubr.bf16.mxu0 %v3653
  %3780 = vmatmul.mubr.bf16.gmra.mxu0 %v2366
  %v3781 = vpop.f32.mrf.mxu0
  %v3782 = vadd.f32 %v2583, %v3781
  %v3783 = vpop.f32.mrf.mxu0
  %v3784 = vadd.f32 %v2587, %v3783
  %v3785 = vpop.f32.mrf.mxu0
  %v3786 = vadd.f32 %v2583, %v3785
  %v3787 = vpop.f32.mrf.mxu0
  %v3788 = vadd.f32 %v2587, %v3787
  %3789 = vdwg.mxu0
  %3790 = vmatprep.subr.bf16.mxu0 %v3369
  %3791 = vmatpush1.bf16.msra.mxu0 %v3368
  %3792 = vmatprep.subr.bf16.mxu0 %v3353
  %3793 = vmatpush1.bf16.msra.mxu0 %v3352
  %3794 = vmatprep.subr.bf16.mxu0 %v3337
  %3795 = vmatpush1.bf16.msra.mxu0 %v3336
  %3796 = vmatprep.subr.bf16.mxu0 %v3321
  %3797 = vmatpush1.bf16.msra.mxu0 %v3320
  %3798 = vmatprep.subr.bf16.mxu0 %v3305
  %3799 = vmatpush1.bf16.msra.mxu0 %v3304
  %3800 = vmatprep.subr.bf16.mxu0 %v3289
  %3801 = vmatpush1.bf16.msra.mxu0 %v3288
  %3802 = vmatprep.subr.bf16.mxu0 %v3273
  %3803 = vmatpush1.bf16.msra.mxu0 %v3272
  %3804 = vmatprep.subr.bf16.mxu0 %v3257
  %3805 = vmatpush1.bf16.msra.mxu0 %v3256
  %3806 = vmatprep.subr.bf16.mxu0 0
  %3807 = vmatpush2.bf16.msra.mxu0 0
  %3808 = vmatprep.subr.bf16.mxu0 0
  %3809 = vmatpush2.bf16.msra.mxu0 0
  %3810 = vmatprep.subr.bf16.mxu0 0
  %3811 = vmatpush2.bf16.msra.mxu0 0
  %3812 = vmatprep.subr.bf16.mxu0 %v3672
  %3813 = vmatpush2.bf16.msra.mxu0 %v3669
  %3814 = vmatprep.subr.bf16.mxu0 %v3433
  %3815 = vmatpush2.bf16.msra.mxu0 %v3432
  %3816 = vmatprep.subr.bf16.mxu0 %v3417
  %3817 = vmatpush2.bf16.msra.mxu0 %v3416
  %3818 = vmatprep.subr.bf16.mxu0 %v3401
  %3819 = vmatpush2.bf16.msra.mxu0 %v3400
  %3820 = vmatprep.subr.bf16.mxu0 %v3385
  %3821 = vmatpush2.bf16.msra.mxu0 %v3384
  %3822 = vmatprep.mubr.bf16.mxu0 %v3653
  %3823 = vmatmul.mubr.bf16.gmra.mxu0 %v2366
  %v3824 = vpop.f32.mrf.mxu0
  %v3825 = vadd.f32 %v2591, %v3824
  %v3826 = vpop.f32.mrf.mxu0
  %v3827 = vadd.f32 %v2595, %v3826
  %v3828 = vpop.f32.mrf.mxu0
  %v3829 = vadd.f32 %v2591, %v3828
  %v3830 = vpop.f32.mrf.mxu0
  %v3831 = vadd.f32 %v2595, %v3830
  %3832 = vdwg.mxu0
  %3833 = vmatprep.subr.bf16.mxu0 %v3371
  %3834 = vmatpush1.bf16.msra.mxu0 %v3370
  %3835 = vmatprep.subr.bf16.mxu0 %v3355
  %3836 = vmatpush1.bf16.msra.mxu0 %v3354
  %3837 = vmatprep.subr.bf16.mxu0 %v3339
  %3838 = vmatpush1.bf16.msra.mxu0 %v3338
  %3839 = vmatprep.subr.bf16.mxu0 %v3323
  %3840 = vmatpush1.bf16.msra.mxu0 %v3322
  %3841 = vmatprep.subr.bf16.mxu0 %v3307
  %3842 = vmatpush1.bf16.msra.mxu0 %v3306
  %3843 = vmatprep.subr.bf16.mxu0 %v3291
  %3844 = vmatpush1.bf16.msra.mxu0 %v3290
  %3845 = vmatprep.subr.bf16.mxu0 %v3275
  %3846 = vmatpush1.bf16.msra.mxu0 %v3274
  %3847 = vmatprep.subr.bf16.mxu0 %v3259
  %3848 = vmatpush1.bf16.msra.mxu0 %v3258
  %3849 = vmatprep.subr.bf16.mxu0 0
  %3850 = vmatpush2.bf16.msra.mxu0 0
  %3851 = vmatprep.subr.bf16.mxu0 0
  %3852 = vmatpush2.bf16.msra.mxu0 0
  %3853 = vmatprep.subr.bf16.mxu0 0
  %3854 = vmatpush2.bf16.msra.mxu0 0
  %3855 = vmatprep.subr.bf16.mxu0 %v3678
  %3856 = vmatpush2.bf16.msra.mxu0 %v3675
  %3857 = vmatprep.subr.bf16.mxu0 %v3435
  %3858 = vmatpush2.bf16.msra.mxu0 %v3434
  %3859 = vmatprep.subr.bf16.mxu0 %v3419
  %3860 = vmatpush2.bf16.msra.mxu0 %v3418
  %3861 = vmatprep.subr.bf16.mxu0 %v3403
  %3862 = vmatpush2.bf16.msra.mxu0 %v3402
  %3863 = vmatprep.subr.bf16.mxu0 %v3387
  %3864 = vmatpush2.bf16.msra.mxu0 %v3386
  %3865 = vmatprep.mubr.bf16.mxu0 %v3653
  %3866 = vmatmul.mubr.bf16.gmra.mxu0 %v2366
  %v3867 = vpop.f32.mrf.mxu0
  %v3868 = vadd.f32 %v2599, %v3867
  %v3869 = vpop.f32.mrf.mxu0
  %v3870 = vadd.f32 %v2603, %v3869
  %v3871 = vpop.f32.mrf.mxu0
  %v3872 = vadd.f32 %v2599, %v3871
  %v3873 = vpop.f32.mrf.mxu0
  %v3874 = vadd.f32 %v2603, %v3873
  %3875 = vdwg.mxu0
  %3876 = vmatprep.subr.bf16.mxu0 %v3373
  %3877 = vmatpush1.bf16.msra.mxu0 %v3372
  %3878 = vmatprep.subr.bf16.mxu0 %v3357
  %3879 = vmatpush1.bf16.msra.mxu0 %v3356
  %3880 = vmatprep.subr.bf16.mxu0 %v3341
  %3881 = vmatpush1.bf16.msra.mxu0 %v3340
  %3882 = vmatprep.subr.bf16.mxu0 %v3325
  %3883 = vmatpush1.bf16.msra.mxu0 %v3324
  %3884 = vmatprep.subr.bf16.mxu0 %v3309
  %3885 = vmatpush1.bf16.msra.mxu0 %v3308
  %3886 = vmatprep.subr.bf16.mxu0 %v3293
  %3887 = vmatpush1.bf16.msra.mxu0 %v3292
  %3888 = vmatprep.subr.bf16.mxu0 %v3277
  %3889 = vmatpush1.bf16.msra.mxu0 %v3276
  %3890 = vmatprep.subr.bf16.mxu0 %v3261
  %3891 = vmatpush1.bf16.msra.mxu0 %v3260
  %3892 = vmatprep.subr.bf16.mxu0 0
  %3893 = vmatpush2.bf16.msra.mxu0 0
  %3894 = vmatprep.subr.bf16.mxu0 0
  %3895 = vmatpush2.bf16.msra.mxu0 0
  %3896 = vmatprep.subr.bf16.mxu0 0
  %3897 = vmatpush2.bf16.msra.mxu0 0
  %3898 = vmatprep.subr.bf16.mxu0 %v3684
  %3899 = vmatpush2.bf16.msra.mxu0 %v3681
  %3900 = vmatprep.subr.bf16.mxu0 %v3437
  %3901 = vmatpush2.bf16.msra.mxu0 %v3436
  %3902 = vmatprep.subr.bf16.mxu0 %v3421
  %3903 = vmatpush2.bf16.msra.mxu0 %v3420
  %3904 = vmatprep.subr.bf16.mxu0 %v3405
  %3905 = vmatpush2.bf16.msra.mxu0 %v3404
  %3906 = vmatprep.subr.bf16.mxu0 %v3389
  %3907 = vmatpush2.bf16.msra.mxu0 %v3388
  %3908 = vmatprep.mubr.bf16.mxu0 %v3653
  %3909 = vmatmul.mubr.bf16.gmra.mxu0 %v2366
  %v3910 = vpop.f32.mrf.mxu0
  %v3911 = vadd.f32 %v2607, %v3910
  %v3912 = vpop.f32.mrf.mxu0
  %v3913 = vadd.f32 %v2611, %v3912
  %v3914 = vpop.f32.mrf.mxu0
  %v3915 = vadd.f32 %v2607, %v3914
  %v3916 = vpop.f32.mrf.mxu0
  %v3917 = vadd.f32 %v2611, %v3916
  %3918 = vdwg.mxu0
  %3919 = vmatprep.subr.bf16.mxu0 %v3375
  %3920 = vmatpush1.bf16.msra.mxu0 %v3374
  %3921 = vmatprep.subr.bf16.mxu0 %v3359
  %3922 = vmatpush1.bf16.msra.mxu0 %v3358
  %3923 = vmatprep.subr.bf16.mxu0 %v3343
  %3924 = vmatpush1.bf16.msra.mxu0 %v3342
  %3925 = vmatprep.subr.bf16.mxu0 %v3327
  %3926 = vmatpush1.bf16.msra.mxu0 %v3326
  %3927 = vmatprep.subr.bf16.mxu0 %v3311
  %3928 = vmatpush1.bf16.msra.mxu0 %v3310
  %3929 = vmatprep.subr.bf16.mxu0 %v3295
  %3930 = vmatpush1.bf16.msra.mxu0 %v3294
  %3931 = vmatprep.subr.bf16.mxu0 %v3279
  %3932 = vmatpush1.bf16.msra.mxu0 %v3278
  %3933 = vmatprep.subr.bf16.mxu0 %v3263
  %3934 = vmatpush1.bf16.msra.mxu0 %v3262
  %3935 = vmatprep.subr.bf16.mxu0 0
  %3936 = vmatpush2.bf16.msra.mxu0 0
  %3937 = vmatprep.subr.bf16.mxu0 0
  %3938 = vmatpush2.bf16.msra.mxu0 0
  %3939 = vmatprep.subr.bf16.mxu0 0
  %3940 = vmatpush2.bf16.msra.mxu0 0
  %3941 = vmatprep.subr.bf16.mxu0 %v3690
  %3942 = vmatpush2.bf16.msra.mxu0 %v3687
  %3943 = vmatprep.subr.bf16.mxu0 %v3439
  %3944 = vmatpush2.bf16.msra.mxu0 %v3438
  %3945 = vmatprep.subr.bf16.mxu0 %v3423
  %3946 = vmatpush2.bf16.msra.mxu0 %v3422
  %3947 = vmatprep.subr.bf16.mxu0 %v3407
  %3948 = vmatpush2.bf16.msra.mxu0 %v3406
  %3949 = vmatprep.subr.bf16.mxu0 %v3391
  %3950 = vmatpush2.bf16.msra.mxu0 %v3390
  %3951 = vmatprep.mubr.bf16.mxu0 %v3653
  %3952 = vmatmul.mubr.bf16.gmra.mxu0 %v2366
  %v3953 = vpop.f32.mrf.mxu0
  %v3954 = vadd.f32 %v2615, %v3953
  %v3955 = vpop.f32.mrf.mxu0
  %v3956 = vadd.f32 %v2619, %v3955
  %v3957 = vpop.f32.mrf.mxu0
  %v3958 = vadd.f32 %v2615, %v3957
  %v3959 = vpop.f32.mrf.mxu0
  %v3960 = vadd.f32 %v2619, %v3959
  %3961 = vdwg.mxu0
  %3962 = vmatprep.subr.bf16.mxu0 %v3377
  %3963 = vmatpush1.bf16.msra.mxu0 %v3376
  %3964 = vmatprep.subr.bf16.mxu0 %v3361
  %3965 = vmatpush1.bf16.msra.mxu0 %v3360
  %3966 = vmatprep.subr.bf16.mxu0 %v3345
  %3967 = vmatpush1.bf16.msra.mxu0 %v3344
  %3968 = vmatprep.subr.bf16.mxu0 %v3329
  %3969 = vmatpush1.bf16.msra.mxu0 %v3328
  %3970 = vmatprep.subr.bf16.mxu0 %v3313
  %3971 = vmatpush1.bf16.msra.mxu0 %v3312
  %3972 = vmatprep.subr.bf16.mxu0 %v3297
  %3973 = vmatpush1.bf16.msra.mxu0 %v3296
  %3974 = vmatprep.subr.bf16.mxu0 %v3281
  %3975 = vmatpush1.bf16.msra.mxu0 %v3280
  %3976 = vmatprep.subr.bf16.mxu0 %v3265
  %3977 = vmatpush1.bf16.msra.mxu0 %v3264
  %3978 = vmatprep.subr.bf16.mxu0 0
  %3979 = vmatpush2.bf16.msra.mxu0 0
  %3980 = vmatprep.subr.bf16.mxu0 0
  %3981 = vmatpush2.bf16.msra.mxu0 0
  %3982 = vmatprep.subr.bf16.mxu0 0
  %3983 = vmatpush2.bf16.msra.mxu0 0
  %3984 = vmatprep.subr.bf16.mxu0 %v3696
  %3985 = vmatpush2.bf16.msra.mxu0 %v3693
  %3986 = vmatprep.subr.bf16.mxu0 %v3441
  %3987 = vmatpush2.bf16.msra.mxu0 %v3440
  %3988 = vmatprep.subr.bf16.mxu0 %v3425
  %3989 = vmatpush2.bf16.msra.mxu0 %v3424
  %3990 = vmatprep.subr.bf16.mxu0 %v3409
  %3991 = vmatpush2.bf16.msra.mxu0 %v3408
  %3992 = vmatprep.subr.bf16.mxu0 %v3393
  %3993 = vmatpush2.bf16.msra.mxu0 %v3392
  %3994 = vmatprep.mubr.bf16.mxu0 %v3653
  %3995 = vmatmul.mubr.bf16.gmra.mxu0 %v2366
  %v3996 = vpop.f32.mrf.mxu0
  %v3997 = vadd.f32 %v2623, %v3996
  %v3998 = vpop.f32.mrf.mxu0
  %v3999 = vadd.f32 %v2627, %v3998
  %v4000 = vpop.f32.mrf.mxu0
  %v4001 = vadd.f32 %v2623, %v4000
  %v4002 = vpop.f32.mrf.mxu0
  %v4003 = vadd.f32 %v2627, %v4002
  %4004 = vdwg.mxu0
  %4005 = vmatprep.subr.bf16.mxu0 %v3379
  %4006 = vmatpush1.bf16.msra.mxu0 %v3378
  %4007 = vmatprep.subr.bf16.mxu0 %v3363
  %4008 = vmatpush1.bf16.msra.mxu0 %v3362
  %4009 = vmatprep.subr.bf16.mxu0 %v3347
  %4010 = vmatpush1.bf16.msra.mxu0 %v3346
  %4011 = vmatprep.subr.bf16.mxu0 %v3331
  %4012 = vmatpush1.bf16.msra.mxu0 %v3330
  %4013 = vmatprep.subr.bf16.mxu0 %v3315
  %4014 = vmatpush1.bf16.msra.mxu0 %v3314
  %4015 = vmatprep.subr.bf16.mxu0 %v3299
  %4016 = vmatpush1.bf16.msra.mxu0 %v3298
  %4017 = vmatprep.subr.bf16.mxu0 %v3283
  %4018 = vmatpush1.bf16.msra.mxu0 %v3282
  %4019 = vmatprep.subr.bf16.mxu0 %v3267
  %4020 = vmatpush1.bf16.msra.mxu0 %v3266
  %4021 = vmatprep.subr.bf16.mxu0 0
  %4022 = vmatpush2.bf16.msra.mxu0 0
  %4023 = vmatprep.subr.bf16.mxu0 0
  %4024 = vmatpush2.bf16.msra.mxu0 0
  %4025 = vmatprep.subr.bf16.mxu0 0
  %4026 = vmatpush2.bf16.msra.mxu0 0
  %4027 = vmatprep.subr.bf16.mxu0 %v3702
  %4028 = vmatpush2.bf16.msra.mxu0 %v3699
  %4029 = vmatprep.subr.bf16.mxu0 %v3443
  %4030 = vmatpush2.bf16.msra.mxu0 %v3442
  %4031 = vmatprep.subr.bf16.mxu0 %v3427
  %4032 = vmatpush2.bf16.msra.mxu0 %v3426
  %4033 = vmatprep.subr.bf16.mxu0 %v3411
  %4034 = vmatpush2.bf16.msra.mxu0 %v3410
  %4035 = vmatprep.subr.bf16.mxu0 %v3395
  %4036 = vmatpush2.bf16.msra.mxu0 %v3394
  %4037 = vmatprep.mubr.bf16.mxu0 %v3653
  %4038 = vmatmul.mubr.bf16.gmra.mxu0 %v2366
  %v4039 = vpop.f32.mrf.mxu0
  %v4040 = vadd.f32 %v2631, %v4039
  %v4041 = vpop.f32.mrf.mxu0
  %v4042 = vadd.f32 %v2635, %v4041
  %v4043 = vpop.f32.mrf.mxu0
  %v4044 = vadd.f32 %v2631, %v4043
  %v4045 = vpop.f32.mrf.mxu0
  %v4046 = vadd.f32 %v2635, %v4045
  %4047 = vdwg.mxu0
  %v4048 = vmax.f32 %v3739, 0.0
  %v4049 = vmax.f32 %v3741, 0.0
  %v4050 = vmax.f32 %v3782, 0.0
  %v4051 = vmax.f32 %v3784, 0.0
  %v4052 = vmax.f32 %v3825, 0.0
  %v4053 = vmax.f32 %v3827, 0.0
  %v4054 = vmax.f32 %v3868, 0.0
  %v4055 = vmax.f32 %v3870, 0.0
  %v4056 = vmax.f32 %v3911, 0.0
  %v4057 = vmax.f32 %v3913, 0.0
  %v4058 = vmax.f32 %v3954, 0.0
  %v4059 = vmax.f32 %v3956, 0.0
  %v4060 = vmax.f32 %v3997, 0.0
  %v4061 = vmax.f32 %v3999, 0.0
  %v4062 = vmax.f32 %v4040, 0.0
  %v4063 = vmax.f32 %v4042, 0.0
  %v4064 = vmax.f32 %v3743, 0.0
  %v4065 = vmax.f32 %v3745, 0.0
  %v4066 = vmax.f32 %v3786, 0.0
  %v4067 = vmax.f32 %v3788, 0.0
  %v4068 = vmax.f32 %v3829, 0.0
  %v4069 = vmax.f32 %v3831, 0.0
  %v4070 = vmax.f32 %v3872, 0.0
  %v4071 = vmax.f32 %v3874, 0.0
  %v4072 = vmax.f32 %v3915, 0.0
  %v4073 = vmax.f32 %v3917, 0.0
  %v4074 = vmax.f32 %v3958, 0.0
  %v4075 = vmax.f32 %v3960, 0.0
  %v4076 = vmax.f32 %v4001, 0.0
  %v4077 = vmax.f32 %v4003, 0.0
  %v4078 = vmax.f32 %v4044, 0.0
  %v4079 = vmax.f32 %v4046, 0.0
  %v4080 = vpack.c.bf16 %v4064, %v4048
  %v4081 = vpack.c.bf16 %v4065, %v4049
  %v4082 = vpack.c.bf16 %v4066, %v4050
  %v4083 = vpack.c.bf16 %v4067, %v4051
  %v4084 = vpack.c.bf16 %v4068, %v4052
  %v4085 = vpack.c.bf16 %v4069, %v4053
  %v4086 = vpack.c.bf16 %v4070, %v4054
  %v4087 = vpack.c.bf16 %v4071, %v4055
  %v4088 = vpack.c.bf16 %v4072, %v4056
  %v4089 = vpack.c.bf16 %v4073, %v4057
  %v4090 = vpack.c.bf16 %v4074, %v4058
  %v4091 = vpack.c.bf16 %v4075, %v4059
  %v4092 = vpack.c.bf16 %v4076, %v4060
  %v4093 = vpack.c.bf16 %v4077, %v4061
  %v4094 = vpack.c.bf16 %v4078, %v4062
  %v4095 = vpack.c.bf16 %v4079, %v4063
  %v4096 = vld [vmem:[%s8] sm:$0xff]
  %v4097 = vld [vmem:[%s8 + $0x8] sm:$0xff]
  %v4098 = vld [vmem:[%s8 + $0x10] sm:$0xff]
  %v4099 = vld [vmem:[%s8 + $0x18] sm:$0xff]
  %v4100 = vld [vmem:[%s8 + $0x20] sm:$0xff]
  %v4101 = vld [vmem:[%s8 + $0x28] sm:$0xff]
  %v4102 = vld [vmem:[%s8 + $0x30] sm:$0xff]
  %v4103 = vld [vmem:[%s8 + $0x38] sm:$0xff]
  %v4104 = vld [vmem:[%s8 + $0x40] sm:$0xff]
  %v4105 = vld [vmem:[%s8 + $0x48] sm:$0xff]
  %v4106 = vld [vmem:[%s8 + $0x50] sm:$0xff]
  %v4107 = vld [vmem:[%s8 + $0x58] sm:$0xff]
  %v4108 = vld [vmem:[%s8 + $0x60] sm:$0xff]
  %v4109 = vld [vmem:[%s8 + $0x68] sm:$0xff]
  %v4110 = vld [vmem:[%s8 + $0x70] sm:$0xff]
  %v4111 = vld [vmem:[%s8 + $0x78] sm:$0xff]
  %v4112 = vld [vmem:[%s8 + $0x80] sm:$0xff]
  %v4113 = vld [vmem:[%s8 + $0x88] sm:$0xff]
  %v4114 = vld [vmem:[%s8 + $0x90] sm:$0xff]
  %v4115 = vld [vmem:[%s8 + $0x98] sm:$0xff]
  %v4116 = vld [vmem:[%s8 + $0xa0] sm:$0xff]
  %v4117 = vld [vmem:[%s8 + $0xa8] sm:$0xff]
  %v4118 = vld [vmem:[%s8 + $0xb0] sm:$0xff]
  %v4119 = vld [vmem:[%s8 + $0xb8] sm:$0xff]
  %v4120 = vld [vmem:[%s8 + $0xc0] sm:$0xff]
  %v4121 = vld [vmem:[%s8 + $0xc8] sm:$0xff]
  %v4122 = vld [vmem:[%s8 + $0xd0] sm:$0xff]
  %v4123 = vld [vmem:[%s8 + $0xd8] sm:$0xff]
  %v4124 = vld [vmem:[%s8 + $0xe0] sm:$0xff]
  %v4125 = vld [vmem:[%s8 + $0xe8] sm:$0xff]
  %v4126 = vld [vmem:[%s8 + $0xf0] sm:$0xff]
  %v4127 = vld [vmem:[%s8 + $0xf8] sm:$0xff]
  %v4128 = vld [vmem:[%s8 + $0x100] sm:$0xff]
  %v4129 = vld [vmem:[%s8 + $0x108] sm:$0xff]
  %v4130 = vld [vmem:[%s8 + $0x110] sm:$0xff]
  %v4131 = vld [vmem:[%s8 + $0x118] sm:$0xff]
  %v4132 = vld [vmem:[%s8 + $0x120] sm:$0xff]
  %v4133 = vld [vmem:[%s8 + $0x128] sm:$0xff]
  %v4134 = vld [vmem:[%s8 + $0x130] sm:$0xff]
  %v4135 = vld [vmem:[%s8 + $0x138] sm:$0xff]
  %v4136 = vld [vmem:[%s8 + $0x140] sm:$0xff]
  %v4137 = vld [vmem:[%s8 + $0x148] sm:$0xff]
  %v4138 = vld [vmem:[%s8 + $0x150] sm:$0xff]
  %v4139 = vld [vmem:[%s8 + $0x158] sm:$0xff]
  %v4140 = vld [vmem:[%s8 + $0x160] sm:$0xff]
  %v4141 = vld [vmem:[%s8 + $0x168] sm:$0xff]
  %v4142 = vld [vmem:[%s8 + $0x170] sm:$0xff]
  %v4143 = vld [vmem:[%s8 + $0x178] sm:$0xff]
  %v4144 = vld [vmem:[%s8 + $0x180] sm:$0xff]
  %v4145 = vld [vmem:[%s8 + $0x188] sm:$0xff]
  %v4146 = vld [vmem:[%s8 + $0x190] sm:$0xff]
  %v4147 = vld [vmem:[%s8 + $0x198] sm:$0xff]
  %v4148 = vld [vmem:[%s8 + $0x1a0] sm:$0xff]
  %v4149 = vld [vmem:[%s8 + $0x1a8] sm:$0xff]
  %v4150 = vld [vmem:[%s8 + $0x1b0] sm:$0xff]
  %v4151 = vld [vmem:[%s8 + $0x1b8] sm:$0xff]
  %v4152 = vld [vmem:[%s8 + $0x1c0] sm:$0xff]
  %v4153 = vld [vmem:[%s8 + $0x1c8] sm:$0xff]
  %v4154 = vld [vmem:[%s8 + $0x1d0] sm:$0xff]
  %v4155 = vld [vmem:[%s8 + $0x1d8] sm:$0xff]
  %v4156 = vld [vmem:[%s8 + $0x1e0] sm:$0xff]
  %v4157 = vld [vmem:[%s8 + $0x1e8] sm:$0xff]
  %v4158 = vld [vmem:[%s8 + $0x1f0] sm:$0xff]
  %v4159 = vld [vmem:[%s8 + $0x1f8] sm:$0xff]
  %v4160 = vld [vmem:[%s8 + $0x200] sm:$0xff]
  %v4161 = vld [vmem:[%s8 + $0x208] sm:$0xff]
  %v4162 = vld [vmem:[%s8 + $0x210] sm:$0xff]
  %v4163 = vld [vmem:[%s8 + $0x218] sm:$0xff]
  %v4164 = vld [vmem:[%s8 + $0x220] sm:$0xff]
  %v4165 = vld [vmem:[%s8 + $0x228] sm:$0xff]
  %v4166 = vld [vmem:[%s8 + $0x230] sm:$0xff]
  %v4167 = vld [vmem:[%s8 + $0x238] sm:$0xff]
  %v4168 = vld [vmem:[%s8 + $0x240] sm:$0xff]
  %v4169 = vld [vmem:[%s8 + $0x248] sm:$0xff]
  %v4170 = vld [vmem:[%s8 + $0x250] sm:$0xff]
  %v4171 = vld [vmem:[%s8 + $0x258] sm:$0xff]
  %v4172 = vld [vmem:[%s8 + $0x260] sm:$0xff]
  %v4173 = vld [vmem:[%s8 + $0x268] sm:$0xff]
  %v4174 = vld [vmem:[%s8 + $0x270] sm:$0xff]
  %v4175 = vld [vmem:[%s8 + $0x278] sm:$0xff]
  %v4176 = vld [vmem:[%s8 + $0x280] sm:$0xff]
  %v4177 = vld [vmem:[%s8 + $0x288] sm:$0xff]
  %v4178 = vld [vmem:[%s8 + $0x290] sm:$0xff]
  %v4179 = vld [vmem:[%s8 + $0x298] sm:$0xff]
  %v4180 = vld [vmem:[%s8 + $0x2a0] sm:$0xff]
  %v4181 = vld [vmem:[%s8 + $0x2a8] sm:$0xff]
  %v4182 = vld [vmem:[%s8 + $0x2b0] sm:$0xff]
  %v4183 = vld [vmem:[%s8 + $0x2b8] sm:$0xff]
  %v4184 = vld [vmem:[%s8 + $0x2c0] sm:$0xff]
  %v4185 = vld [vmem:[%s8 + $0x2c8] sm:$0xff]
  %v4186 = vld [vmem:[%s8 + $0x2d0] sm:$0xff]
  %v4187 = vld [vmem:[%s8 + $0x2d8] sm:$0xff]
  %v4188 = vld [vmem:[%s8 + $0x2e0] sm:$0xff]
  %v4189 = vld [vmem:[%s8 + $0x2e8] sm:$0xff]
  %v4190 = vld [vmem:[%s8 + $0x2f0] sm:$0xff]
  %v4191 = vld [vmem:[%s8 + $0x2f8] sm:$0xff]
  %v4192 = vld [vmem:[%s8 + $0x300] sm:$0xff]
  %v4193 = vld [vmem:[%s8 + $0x308] sm:$0xff]
  %v4194 = vld [vmem:[%s8 + $0x310] sm:$0xff]
  %v4195 = vld [vmem:[%s8 + $0x318] sm:$0xff]
  %v4196 = vld [vmem:[%s8 + $0x320] sm:$0xff]
  %v4197 = vld [vmem:[%s8 + $0x328] sm:$0xff]
  %v4198 = vld [vmem:[%s8 + $0x330] sm:$0xff]
  %v4199 = vld [vmem:[%s8 + $0x338] sm:$0xff]
  %v4200 = vld [vmem:[%s8 + $0x340] sm:$0xff]
  %v4201 = vld [vmem:[%s8 + $0x348] sm:$0xff]
  %v4202 = vld [vmem:[%s8 + $0x350] sm:$0xff]
  %v4203 = vld [vmem:[%s8 + $0x358] sm:$0xff]
  %v4204 = vld [vmem:[%s8 + $0x360] sm:$0xff]
  %v4205 = vld [vmem:[%s8 + $0x368] sm:$0xff]
  %v4206 = vld [vmem:[%s8 + $0x370] sm:$0xff]
  %v4207 = vld [vmem:[%s8 + $0x378] sm:$0xff]
  %v4208 = vld [vmem:[%s8 + $0x380] sm:$0xff]
  %v4209 = vld [vmem:[%s8 + $0x388] sm:$0xff]
  %v4210 = vld [vmem:[%s8 + $0x390] sm:$0xff]
  %v4211 = vld [vmem:[%s8 + $0x398] sm:$0xff]
  %v4212 = vld [vmem:[%s8 + $0x3a0] sm:$0xff]
  %v4213 = vld [vmem:[%s8 + $0x3a8] sm:$0xff]
  %v4214 = vld [vmem:[%s8 + $0x3b0] sm:$0xff]
  %v4215 = vld [vmem:[%s8 + $0x3b8] sm:$0xff]
  %v4216 = vld [vmem:[%s8 + $0x3c0] sm:$0xff]
  %v4217 = vld [vmem:[%s8 + $0x3c8] sm:$0xff]
  %v4218 = vld [vmem:[%s8 + $0x3d0] sm:$0xff]
  %v4219 = vld [vmem:[%s8 + $0x3d8] sm:$0xff]
  %v4220 = vld [vmem:[%s8 + $0x3e0] sm:$0xff]
  %v4221 = vld [vmem:[%s8 + $0x3e8] sm:$0xff]
  %v4222 = vld [vmem:[%s8 + $0x3f0] sm:$0xff]
  %v4223 = vld [vmem:[%s8 + $0x3f8] sm:$0xff]
  %v4224 = vld [vmem:[%s8 + $0x400] sm:$0xff]
  %v4225 = vld [vmem:[%s8 + $0x408] sm:$0xff]
  %v4226 = vld [vmem:[%s8 + $0x410] sm:$0xff]
  %v4227 = vld [vmem:[%s8 + $0x418] sm:$0xff]
  %v4228 = vld [vmem:[%s8 + $0x420] sm:$0xff]
  %v4229 = vld [vmem:[%s8 + $0x428] sm:$0xff]
  %v4230 = vld [vmem:[%s8 + $0x430] sm:$0xff]
  %v4231 = vld [vmem:[%s8 + $0x438] sm:$0xff]
  %v4232 = vld [vmem:[%s8 + $0x440] sm:$0xff]
  %v4233 = vld [vmem:[%s8 + $0x448] sm:$0xff]
  %v4234 = vld [vmem:[%s8 + $0x450] sm:$0xff]
  %v4235 = vld [vmem:[%s8 + $0x458] sm:$0xff]
  %v4236 = vld [vmem:[%s8 + $0x460] sm:$0xff]
  %v4237 = vld [vmem:[%s8 + $0x468] sm:$0xff]
  %v4238 = vld [vmem:[%s8 + $0x470] sm:$0xff]
  %v4239 = vld [vmem:[%s8 + $0x478] sm:$0xff]
  %v4240 = vld [vmem:[%s8 + $0x480] sm:$0xff]
  %v4241 = vld [vmem:[%s8 + $0x488] sm:$0xff]
  %v4242 = vld [vmem:[%s8 + $0x490] sm:$0xff]
  %v4243 = vld [vmem:[%s8 + $0x498] sm:$0xff]
  %v4244 = vld [vmem:[%s8 + $0x4a0] sm:$0xff]
  %v4245 = vld [vmem:[%s8 + $0x4a8] sm:$0xff]
  %v4246 = vld [vmem:[%s8 + $0x4b0] sm:$0xff]
  %v4247 = vld [vmem:[%s8 + $0x4b8] sm:$0xff]
  %v4248 = vld [vmem:[%s8 + $0x4c0] sm:$0xff]
  %v4249 = vld [vmem:[%s8 + $0x4c8] sm:$0xff]
  %v4250 = vld [vmem:[%s8 + $0x4d0] sm:$0xff]
  %v4251 = vld [vmem:[%s8 + $0x4d8] sm:$0xff]
  %v4252 = vld [vmem:[%s8 + $0x4e0] sm:$0xff]
  %v4253 = vld [vmem:[%s8 + $0x4e8] sm:$0xff]
  %v4254 = vld [vmem:[%s8 + $0x4f0] sm:$0xff]
  %v4255 = vld [vmem:[%s8 + $0x4f8] sm:$0xff]
  %v4256 = vld [vmem:[%s8 + $0x500] sm:$0xff]
  %v4257 = vld [vmem:[%s8 + $0x508] sm:$0xff]
  %v4258 = vld [vmem:[%s8 + $0x510] sm:$0xff]
  %v4259 = vld [vmem:[%s8 + $0x518] sm:$0xff]
  %v4260 = vld [vmem:[%s8 + $0x520] sm:$0xff]
  %v4261 = vld [vmem:[%s8 + $0x528] sm:$0xff]
  %v4262 = vld [vmem:[%s8 + $0x530] sm:$0xff]
  %v4263 = vld [vmem:[%s8 + $0x538] sm:$0xff]
  %v4264 = vld [vmem:[%s8 + $0x540] sm:$0xff]
  %v4265 = vld [vmem:[%s8 + $0x548] sm:$0xff]
  %v4266 = vld [vmem:[%s8 + $0x550] sm:$0xff]
  %v4267 = vld [vmem:[%s8 + $0x558] sm:$0xff]
  %v4268 = vld [vmem:[%s8 + $0x560] sm:$0xff]
  %v4269 = vld [vmem:[%s8 + $0x568] sm:$0xff]
  %v4270 = vld [vmem:[%s8 + $0x570] sm:$0xff]
  %v4271 = vld [vmem:[%s8 + $0x578] sm:$0xff]
  %v4272 = vld [vmem:[%s8 + $0x580] sm:$0xff]
  %v4273 = vld [vmem:[%s8 + $0x588] sm:$0xff]
  %v4274 = vld [vmem:[%s8 + $0x590] sm:$0xff]
  %v4275 = vld [vmem:[%s8 + $0x598] sm:$0xff]
  %v4276 = vld [vmem:[%s8 + $0x5a0] sm:$0xff]
  %v4277 = vld [vmem:[%s8 + $0x5a8] sm:$0xff]
  %v4278 = vld [vmem:[%s8 + $0x5b0] sm:$0xff]
  %v4279 = vld [vmem:[%s8 + $0x5b8] sm:$0xff]
  %v4280 = vld [vmem:[%s8 + $0x5c0] sm:$0xff]
  %v4281 = vld [vmem:[%s8 + $0x5c8] sm:$0xff]
  %v4282 = vld [vmem:[%s8 + $0x5d0] sm:$0xff]
  %v4283 = vld [vmem:[%s8 + $0x5d8] sm:$0xff]
  %v4284 = vld [vmem:[%s8 + $0x5e0] sm:$0xff]
  %v4285 = vld [vmem:[%s8 + $0x5e8] sm:$0xff]
  %v4286 = vld [vmem:[%s8 + $0x5f0] sm:$0xff]
  %v4287 = vld [vmem:[%s8 + $0x5f8] sm:$0xff]
  %v4288 = vld [vmem:[%s8 + $0x600] sm:$0xff]
  %v4289 = vld [vmem:[%s8 + $0x608] sm:$0xff]
  %v4290 = vld [vmem:[%s8 + $0x610] sm:$0xff]
  %v4291 = vld [vmem:[%s8 + $0x618] sm:$0xff]
  %v4292 = vld [vmem:[%s8 + $0x620] sm:$0xff]
  %v4293 = vld [vmem:[%s8 + $0x628] sm:$0xff]
  %v4294 = vld [vmem:[%s8 + $0x630] sm:$0xff]
  %v4295 = vld [vmem:[%s8 + $0x638] sm:$0xff]
  %v4296 = vld [vmem:[%s8 + $0x640] sm:$0xff]
  %v4297 = vld [vmem:[%s8 + $0x648] sm:$0xff]
  %v4298 = vld [vmem:[%s8 + $0x650] sm:$0xff]
  %v4299 = vld [vmem:[%s8 + $0x658] sm:$0xff]
  %v4300 = vld [vmem:[%s8 + $0x660] sm:$0xff]
  %v4301 = vld [vmem:[%s8 + $0x668] sm:$0xff]
  %v4302 = vld [vmem:[%s8 + $0x670] sm:$0xff]
  %v4303 = vld [vmem:[%s8 + $0x678] sm:$0xff]
  %v4304 = vld [vmem:[%s8 + $0x680] sm:$0xff]
  %v4305 = vld [vmem:[%s8 + $0x688] sm:$0xff]
  %v4306 = vld [vmem:[%s8 + $0x690] sm:$0xff]
  %v4307 = vld [vmem:[%s8 + $0x698] sm:$0xff]
  %v4308 = vld [vmem:[%s8 + $0x6a0] sm:$0xff]
  %v4309 = vld [vmem:[%s8 + $0x6a8] sm:$0xff]
  %v4310 = vld [vmem:[%s8 + $0x6b0] sm:$0xff]
  %v4311 = vld [vmem:[%s8 + $0x6b8] sm:$0xff]
  %v4312 = vld [vmem:[%s8 + $0x6c0] sm:$0xff]
  %v4313 = vld [vmem:[%s8 + $0x6c8] sm:$0xff]
  %v4314 = vld [vmem:[%s8 + $0x6d0] sm:$0xff]
  %v4315 = vld [vmem:[%s8 + $0x6d8] sm:$0xff]
  %v4316 = vld [vmem:[%s8 + $0x6e0] sm:$0xff]
  %v4317 = vld [vmem:[%s8 + $0x6e8] sm:$0xff]
  %v4318 = vld [vmem:[%s8 + $0x6f0] sm:$0xff]
  %v4319 = vld [vmem:[%s8 + $0x6f8] sm:$0xff]
  %v4320 = vld [vmem:[%s8 + $0x700] sm:$0xff]
  %v4321 = vld [vmem:[%s8 + $0x708] sm:$0xff]
  %v4322 = vld [vmem:[%s8 + $0x710] sm:$0xff]
  %v4323 = vld [vmem:[%s8 + $0x718] sm:$0xff]
  %v4324 = vld [vmem:[%s8 + $0x720] sm:$0xff]
  %v4325 = vld [vmem:[%s8 + $0x728] sm:$0xff]
  %v4326 = vld [vmem:[%s8 + $0x730] sm:$0xff]
  %v4327 = vld [vmem:[%s8 + $0x738] sm:$0xff]
  %v4328 = vld [vmem:[%s8 + $0x740] sm:$0xff]
  %v4329 = vld [vmem:[%s8 + $0x748] sm:$0xff]
  %v4330 = vld [vmem:[%s8 + $0x750] sm:$0xff]
  %v4331 = vld [vmem:[%s8 + $0x758] sm:$0xff]
  %v4332 = vld [vmem:[%s8 + $0x760] sm:$0xff]
  %v4333 = vld [vmem:[%s8 + $0x768] sm:$0xff]
  %v4334 = vld [vmem:[%s8 + $0x770] sm:$0xff]
  %v4335 = vld [vmem:[%s8 + $0x778] sm:$0xff]
  %v4336 = vld [vmem:[%s8 + $0x780] sm:$0xff]
  %v4337 = vld [vmem:[%s8 + $0x788] sm:$0xff]
  %v4338 = vld [vmem:[%s8 + $0x790] sm:$0xff]
  %v4339 = vld [vmem:[%s8 + $0x798] sm:$0xff]
  %v4340 = vld [vmem:[%s8 + $0x7a0] sm:$0xff]
  %v4341 = vld [vmem:[%s8 + $0x7a8] sm:$0xff]
  %v4342 = vld [vmem:[%s8 + $0x7b0] sm:$0xff]
  %v4343 = vld [vmem:[%s8 + $0x7b8] sm:$0xff]
  %v4344 = vld [vmem:[%s8 + $0x7c0] sm:$0xff]
  %v4345 = vld [vmem:[%s8 + $0x7c8] sm:$0xff]
  %v4346 = vld [vmem:[%s8 + $0x7d0] sm:$0xff]
  %v4347 = vld [vmem:[%s8 + $0x7d8] sm:$0xff]
  %v4348 = vld [vmem:[%s8 + $0x7e0] sm:$0xff]
  %v4349 = vld [vmem:[%s8 + $0x7e8] sm:$0xff]
  %v4350 = vld [vmem:[%s8 + $0x7f0] sm:$0xff]
  %v4351 = vld [vmem:[%s8 + $0x7f8] sm:$0xff]
  %v4352 = vld [vmem:[%s9] sm:$0x3]
  %v4354 = vlaneseq
  %v4355 = vshrl.u32 %v4354, 7
  %v4356 = vsub.s32 0, %v4355
  %v4357 = vrot.slane %v4352, %v4356
  %v4358 = vlaneseq
  %v4359 = vshrl.u32 %v4358, 7
  %v4360 = vsub.s32 1, %v4359
  %v4361 = vrot.slane %v4352, %v4360
  %v4620 = vunpack.c.l.b16 %v4096
  %v4621 = vunpack.c.h.b16 %v4096
  %v4622 = vunpack.c.l.b16 %v4097
  %v4623 = vunpack.c.h.b16 %v4097
  %v4624 = vunpack.c.l.b16 %v4098
  %v4625 = vunpack.c.h.b16 %v4098
  %v4626 = vunpack.c.l.b16 %v4099
  %v4627 = vunpack.c.h.b16 %v4099
  %v4628 = vunpack.c.l.b16 %v4100
  %v4629 = vunpack.c.h.b16 %v4100
  %v4630 = vunpack.c.l.b16 %v4101
  %v4631 = vunpack.c.h.b16 %v4101
  %v4632 = vunpack.c.l.b16 %v4102
  %v4633 = vunpack.c.h.b16 %v4102
  %v4634 = vunpack.c.l.b16 %v4103
  %v4635 = vunpack.c.h.b16 %v4103
  %v4636 = vunpack.c.l.b16 %v4104
  %v4637 = vunpack.c.h.b16 %v4104
  %v4638 = vunpack.c.l.b16 %v4105
  %v4639 = vunpack.c.h.b16 %v4105
  %v4640 = vunpack.c.l.b16 %v4106
  %v4641 = vunpack.c.h.b16 %v4106
  %v4642 = vunpack.c.l.b16 %v4107
  %v4643 = vunpack.c.h.b16 %v4107
  %v4644 = vunpack.c.l.b16 %v4108
  %v4645 = vunpack.c.h.b16 %v4108
  %v4646 = vunpack.c.l.b16 %v4109
  %v4647 = vunpack.c.h.b16 %v4109
  %v4648 = vunpack.c.l.b16 %v4110
  %v4649 = vunpack.c.h.b16 %v4110
  %v4650 = vunpack.c.l.b16 %v4111
  %v4651 = vunpack.c.h.b16 %v4111
  %v4652 = vunpack.c.l.b16 %v4112
  %v4653 = vunpack.c.h.b16 %v4112
  %v4654 = vunpack.c.l.b16 %v4113
  %v4655 = vunpack.c.h.b16 %v4113
  %v4656 = vunpack.c.l.b16 %v4114
  %v4657 = vunpack.c.h.b16 %v4114
  %v4658 = vunpack.c.l.b16 %v4115
  %v4659 = vunpack.c.h.b16 %v4115
  %v4660 = vunpack.c.l.b16 %v4116
  %v4661 = vunpack.c.h.b16 %v4116
  %v4662 = vunpack.c.l.b16 %v4117
  %v4663 = vunpack.c.h.b16 %v4117
  %v4664 = vunpack.c.l.b16 %v4118
  %v4665 = vunpack.c.h.b16 %v4118
  %v4666 = vunpack.c.l.b16 %v4119
  %v4667 = vunpack.c.h.b16 %v4119
  %v4668 = vunpack.c.l.b16 %v4120
  %v4669 = vunpack.c.h.b16 %v4120
  %v4670 = vunpack.c.l.b16 %v4121
  %v4671 = vunpack.c.h.b16 %v4121
  %v4672 = vunpack.c.l.b16 %v4122
  %v4673 = vunpack.c.h.b16 %v4122
  %v4674 = vunpack.c.l.b16 %v4123
  %v4675 = vunpack.c.h.b16 %v4123
  %v4676 = vunpack.c.l.b16 %v4124
  %v4677 = vunpack.c.h.b16 %v4124
  %v4678 = vunpack.c.l.b16 %v4125
  %v4679 = vunpack.c.h.b16 %v4125
  %v4680 = vunpack.c.l.b16 %v4126
  %v4681 = vunpack.c.h.b16 %v4126
  %v4682 = vunpack.c.l.b16 %v4127
  %v4683 = vunpack.c.h.b16 %v4127
  %v4684 = vunpack.c.l.b16 %v4128
  %v4685 = vunpack.c.h.b16 %v4128
  %v4686 = vunpack.c.l.b16 %v4129
  %v4687 = vunpack.c.h.b16 %v4129
  %v4688 = vunpack.c.l.b16 %v4130
  %v4689 = vunpack.c.h.b16 %v4130
  %v4690 = vunpack.c.l.b16 %v4131
  %v4691 = vunpack.c.h.b16 %v4131
  %v4692 = vunpack.c.l.b16 %v4132
  %v4693 = vunpack.c.h.b16 %v4132
  %v4694 = vunpack.c.l.b16 %v4133
  %v4695 = vunpack.c.h.b16 %v4133
  %v4696 = vunpack.c.l.b16 %v4134
  %v4697 = vunpack.c.h.b16 %v4134
  %v4698 = vunpack.c.l.b16 %v4135
  %v4699 = vunpack.c.h.b16 %v4135
  %v4700 = vunpack.c.l.b16 %v4136
  %v4701 = vunpack.c.h.b16 %v4136
  %v4702 = vunpack.c.l.b16 %v4137
  %v4703 = vunpack.c.h.b16 %v4137
  %v4704 = vunpack.c.l.b16 %v4138
  %v4705 = vunpack.c.h.b16 %v4138
  %v4706 = vunpack.c.l.b16 %v4139
  %v4707 = vunpack.c.h.b16 %v4139
  %v4708 = vunpack.c.l.b16 %v4140
  %v4709 = vunpack.c.h.b16 %v4140
  %v4710 = vunpack.c.l.b16 %v4141
  %v4711 = vunpack.c.h.b16 %v4141
  %v4712 = vunpack.c.l.b16 %v4142
  %v4713 = vunpack.c.h.b16 %v4142
  %v4714 = vunpack.c.l.b16 %v4143
  %v4715 = vunpack.c.h.b16 %v4143
  %v4716 = vunpack.c.l.b16 %v4144
  %v4717 = vunpack.c.h.b16 %v4144
  %v4718 = vunpack.c.l.b16 %v4145
  %v4719 = vunpack.c.h.b16 %v4145
  %v4720 = vunpack.c.l.b16 %v4146
  %v4721 = vunpack.c.h.b16 %v4146
  %v4722 = vunpack.c.l.b16 %v4147
  %v4723 = vunpack.c.h.b16 %v4147
  %v4724 = vunpack.c.l.b16 %v4148
  %v4725 = vunpack.c.h.b16 %v4148
  %v4726 = vunpack.c.l.b16 %v4149
  %v4727 = vunpack.c.h.b16 %v4149
  %v4728 = vunpack.c.l.b16 %v4150
  %v4729 = vunpack.c.h.b16 %v4150
  %v4730 = vunpack.c.l.b16 %v4151
  %v4731 = vunpack.c.h.b16 %v4151
  %v4732 = vunpack.c.l.b16 %v4152
  %v4733 = vunpack.c.h.b16 %v4152
  %v4734 = vunpack.c.l.b16 %v4153
  %v4735 = vunpack.c.h.b16 %v4153
  %v4736 = vunpack.c.l.b16 %v4154
  %v4737 = vunpack.c.h.b16 %v4154
  %v4738 = vunpack.c.l.b16 %v4155
  %v4739 = vunpack.c.h.b16 %v4155
  %v4740 = vunpack.c.l.b16 %v4156
  %v4741 = vunpack.c.h.b16 %v4156
  %v4742 = vunpack.c.l.b16 %v4157
  %v4743 = vunpack.c.h.b16 %v4157
  %v4744 = vunpack.c.l.b16 %v4158
  %v4745 = vunpack.c.h.b16 %v4158
  %v4746 = vunpack.c.l.b16 %v4159
  %v4747 = vunpack.c.h.b16 %v4159
  %v4748 = vunpack.c.l.b16 %v4160
  %v4749 = vunpack.c.h.b16 %v4160
  %v4750 = vunpack.c.l.b16 %v4161
  %v4751 = vunpack.c.h.b16 %v4161
  %v4752 = vunpack.c.l.b16 %v4162
  %v4753 = vunpack.c.h.b16 %v4162
  %v4754 = vunpack.c.l.b16 %v4163
  %v4755 = vunpack.c.h.b16 %v4163
  %v4756 = vunpack.c.l.b16 %v4164
  %v4757 = vunpack.c.h.b16 %v4164
  %v4758 = vunpack.c.l.b16 %v4165
  %v4759 = vunpack.c.h.b16 %v4165
  %v4760 = vunpack.c.l.b16 %v4166
  %v4761 = vunpack.c.h.b16 %v4166
  %v4762 = vunpack.c.l.b16 %v4167
  %v4763 = vunpack.c.h.b16 %v4167
  %v4764 = vunpack.c.l.b16 %v4168
  %v4765 = vunpack.c.h.b16 %v4168
  %v4766 = vunpack.c.l.b16 %v4169
  %v4767 = vunpack.c.h.b16 %v4169
  %v4768 = vunpack.c.l.b16 %v4170
  %v4769 = vunpack.c.h.b16 %v4170
  %v4770 = vunpack.c.l.b16 %v4171
  %v4771 = vunpack.c.h.b16 %v4171
  %v4772 = vunpack.c.l.b16 %v4172
  %v4773 = vunpack.c.h.b16 %v4172
  %v4774 = vunpack.c.l.b16 %v4173
  %v4775 = vunpack.c.h.b16 %v4173
  %v4776 = vunpack.c.l.b16 %v4174
  %v4777 = vunpack.c.h.b16 %v4174
  %v4778 = vunpack.c.l.b16 %v4175
  %v4779 = vunpack.c.h.b16 %v4175
  %v4780 = vunpack.c.l.b16 %v4176
  %v4781 = vunpack.c.h.b16 %v4176
  %v4782 = vunpack.c.l.b16 %v4177
  %v4783 = vunpack.c.h.b16 %v4177
  %v4784 = vunpack.c.l.b16 %v4178
  %v4785 = vunpack.c.h.b16 %v4178
  %v4786 = vunpack.c.l.b16 %v4179
  %v4787 = vunpack.c.h.b16 %v4179
  %v4788 = vunpack.c.l.b16 %v4180
  %v4789 = vunpack.c.h.b16 %v4180
  %v4790 = vunpack.c.l.b16 %v4181
  %v4791 = vunpack.c.h.b16 %v4181
  %v4792 = vunpack.c.l.b16 %v4182
  %v4793 = vunpack.c.h.b16 %v4182
  %v4794 = vunpack.c.l.b16 %v4183
  %v4795 = vunpack.c.h.b16 %v4183
  %v4796 = vunpack.c.l.b16 %v4184
  %v4797 = vunpack.c.h.b16 %v4184
  %v4798 = vunpack.c.l.b16 %v4185
  %v4799 = vunpack.c.h.b16 %v4185
  %v4800 = vunpack.c.l.b16 %v4186
  %v4801 = vunpack.c.h.b16 %v4186
  %v4802 = vunpack.c.l.b16 %v4187
  %v4803 = vunpack.c.h.b16 %v4187
  %v4804 = vunpack.c.l.b16 %v4188
  %v4805 = vunpack.c.h.b16 %v4188
  %v4806 = vunpack.c.l.b16 %v4189
  %v4807 = vunpack.c.h.b16 %v4189
  %v4808 = vunpack.c.l.b16 %v4190
  %v4809 = vunpack.c.h.b16 %v4190
  %v4810 = vunpack.c.l.b16 %v4191
  %v4811 = vunpack.c.h.b16 %v4191
  %v4812 = vunpack.c.l.b16 %v4192
  %v4813 = vunpack.c.h.b16 %v4192
  %v4814 = vunpack.c.l.b16 %v4193
  %v4815 = vunpack.c.h.b16 %v4193
  %v4816 = vunpack.c.l.b16 %v4194
  %v4817 = vunpack.c.h.b16 %v4194
  %v4818 = vunpack.c.l.b16 %v4195
  %v4819 = vunpack.c.h.b16 %v4195
  %v4820 = vunpack.c.l.b16 %v4196
  %v4821 = vunpack.c.h.b16 %v4196
  %v4822 = vunpack.c.l.b16 %v4197
  %v4823 = vunpack.c.h.b16 %v4197
  %v4824 = vunpack.c.l.b16 %v4198
  %v4825 = vunpack.c.h.b16 %v4198
  %v4826 = vunpack.c.l.b16 %v4199
  %v4827 = vunpack.c.h.b16 %v4199
  %v4828 = vunpack.c.l.b16 %v4200
  %v4829 = vunpack.c.h.b16 %v4200
  %v4830 = vunpack.c.l.b16 %v4201
  %v4831 = vunpack.c.h.b16 %v4201
  %v4832 = vunpack.c.l.b16 %v4202
  %v4833 = vunpack.c.h.b16 %v4202
  %v4834 = vunpack.c.l.b16 %v4203
  %v4835 = vunpack.c.h.b16 %v4203
  %v4836 = vunpack.c.l.b16 %v4204
  %v4837 = vunpack.c.h.b16 %v4204
  %v4838 = vunpack.c.l.b16 %v4205
  %v4839 = vunpack.c.h.b16 %v4205
  %v4840 = vunpack.c.l.b16 %v4206
  %v4841 = vunpack.c.h.b16 %v4206
  %v4842 = vunpack.c.l.b16 %v4207
  %v4843 = vunpack.c.h.b16 %v4207
  %v4844 = vunpack.c.l.b16 %v4208
  %v4845 = vunpack.c.h.b16 %v4208
  %v4846 = vunpack.c.l.b16 %v4209
  %v4847 = vunpack.c.h.b16 %v4209
  %v4848 = vunpack.c.l.b16 %v4210
  %v4849 = vunpack.c.h.b16 %v4210
  %v4850 = vunpack.c.l.b16 %v4211
  %v4851 = vunpack.c.h.b16 %v4211
  %v4852 = vunpack.c.l.b16 %v4212
  %v4853 = vunpack.c.h.b16 %v4212
  %v4854 = vunpack.c.l.b16 %v4213
  %v4855 = vunpack.c.h.b16 %v4213
  %v4856 = vunpack.c.l.b16 %v4214
  %v4857 = vunpack.c.h.b16 %v4214
  %v4858 = vunpack.c.l.b16 %v4215
  %v4859 = vunpack.c.h.b16 %v4215
  %v4860 = vunpack.c.l.b16 %v4216
  %v4861 = vunpack.c.h.b16 %v4216
  %v4862 = vunpack.c.l.b16 %v4217
  %v4863 = vunpack.c.h.b16 %v4217
  %v4864 = vunpack.c.l.b16 %v4218
  %v4865 = vunpack.c.h.b16 %v4218
  %v4866 = vunpack.c.l.b16 %v4219
  %v4867 = vunpack.c.h.b16 %v4219
  %v4868 = vunpack.c.l.b16 %v4220
  %v4869 = vunpack.c.h.b16 %v4220
  %v4870 = vunpack.c.l.b16 %v4221
  %v4871 = vunpack.c.h.b16 %v4221
  %v4872 = vunpack.c.l.b16 %v4222
  %v4873 = vunpack.c.h.b16 %v4222
  %v4874 = vunpack.c.l.b16 %v4223
  %v4875 = vunpack.c.h.b16 %v4223
  %v4876 = vunpack.c.l.b16 %v4224
  %v4877 = vunpack.c.h.b16 %v4224
  %v4878 = vunpack.c.l.b16 %v4225
  %v4879 = vunpack.c.h.b16 %v4225
  %v4880 = vunpack.c.l.b16 %v4226
  %v4881 = vunpack.c.h.b16 %v4226
  %v4882 = vunpack.c.l.b16 %v4227
  %v4883 = vunpack.c.h.b16 %v4227
  %v4884 = vunpack.c.l.b16 %v4228
  %v4885 = vunpack.c.h.b16 %v4228
  %v4886 = vunpack.c.l.b16 %v4229
  %v4887 = vunpack.c.h.b16 %v4229
  %v4888 = vunpack.c.l.b16 %v4230
  %v4889 = vunpack.c.h.b16 %v4230
  %v4890 = vunpack.c.l.b16 %v4231
  %v4891 = vunpack.c.h.b16 %v4231
  %v4892 = vunpack.c.l.b16 %v4232
  %v4893 = vunpack.c.h.b16 %v4232
  %v4894 = vunpack.c.l.b16 %v4233
  %v4895 = vunpack.c.h.b16 %v4233
  %v4896 = vunpack.c.l.b16 %v4234
  %v4897 = vunpack.c.h.b16 %v4234
  %v4898 = vunpack.c.l.b16 %v4235
  %v4899 = vunpack.c.h.b16 %v4235
  %v4900 = vunpack.c.l.b16 %v4236
  %v4901 = vunpack.c.h.b16 %v4236
  %v4902 = vunpack.c.l.b16 %v4237
  %v4903 = vunpack.c.h.b16 %v4237
  %v4904 = vunpack.c.l.b16 %v4238
  %v4905 = vunpack.c.h.b16 %v4238
  %v4906 = vunpack.c.l.b16 %v4239
  %v4907 = vunpack.c.h.b16 %v4239
  %v4908 = vunpack.c.l.b16 %v4240
  %v4909 = vunpack.c.h.b16 %v4240
  %v4910 = vunpack.c.l.b16 %v4241
  %v4911 = vunpack.c.h.b16 %v4241
  %v4912 = vunpack.c.l.b16 %v4242
  %v4913 = vunpack.c.h.b16 %v4242
  %v4914 = vunpack.c.l.b16 %v4243
  %v4915 = vunpack.c.h.b16 %v4243
  %v4916 = vunpack.c.l.b16 %v4244
  %v4917 = vunpack.c.h.b16 %v4244
  %v4918 = vunpack.c.l.b16 %v4245
  %v4919 = vunpack.c.h.b16 %v4245
  %v4920 = vunpack.c.l.b16 %v4246
  %v4921 = vunpack.c.h.b16 %v4246
  %v4922 = vunpack.c.l.b16 %v4247
  %v4923 = vunpack.c.h.b16 %v4247
  %v4924 = vunpack.c.l.b16 %v4248
  %v4925 = vunpack.c.h.b16 %v4248
  %v4926 = vunpack.c.l.b16 %v4249
  %v4927 = vunpack.c.h.b16 %v4249
  %v4928 = vunpack.c.l.b16 %v4250
  %v4929 = vunpack.c.h.b16 %v4250
  %v4930 = vunpack.c.l.b16 %v4251
  %v4931 = vunpack.c.h.b16 %v4251
  %v4932 = vunpack.c.l.b16 %v4252
  %v4933 = vunpack.c.h.b16 %v4252
  %v4934 = vunpack.c.l.b16 %v4253
  %v4935 = vunpack.c.h.b16 %v4253
  %v4936 = vunpack.c.l.b16 %v4254
  %v4937 = vunpack.c.h.b16 %v4254
  %v4938 = vunpack.c.l.b16 %v4255
  %v4939 = vunpack.c.h.b16 %v4255
  %v4940 = vunpack.c.l.b16 %v4256
  %v4941 = vunpack.c.h.b16 %v4256
  %v4942 = vunpack.c.l.b16 %v4257
  %v4943 = vunpack.c.h.b16 %v4257
  %v4944 = vunpack.c.l.b16 %v4258
  %v4945 = vunpack.c.h.b16 %v4258
  %v4946 = vunpack.c.l.b16 %v4259
  %v4947 = vunpack.c.h.b16 %v4259
  %v4948 = vunpack.c.l.b16 %v4260
  %v4949 = vunpack.c.h.b16 %v4260
  %v4950 = vunpack.c.l.b16 %v4261
  %v4951 = vunpack.c.h.b16 %v4261
  %v4952 = vunpack.c.l.b16 %v4262
  %v4953 = vunpack.c.h.b16 %v4262
  %v4954 = vunpack.c.l.b16 %v4263
  %v4955 = vunpack.c.h.b16 %v4263
  %v4956 = vunpack.c.l.b16 %v4264
  %v4957 = vunpack.c.h.b16 %v4264
  %v4958 = vunpack.c.l.b16 %v4265
  %v4959 = vunpack.c.h.b16 %v4265
  %v4960 = vunpack.c.l.b16 %v4266
  %v4961 = vunpack.c.h.b16 %v4266
  %v4962 = vunpack.c.l.b16 %v4267
  %v4963 = vunpack.c.h.b16 %v4267
  %v4964 = vunpack.c.l.b16 %v4268
  %v4965 = vunpack.c.h.b16 %v4268
  %v4966 = vunpack.c.l.b16 %v4269
  %v4967 = vunpack.c.h.b16 %v4269
  %v4968 = vunpack.c.l.b16 %v4270
  %v4969 = vunpack.c.h.b16 %v4270
  %v4970 = vunpack.c.l.b16 %v4271
  %v4971 = vunpack.c.h.b16 %v4271
  %v4972 = vunpack.c.l.b16 %v4272
  %v4973 = vunpack.c.h.b16 %v4272
  %v4974 = vunpack.c.l.b16 %v4273
  %v4975 = vunpack.c.h.b16 %v4273
  %v4976 = vunpack.c.l.b16 %v4274
  %v4977 = vunpack.c.h.b16 %v4274
  %v4978 = vunpack.c.l.b16 %v4275
  %v4979 = vunpack.c.h.b16 %v4275
  %v4980 = vunpack.c.l.b16 %v4276
  %v4981 = vunpack.c.h.b16 %v4276
  %v4982 = vunpack.c.l.b16 %v4277
  %v4983 = vunpack.c.h.b16 %v4277
  %v4984 = vunpack.c.l.b16 %v4278
  %v4985 = vunpack.c.h.b16 %v4278
  %v4986 = vunpack.c.l.b16 %v4279
  %v4987 = vunpack.c.h.b16 %v4279
  %v4988 = vunpack.c.l.b16 %v4280
  %v4989 = vunpack.c.h.b16 %v4280
  %v4990 = vunpack.c.l.b16 %v4281
  %v4991 = vunpack.c.h.b16 %v4281
  %v4992 = vunpack.c.l.b16 %v4282
  %v4993 = vunpack.c.h.b16 %v4282
  %v4994 = vunpack.c.l.b16 %v4283
  %v4995 = vunpack.c.h.b16 %v4283
  %v4996 = vunpack.c.l.b16 %v4284
  %v4997 = vunpack.c.h.b16 %v4284
  %v4998 = vunpack.c.l.b16 %v4285
  %v4999 = vunpack.c.h.b16 %v4285
  %v5000 = vunpack.c.l.b16 %v4286
  %v5001 = vunpack.c.h.b16 %v4286
  %v5002 = vunpack.c.l.b16 %v4287
  %v5003 = vunpack.c.h.b16 %v4287
  %v5004 = vunpack.c.l.b16 %v4288
  %v5005 = vunpack.c.h.b16 %v4288
  %v5006 = vunpack.c.l.b16 %v4289
  %v5007 = vunpack.c.h.b16 %v4289
  %v5008 = vunpack.c.l.b16 %v4290
  %v5009 = vunpack.c.h.b16 %v4290
  %v5010 = vunpack.c.l.b16 %v4291
  %v5011 = vunpack.c.h.b16 %v4291
  %v5012 = vunpack.c.l.b16 %v4292
  %v5013 = vunpack.c.h.b16 %v4292
  %v5014 = vunpack.c.l.b16 %v4293
  %v5015 = vunpack.c.h.b16 %v4293
  %v5016 = vunpack.c.l.b16 %v4294
  %v5017 = vunpack.c.h.b16 %v4294
  %v5018 = vunpack.c.l.b16 %v4295
  %v5019 = vunpack.c.h.b16 %v4295
  %v5020 = vunpack.c.l.b16 %v4296
  %v5021 = vunpack.c.h.b16 %v4296
  %v5022 = vunpack.c.l.b16 %v4297
  %v5023 = vunpack.c.h.b16 %v4297
  %v5024 = vunpack.c.l.b16 %v4298
  %v5025 = vunpack.c.h.b16 %v4298
  %v5026 = vunpack.c.l.b16 %v4299
  %v5027 = vunpack.c.h.b16 %v4299
  %v5028 = vunpack.c.l.b16 %v4300
  %v5029 = vunpack.c.h.b16 %v4300
  %v5030 = vunpack.c.l.b16 %v4301
  %v5031 = vunpack.c.h.b16 %v4301
  %v5032 = vunpack.c.l.b16 %v4302
  %v5033 = vunpack.c.h.b16 %v4302
  %v5034 = vunpack.c.l.b16 %v4303
  %v5035 = vunpack.c.h.b16 %v4303
  %v5036 = vunpack.c.l.b16 %v4304
  %v5037 = vunpack.c.h.b16 %v4304
  %v5038 = vunpack.c.l.b16 %v4305
  %v5039 = vunpack.c.h.b16 %v4305
  %v5040 = vunpack.c.l.b16 %v4306
  %v5041 = vunpack.c.h.b16 %v4306
  %v5042 = vunpack.c.l.b16 %v4307
  %v5043 = vunpack.c.h.b16 %v4307
  %v5044 = vunpack.c.l.b16 %v4308
  %v5045 = vunpack.c.h.b16 %v4308
  %v5046 = vunpack.c.l.b16 %v4309
  %v5047 = vunpack.c.h.b16 %v4309
  %v5048 = vunpack.c.l.b16 %v4310
  %v5049 = vunpack.c.h.b16 %v4310
  %v5050 = vunpack.c.l.b16 %v4311
  %v5051 = vunpack.c.h.b16 %v4311
  %v5052 = vunpack.c.l.b16 %v4312
  %v5053 = vunpack.c.h.b16 %v4312
  %v5054 = vunpack.c.l.b16 %v4313
  %v5055 = vunpack.c.h.b16 %v4313
  %v5056 = vunpack.c.l.b16 %v4314
  %v5057 = vunpack.c.h.b16 %v4314
  %v5058 = vunpack.c.l.b16 %v4315
  %v5059 = vunpack.c.h.b16 %v4315
  %v5060 = vunpack.c.l.b16 %v4316
  %v5061 = vunpack.c.h.b16 %v4316
  %v5062 = vunpack.c.l.b16 %v4317
  %v5063 = vunpack.c.h.b16 %v4317
  %v5064 = vunpack.c.l.b16 %v4318
  %v5065 = vunpack.c.h.b16 %v4318
  %v5066 = vunpack.c.l.b16 %v4319
  %v5067 = vunpack.c.h.b16 %v4319
  %v5068 = vunpack.c.l.b16 %v4320
  %v5069 = vunpack.c.h.b16 %v4320
  %v5070 = vunpack.c.l.b16 %v4321
  %v5071 = vunpack.c.h.b16 %v4321
  %v5072 = vunpack.c.l.b16 %v4322
  %v5073 = vunpack.c.h.b16 %v4322
  %v5074 = vunpack.c.l.b16 %v4323
  %v5075 = vunpack.c.h.b16 %v4323
  %v5076 = vunpack.c.l.b16 %v4324
  %v5077 = vunpack.c.h.b16 %v4324
  %v5078 = vunpack.c.l.b16 %v4325
  %v5079 = vunpack.c.h.b16 %v4325
  %v5080 = vunpack.c.l.b16 %v4326
  %v5081 = vunpack.c.h.b16 %v4326
  %v5082 = vunpack.c.l.b16 %v4327
  %v5083 = vunpack.c.h.b16 %v4327
  %v5084 = vunpack.c.l.b16 %v4328
  %v5085 = vunpack.c.h.b16 %v4328
  %v5086 = vunpack.c.l.b16 %v4329
  %v5087 = vunpack.c.h.b16 %v4329
  %v5088 = vunpack.c.l.b16 %v4330
  %v5089 = vunpack.c.h.b16 %v4330
  %v5090 = vunpack.c.l.b16 %v4331
  %v5091 = vunpack.c.h.b16 %v4331
  %v5092 = vunpack.c.l.b16 %v4332
  %v5093 = vunpack.c.h.b16 %v4332
  %v5094 = vunpack.c.l.b16 %v4333
  %v5095 = vunpack.c.h.b16 %v4333
  %v5096 = vunpack.c.l.b16 %v4334
  %v5097 = vunpack.c.h.b16 %v4334
  %v5098 = vunpack.c.l.b16 %v4335
  %v5099 = vunpack.c.h.b16 %v4335
  %v5100 = vunpack.c.l.b16 %v4336
  %v5101 = vunpack.c.h.b16 %v4336
  %v5102 = vunpack.c.l.b16 %v4337
  %v5103 = vunpack.c.h.b16 %v4337
  %v5104 = vunpack.c.l.b16 %v4338
  %v5105 = vunpack.c.h.b16 %v4338
  %v5106 = vunpack.c.l.b16 %v4339
  %v5107 = vunpack.c.h.b16 %v4339
  %v5108 = vunpack.c.l.b16 %v4340
  %v5109 = vunpack.c.h.b16 %v4340
  %v5110 = vunpack.c.l.b16 %v4341
  %v5111 = vunpack.c.h.b16 %v4341
  %v5112 = vunpack.c.l.b16 %v4342
  %v5113 = vunpack.c.h.b16 %v4342
  %v5114 = vunpack.c.l.b16 %v4343
  %v5115 = vunpack.c.h.b16 %v4343
  %v5116 = vunpack.c.l.b16 %v4344
  %v5117 = vunpack.c.h.b16 %v4344
  %v5118 = vunpack.c.l.b16 %v4345
  %v5119 = vunpack.c.h.b16 %v4345
  %v5120 = vunpack.c.l.b16 %v4346
  %v5121 = vunpack.c.h.b16 %v4346
  %v5122 = vunpack.c.l.b16 %v4347
  %v5123 = vunpack.c.h.b16 %v4347
  %v5124 = vunpack.c.l.b16 %v4348
  %v5125 = vunpack.c.h.b16 %v4348
  %v5126 = vunpack.c.l.b16 %v4349
  %v5127 = vunpack.c.h.b16 %v4349
  %v5128 = vunpack.c.l.b16 %v4350
  %v5129 = vunpack.c.h.b16 %v4350
  %v5130 = vunpack.c.l.b16 %v4351
  %v5131 = vunpack.c.h.b16 %v4351
  %v5132 = vpack.c.b16 %v4622, %v4620
  %v5133 = vpack.c.b16 %v4623, %v4621
  %v5134 = vpack.c.b16 %v4626, %v4624
  %v5135 = vpack.c.b16 %v4627, %v4625
  %v5136 = vpack.c.b16 %v4630, %v4628
  %v5137 = vpack.c.b16 %v4631, %v4629
  %v5138 = vpack.c.b16 %v4634, %v4632
  %v5139 = vpack.c.b16 %v4635, %v4633
  %v5140 = vpack.c.b16 %v4638, %v4636
  %v5141 = vpack.c.b16 %v4639, %v4637
  %v5142 = vpack.c.b16 %v4642, %v4640
  %v5143 = vpack.c.b16 %v4643, %v4641
  %v5144 = vpack.c.b16 %v4646, %v4644
  %v5145 = vpack.c.b16 %v4647, %v4645
  %v5146 = vpack.c.b16 %v4650, %v4648
  %v5147 = vpack.c.b16 %v4651, %v4649
  %v5148 = vpack.c.b16 %v4654, %v4652
  %v5149 = vpack.c.b16 %v4655, %v4653
  %v5150 = vpack.c.b16 %v4658, %v4656
  %v5151 = vpack.c.b16 %v4659, %v4657
  %v5152 = vpack.c.b16 %v4662, %v4660
  %v5153 = vpack.c.b16 %v4663, %v4661
  %v5154 = vpack.c.b16 %v4666, %v4664
  %v5155 = vpack.c.b16 %v4667, %v4665
  %v5156 = vpack.c.b16 %v4670, %v4668
  %v5157 = vpack.c.b16 %v4671, %v4669
  %v5158 = vpack.c.b16 %v4674, %v4672
  %v5159 = vpack.c.b16 %v4675, %v4673
  %v5160 = vpack.c.b16 %v4678, %v4676
  %v5161 = vpack.c.b16 %v4679, %v4677
  %v5162 = vpack.c.b16 %v4682, %v4680
  %v5163 = vpack.c.b16 %v4683, %v4681
  %v5164 = vpack.c.b16 %v4686, %v4684
  %v5165 = vpack.c.b16 %v4687, %v4685
  %v5166 = vpack.c.b16 %v4690, %v4688
  %v5167 = vpack.c.b16 %v4691, %v4689
  %v5168 = vpack.c.b16 %v4694, %v4692
  %v5169 = vpack.c.b16 %v4695, %v4693
  %v5170 = vpack.c.b16 %v4698, %v4696
  %v5171 = vpack.c.b16 %v4699, %v4697
  %v5172 = vpack.c.b16 %v4702, %v4700
  %v5173 = vpack.c.b16 %v4703, %v4701
  %v5174 = vpack.c.b16 %v4706, %v4704
  %v5175 = vpack.c.b16 %v4707, %v4705
  %v5176 = vpack.c.b16 %v4710, %v4708
  %v5177 = vpack.c.b16 %v4711, %v4709
  %v5178 = vpack.c.b16 %v4714, %v4712
  %v5179 = vpack.c.b16 %v4715, %v4713
  %v5180 = vpack.c.b16 %v4718, %v4716
  %v5181 = vpack.c.b16 %v4719, %v4717
  %v5182 = vpack.c.b16 %v4722, %v4720
  %v5183 = vpack.c.b16 %v4723, %v4721
  %v5184 = vpack.c.b16 %v4726, %v4724
  %v5185 = vpack.c.b16 %v4727, %v4725
  %v5186 = vpack.c.b16 %v4730, %v4728
  %v5187 = vpack.c.b16 %v4731, %v4729
  %v5188 = vpack.c.b16 %v4734, %v4732
  %v5189 = vpack.c.b16 %v4735, %v4733
  %v5190 = vpack.c.b16 %v4738, %v4736
  %v5191 = vpack.c.b16 %v4739, %v4737
  %v5192 = vpack.c.b16 %v4742, %v4740
  %v5193 = vpack.c.b16 %v4743, %v4741
  %v5194 = vpack.c.b16 %v4746, %v4744
  %v5195 = vpack.c.b16 %v4747, %v4745
  %v5196 = vpack.c.b16 %v4750, %v4748
  %v5197 = vpack.c.b16 %v4751, %v4749
  %v5198 = vpack.c.b16 %v4754, %v4752
  %v5199 = vpack.c.b16 %v4755, %v4753
  %v5200 = vpack.c.b16 %v4758, %v4756
  %v5201 = vpack.c.b16 %v4759, %v4757
  %v5202 = vpack.c.b16 %v4762, %v4760
  %v5203 = vpack.c.b16 %v4763, %v4761
  %v5204 = vpack.c.b16 %v4766, %v4764
  %v5205 = vpack.c.b16 %v4767, %v4765
  %v5206 = vpack.c.b16 %v4770, %v4768
  %v5207 = vpack.c.b16 %v4771, %v4769
  %v5208 = vpack.c.b16 %v4774, %v4772
  %v5209 = vpack.c.b16 %v4775, %v4773
  %v5210 = vpack.c.b16 %v4778, %v4776
  %v5211 = vpack.c.b16 %v4779, %v4777
  %v5212 = vpack.c.b16 %v4782, %v4780
  %v5213 = vpack.c.b16 %v4783, %v4781
  %v5214 = vpack.c.b16 %v4786, %v4784
  %v5215 = vpack.c.b16 %v4787, %v4785
  %v5216 = vpack.c.b16 %v4790, %v4788
  %v5217 = vpack.c.b16 %v4791, %v4789
  %v5218 = vpack.c.b16 %v4794, %v4792
  %v5219 = vpack.c.b16 %v4795, %v4793
  %v5220 = vpack.c.b16 %v4798, %v4796
  %v5221 = vpack.c.b16 %v4799, %v4797
  %v5222 = vpack.c.b16 %v4802, %v4800
  %v5223 = vpack.c.b16 %v4803, %v4801
  %v5224 = vpack.c.b16 %v4806, %v4804
  %v5225 = vpack.c.b16 %v4807, %v4805
  %v5226 = vpack.c.b16 %v4810, %v4808
  %v5227 = vpack.c.b16 %v4811, %v4809
  %v5228 = vpack.c.b16 %v4814, %v4812
  %v5229 = vpack.c.b16 %v4815, %v4813
  %v5230 = vpack.c.b16 %v4818, %v4816
  %v5231 = vpack.c.b16 %v4819, %v4817
  %v5232 = vpack.c.b16 %v4822, %v4820
  %v5233 = vpack.c.b16 %v4823, %v4821
  %v5234 = vpack.c.b16 %v4826, %v4824
  %v5235 = vpack.c.b16 %v4827, %v4825
  %v5236 = vpack.c.b16 %v4830, %v4828
  %v5237 = vpack.c.b16 %v4831, %v4829
  %v5238 = vpack.c.b16 %v4834, %v4832
  %v5239 = vpack.c.b16 %v4835, %v4833
  %v5240 = vpack.c.b16 %v4838, %v4836
  %v5241 = vpack.c.b16 %v4839, %v4837
  %v5242 = vpack.c.b16 %v4842, %v4840
  %v5243 = vpack.c.b16 %v4843, %v4841
  %v5244 = vpack.c.b16 %v4846, %v4844
  %v5245 = vpack.c.b16 %v4847, %v4845
  %v5246 = vpack.c.b16 %v4850, %v4848
  %v5247 = vpack.c.b16 %v4851, %v4849
  %v5248 = vpack.c.b16 %v4854, %v4852
  %v5249 = vpack.c.b16 %v4855, %v4853
  %v5250 = vpack.c.b16 %v4858, %v4856
  %v5251 = vpack.c.b16 %v4859, %v4857
  %v5252 = vpack.c.b16 %v4862, %v4860
  %v5253 = vpack.c.b16 %v4863, %v4861
  %v5254 = vpack.c.b16 %v4866, %v4864
  %v5255 = vpack.c.b16 %v4867, %v4865
  %v5256 = vpack.c.b16 %v4870, %v4868
  %v5257 = vpack.c.b16 %v4871, %v4869
  %v5258 = vpack.c.b16 %v4874, %v4872
  %v5259 = vpack.c.b16 %v4875, %v4873
  %v5260 = vpack.c.b16 %v4878, %v4876
  %v5261 = vpack.c.b16 %v4879, %v4877
  %v5262 = vpack.c.b16 %v4882, %v4880
  %v5263 = vpack.c.b16 %v4883, %v4881
  %v5264 = vpack.c.b16 %v4886, %v4884
  %v5265 = vpack.c.b16 %v4887, %v4885
  %v5266 = vpack.c.b16 %v4890, %v4888
  %v5267 = vpack.c.b16 %v4891, %v4889
  %v5268 = vpack.c.b16 %v4894, %v4892
  %v5269 = vpack.c.b16 %v4895, %v4893
  %v5270 = vpack.c.b16 %v4898, %v4896
  %v5271 = vpack.c.b16 %v4899, %v4897
  %v5272 = vpack.c.b16 %v4902, %v4900
  %v5273 = vpack.c.b16 %v4903, %v4901
  %v5274 = vpack.c.b16 %v4906, %v4904
  %v5275 = vpack.c.b16 %v4907, %v4905
  %v5276 = vpack.c.b16 %v4910, %v4908
  %v5277 = vpack.c.b16 %v4911, %v4909
  %v5278 = vpack.c.b16 %v4914, %v4912
  %v5279 = vpack.c.b16 %v4915, %v4913
  %v5280 = vpack.c.b16 %v4918, %v4916
  %v5281 = vpack.c.b16 %v4919, %v4917
  %v5282 = vpack.c.b16 %v4922, %v4920
  %v5283 = vpack.c.b16 %v4923, %v4921
  %v5284 = vpack.c.b16 %v4926, %v4924
  %v5285 = vpack.c.b16 %v4927, %v4925
  %v5286 = vpack.c.b16 %v4930, %v4928
  %v5287 = vpack.c.b16 %v4931, %v4929
  %v5288 = vpack.c.b16 %v4934, %v4932
  %v5289 = vpack.c.b16 %v4935, %v4933
  %v5290 = vpack.c.b16 %v4938, %v4936
  %v5291 = vpack.c.b16 %v4939, %v4937
  %v5292 = vpack.c.b16 %v4942, %v4940
  %v5293 = vpack.c.b16 %v4943, %v4941
  %v5294 = vpack.c.b16 %v4946, %v4944
  %v5295 = vpack.c.b16 %v4947, %v4945
  %v5296 = vpack.c.b16 %v4950, %v4948
  %v5297 = vpack.c.b16 %v4951, %v4949
  %v5298 = vpack.c.b16 %v4954, %v4952
  %v5299 = vpack.c.b16 %v4955, %v4953
  %v5300 = vpack.c.b16 %v4958, %v4956
  %v5301 = vpack.c.b16 %v4959, %v4957
  %v5302 = vpack.c.b16 %v4962, %v4960
  %v5303 = vpack.c.b16 %v4963, %v4961
  %v5304 = vpack.c.b16 %v4966, %v4964
  %v5305 = vpack.c.b16 %v4967, %v4965
  %v5306 = vpack.c.b16 %v4970, %v4968
  %v5307 = vpack.c.b16 %v4971, %v4969
  %v5308 = vpack.c.b16 %v4974, %v4972
  %v5309 = vpack.c.b16 %v4975, %v4973
  %v5310 = vpack.c.b16 %v4978, %v4976
  %v5311 = vpack.c.b16 %v4979, %v4977
  %v5312 = vpack.c.b16 %v4982, %v4980
  %v5313 = vpack.c.b16 %v4983, %v4981
  %v5314 = vpack.c.b16 %v4986, %v4984
  %v5315 = vpack.c.b16 %v4987, %v4985
  %v5316 = vpack.c.b16 %v4990, %v4988
  %v5317 = vpack.c.b16 %v4991, %v4989
  %v5318 = vpack.c.b16 %v4994, %v4992
  %v5319 = vpack.c.b16 %v4995, %v4993
  %v5320 = vpack.c.b16 %v4998, %v4996
  %v5321 = vpack.c.b16 %v4999, %v4997
  %v5322 = vpack.c.b16 %v5002, %v5000
  %v5323 = vpack.c.b16 %v5003, %v5001
  %v5324 = vpack.c.b16 %v5006, %v5004
  %v5325 = vpack.c.b16 %v5007, %v5005
  %v5326 = vpack.c.b16 %v5010, %v5008
  %v5327 = vpack.c.b16 %v5011, %v5009
  %v5328 = vpack.c.b16 %v5014, %v5012
  %v5329 = vpack.c.b16 %v5015, %v5013
  %v5330 = vpack.c.b16 %v5018, %v5016
  %v5331 = vpack.c.b16 %v5019, %v5017
  %v5332 = vpack.c.b16 %v5022, %v5020
  %v5333 = vpack.c.b16 %v5023, %v5021
  %v5334 = vpack.c.b16 %v5026, %v5024
  %v5335 = vpack.c.b16 %v5027, %v5025
  %v5336 = vpack.c.b16 %v5030, %v5028
  %v5337 = vpack.c.b16 %v5031, %v5029
  %v5338 = vpack.c.b16 %v5034, %v5032
  %v5339 = vpack.c.b16 %v5035, %v5033
  %v5340 = vpack.c.b16 %v5038, %v5036
  %v5341 = vpack.c.b16 %v5039, %v5037
  %v5342 = vpack.c.b16 %v5042, %v5040
  %v5343 = vpack.c.b16 %v5043, %v5041
  %v5344 = vpack.c.b16 %v5046, %v5044
  %v5345 = vpack.c.b16 %v5047, %v5045
  %v5346 = vpack.c.b16 %v5050, %v5048
  %v5347 = vpack.c.b16 %v5051, %v5049
  %v5348 = vpack.c.b16 %v5054, %v5052
  %v5349 = vpack.c.b16 %v5055, %v5053
  %v5350 = vpack.c.b16 %v5058, %v5056
  %v5351 = vpack.c.b16 %v5059, %v5057
  %v5352 = vpack.c.b16 %v5062, %v5060
  %v5353 = vpack.c.b16 %v5063, %v5061
  %v5354 = vpack.c.b16 %v5066, %v5064
  %v5355 = vpack.c.b16 %v5067, %v5065
  %v5356 = vpack.c.b16 %v5070, %v5068
  %v5357 = vpack.c.b16 %v5071, %v5069
  %v5358 = vpack.c.b16 %v5074, %v5072
  %v5359 = vpack.c.b16 %v5075, %v5073
  %v5360 = vpack.c.b16 %v5078, %v5076
  %v5361 = vpack.c.b16 %v5079, %v5077
  %v5362 = vpack.c.b16 %v5082, %v5080
  %v5363 = vpack.c.b16 %v5083, %v5081
  %v5364 = vpack.c.b16 %v5086, %v5084
  %v5365 = vpack.c.b16 %v5087, %v5085
  %v5366 = vpack.c.b16 %v5090, %v5088
  %v5367 = vpack.c.b16 %v5091, %v5089
  %v5368 = vpack.c.b16 %v5094, %v5092
  %v5369 = vpack.c.b16 %v5095, %v5093
  %v5370 = vpack.c.b16 %v5098, %v5096
  %v5371 = vpack.c.b16 %v5099, %v5097
  %v5372 = vpack.c.b16 %v5102, %v5100
  %v5373 = vpack.c.b16 %v5103, %v5101
  %v5374 = vpack.c.b16 %v5106, %v5104
  %v5375 = vpack.c.b16 %v5107, %v5105
  %v5376 = vpack.c.b16 %v5110, %v5108
  %v5377 = vpack.c.b16 %v5111, %v5109
  %v5378 = vpack.c.b16 %v5114, %v5112
  %v5379 = vpack.c.b16 %v5115, %v5113
  %v5380 = vpack.c.b16 %v5118, %v5116
  %v5381 = vpack.c.b16 %v5119, %v5117
  %v5382 = vpack.c.b16 %v5122, %v5120
  %v5383 = vpack.c.b16 %v5123, %v5121
  %v5384 = vpack.c.b16 %v5126, %v5124
  %v5385 = vpack.c.b16 %v5127, %v5125
  %v5386 = vpack.c.b16 %v5130, %v5128
  %v5387 = vpack.c.b16 %v5131, %v5129
  %5644 = vmatprep.subr.bf16.mxu0 %v5147
  %5645 = vmatpush1.bf16.msra.mxu0 %v5146
  %5646 = vmatprep.subr.bf16.mxu0 %v5145
  %5647 = vmatpush1.bf16.msra.mxu0 %v5144
  %5648 = vmatprep.subr.bf16.mxu0 %v5143
  %5649 = vmatpush1.bf16.msra.mxu0 %v5142
  %5650 = vmatprep.subr.bf16.mxu0 %v5141
  %5651 = vmatpush1.bf16.msra.mxu0 %v5140
  %5652 = vmatprep.subr.bf16.mxu0 %v5139
  %5653 = vmatpush1.bf16.msra.mxu0 %v5138
  %5654 = vmatprep.subr.bf16.mxu0 %v5137
  %5655 = vmatpush1.bf16.msra.mxu0 %v5136
  %5656 = vmatprep.subr.bf16.mxu0 %v5135
  %5657 = vmatpush1.bf16.msra.mxu0 %v5134
  %5658 = vmatprep.subr.bf16.mxu0 %v5133
  %5659 = vmatpush1.bf16.msra.mxu0 %v5132
  %5660 = vmatprep.subr.bf16.mxu0 %v5163
  %5661 = vmatpush2.bf16.msra.mxu0 %v5162
  %5662 = vmatprep.subr.bf16.mxu0 %v5161
  %5663 = vmatpush2.bf16.msra.mxu0 %v5160
  %5664 = vmatprep.subr.bf16.mxu0 %v5159
  %5665 = vmatpush2.bf16.msra.mxu0 %v5158
  %5666 = vmatprep.subr.bf16.mxu0 %v5157
  %5667 = vmatpush2.bf16.msra.mxu0 %v5156
  %5668 = vmatprep.subr.bf16.mxu0 %v5155
  %5669 = vmatpush2.bf16.msra.mxu0 %v5154
  %5670 = vmatprep.subr.bf16.mxu0 %v5153
  %5671 = vmatpush2.bf16.msra.mxu0 %v5152
  %5672 = vmatprep.subr.bf16.mxu0 %v5151
  %5673 = vmatpush2.bf16.msra.mxu0 %v5150
  %5674 = vmatprep.subr.bf16.mxu0 %v5149
  %5675 = vmatpush2.bf16.msra.mxu0 %v5148
  %5676 = vmatprep.mubr.bf16.mxu0 %v4081
  %5677 = vmatmul.mubr.bf16.gmra.mxu0 %v4080
  %v5678 = vpop.f32.mrf.mxu0
  %v5679 = vadd.f32 %v4357, %v5678
  %v5680 = vpop.f32.mrf.mxu0
  %v5681 = vadd.f32 %v4361, %v5680
  %v5682 = vpop.f32.mrf.mxu0
  %v5683 = vadd.f32 %v4357, %v5682
  %v5684 = vpop.f32.mrf.mxu0
  %v5685 = vadd.f32 %v4361, %v5684
  %5686 = vdwg.mxu0
  %5687 = vmatprep.subr.bf16.mxu0 %v5179
  %5688 = vmatpush1.bf16.msra.mxu0 %v5178
  %5689 = vmatprep.subr.bf16.mxu0 %v5177
  %5690 = vmatpush1.bf16.msra.mxu0 %v5176
  %5691 = vmatprep.subr.bf16.mxu0 %v5175
  %5692 = vmatpush1.bf16.msra.mxu0 %v5174
  %5693 = vmatprep.subr.bf16.mxu0 %v5173
  %5694 = vmatpush1.bf16.msra.mxu0 %v5172
  %5695 = vmatprep.subr.bf16.mxu0 %v5171
  %5696 = vmatpush1.bf16.msra.mxu0 %v5170
  %5697 = vmatprep.subr.bf16.mxu0 %v5169
  %5698 = vmatpush1.bf16.msra.mxu0 %v5168
  %5699 = vmatprep.subr.bf16.mxu0 %v5167
  %5700 = vmatpush1.bf16.msra.mxu0 %v5166
  %5701 = vmatprep.subr.bf16.mxu0 %v5165
  %5702 = vmatpush1.bf16.msra.mxu0 %v5164
  %5703 = vmatprep.subr.bf16.mxu0 %v5195
  %5704 = vmatpush2.bf16.msra.mxu0 %v5194
  %5705 = vmatprep.subr.bf16.mxu0 %v5193
  %5706 = vmatpush2.bf16.msra.mxu0 %v5192
  %5707 = vmatprep.subr.bf16.mxu0 %v5191
  %5708 = vmatpush2.bf16.msra.mxu0 %v5190
  %5709 = vmatprep.subr.bf16.mxu0 %v5189
  %5710 = vmatpush2.bf16.msra.mxu0 %v5188
  %5711 = vmatprep.subr.bf16.mxu0 %v5187
  %5712 = vmatpush2.bf16.msra.mxu0 %v5186
  %5713 = vmatprep.subr.bf16.mxu0 %v5185
  %5714 = vmatpush2.bf16.msra.mxu0 %v5184
  %5715 = vmatprep.subr.bf16.mxu0 %v5183
  %5716 = vmatpush2.bf16.msra.mxu0 %v5182
  %5717 = vmatprep.subr.bf16.mxu0 %v5181
  %5718 = vmatpush2.bf16.msra.mxu0 %v5180
  %5719 = vmatprep.mubr.bf16.mxu0 %v4083
  %5720 = vmatmul.mubr.bf16.gmra.mxu0 %v4082
  %v5721 = vpop.f32.mrf.mxu0
  %v5722 = vadd.f32 %v5679, %v5721
  %v5723 = vpop.f32.mrf.mxu0
  %v5724 = vadd.f32 %v5681, %v5723
  %v5725 = vpop.f32.mrf.mxu0
  %v5726 = vadd.f32 %v5683, %v5725
  %v5727 = vpop.f32.mrf.mxu0
  %v5728 = vadd.f32 %v5685, %v5727
  %5729 = vdwg.mxu0
  %5730 = vmatprep.subr.bf16.mxu0 %v5211
  %5731 = vmatpush1.bf16.msra.mxu0 %v5210
  %5732 = vmatprep.subr.bf16.mxu0 %v5209
  %5733 = vmatpush1.bf16.msra.mxu0 %v5208
  %5734 = vmatprep.subr.bf16.mxu0 %v5207
  %5735 = vmatpush1.bf16.msra.mxu0 %v5206
  %5736 = vmatprep.subr.bf16.mxu0 %v5205
  %5737 = vmatpush1.bf16.msra.mxu0 %v5204
  %5738 = vmatprep.subr.bf16.mxu0 %v5203
  %5739 = vmatpush1.bf16.msra.mxu0 %v5202
  %5740 = vmatprep.subr.bf16.mxu0 %v5201
  %5741 = vmatpush1.bf16.msra.mxu0 %v5200
  %5742 = vmatprep.subr.bf16.mxu0 %v5199
  %5743 = vmatpush1.bf16.msra.mxu0 %v5198
  %5744 = vmatprep.subr.bf16.mxu0 %v5197
  %5745 = vmatpush1.bf16.msra.mxu0 %v5196
  %5746 = vmatprep.subr.bf16.mxu0 %v5227
  %5747 = vmatpush2.bf16.msra.mxu0 %v5226
  %5748 = vmatprep.subr.bf16.mxu0 %v5225
  %5749 = vmatpush2.bf16.msra.mxu0 %v5224
  %5750 = vmatprep.subr.bf16.mxu0 %v5223
  %5751 = vmatpush2.bf16.msra.mxu0 %v5222
  %5752 = vmatprep.subr.bf16.mxu0 %v5221
  %5753 = vmatpush2.bf16.msra.mxu0 %v5220
  %5754 = vmatprep.subr.bf16.mxu0 %v5219
  %5755 = vmatpush2.bf16.msra.mxu0 %v5218
  %5756 = vmatprep.subr.bf16.mxu0 %v5217
  %5757 = vmatpush2.bf16.msra.mxu0 %v5216
  %5758 = vmatprep.subr.bf16.mxu0 %v5215
  %5759 = vmatpush2.bf16.msra.mxu0 %v5214
  %5760 = vmatprep.subr.bf16.mxu0 %v5213
  %5761 = vmatpush2.bf16.msra.mxu0 %v5212
  %5762 = vmatprep.mubr.bf16.mxu0 %v4085
  %5763 = vmatmul.mubr.bf16.gmra.mxu0 %v4084
  %v5764 = vpop.f32.mrf.mxu0
  %v5765 = vadd.f32 %v5722, %v5764
  %v5766 = vpop.f32.mrf.mxu0
  %v5767 = vadd.f32 %v5724, %v5766
  %v5768 = vpop.f32.mrf.mxu0
  %v5769 = vadd.f32 %v5726, %v5768
  %v5770 = vpop.f32.mrf.mxu0
  %v5771 = vadd.f32 %v5728, %v5770
  %5772 = vdwg.mxu0
  %5773 = vmatprep.subr.bf16.mxu0 %v5243
  %5774 = vmatpush1.bf16.msra.mxu0 %v5242
  %5775 = vmatprep.subr.bf16.mxu0 %v5241
  %5776 = vmatpush1.bf16.msra.mxu0 %v5240
  %5777 = vmatprep.subr.bf16.mxu0 %v5239
  %5778 = vmatpush1.bf16.msra.mxu0 %v5238
  %5779 = vmatprep.subr.bf16.mxu0 %v5237
  %5780 = vmatpush1.bf16.msra.mxu0 %v5236
  %5781 = vmatprep.subr.bf16.mxu0 %v5235
  %5782 = vmatpush1.bf16.msra.mxu0 %v5234
  %5783 = vmatprep.subr.bf16.mxu0 %v5233
  %5784 = vmatpush1.bf16.msra.mxu0 %v5232
  %5785 = vmatprep.subr.bf16.mxu0 %v5231
  %5786 = vmatpush1.bf16.msra.mxu0 %v5230
  %5787 = vmatprep.subr.bf16.mxu0 %v5229
  %5788 = vmatpush1.bf16.msra.mxu0 %v5228
  %5789 = vmatprep.subr.bf16.mxu0 %v5259
  %5790 = vmatpush2.bf16.msra.mxu0 %v5258
  %5791 = vmatprep.subr.bf16.mxu0 %v5257
  %5792 = vmatpush2.bf16.msra.mxu0 %v5256
  %5793 = vmatprep.subr.bf16.mxu0 %v5255
  %5794 = vmatpush2.bf16.msra.mxu0 %v5254
  %5795 = vmatprep.subr.bf16.mxu0 %v5253
  %5796 = vmatpush2.bf16.msra.mxu0 %v5252
  %5797 = vmatprep.subr.bf16.mxu0 %v5251
  %5798 = vmatpush2.bf16.msra.mxu0 %v5250
  %5799 = vmatprep.subr.bf16.mxu0 %v5249
  %5800 = vmatpush2.bf16.msra.mxu0 %v5248
  %5801 = vmatprep.subr.bf16.mxu0 %v5247
  %5802 = vmatpush2.bf16.msra.mxu0 %v5246
  %5803 = vmatprep.subr.bf16.mxu0 %v5245
  %5804 = vmatpush2.bf16.msra.mxu0 %v5244
  %5805 = vmatprep.mubr.bf16.mxu0 %v4087
  %5806 = vmatmul.mubr.bf16.gmra.mxu0 %v4086
  %v5807 = vpop.f32.mrf.mxu0
  %v5808 = vadd.f32 %v5765, %v5807
  %v5809 = vpop.f32.mrf.mxu0
  %v5810 = vadd.f32 %v5767, %v5809
  %v5811 = vpop.f32.mrf.mxu0
  %v5812 = vadd.f32 %v5769, %v5811
  %v5813 = vpop.f32.mrf.mxu0
  %v5814 = vadd.f32 %v5771, %v5813
  %5815 = vdwg.mxu0
  %5816 = vmatprep.subr.bf16.mxu0 %v5275
  %5817 = vmatpush1.bf16.msra.mxu0 %v5274
  %5818 = vmatprep.subr.bf16.mxu0 %v5273
  %5819 = vmatpush1.bf16.msra.mxu0 %v5272
  %5820 = vmatprep.subr.bf16.mxu0 %v5271
  %5821 = vmatpush1.bf16.msra.mxu0 %v5270
  %5822 = vmatprep.subr.bf16.mxu0 %v5269
  %5823 = vmatpush1.bf16.msra.mxu0 %v5268
  %5824 = vmatprep.subr.bf16.mxu0 %v5267
  %5825 = vmatpush1.bf16.msra.mxu0 %v5266
  %5826 = vmatprep.subr.bf16.mxu0 %v5265
  %5827 = vmatpush1.bf16.msra.mxu0 %v5264
  %5828 = vmatprep.subr.bf16.mxu0 %v5263
  %5829 = vmatpush1.bf16.msra.mxu0 %v5262
  %5830 = vmatprep.subr.bf16.mxu0 %v5261
  %5831 = vmatpush1.bf16.msra.mxu0 %v5260
  %5832 = vmatprep.subr.bf16.mxu0 %v5291
  %5833 = vmatpush2.bf16.msra.mxu0 %v5290
  %5834 = vmatprep.subr.bf16.mxu0 %v5289
  %5835 = vmatpush2.bf16.msra.mxu0 %v5288
  %5836 = vmatprep.subr.bf16.mxu0 %v5287
  %5837 = vmatpush2.bf16.msra.mxu0 %v5286
  %5838 = vmatprep.subr.bf16.mxu0 %v5285
  %5839 = vmatpush2.bf16.msra.mxu0 %v5284
  %5840 = vmatprep.subr.bf16.mxu0 %v5283
  %5841 = vmatpush2.bf16.msra.mxu0 %v5282
  %5842 = vmatprep.subr.bf16.mxu0 %v5281
  %5843 = vmatpush2.bf16.msra.mxu0 %v5280
  %5844 = vmatprep.subr.bf16.mxu0 %v5279
  %5845 = vmatpush2.bf16.msra.mxu0 %v5278
  %5846 = vmatprep.subr.bf16.mxu0 %v5277
  %5847 = vmatpush2.bf16.msra.mxu0 %v5276
  %5848 = vmatprep.mubr.bf16.mxu0 %v4089
  %5849 = vmatmul.mubr.bf16.gmra.mxu0 %v4088
  %v5850 = vpop.f32.mrf.mxu0
  %v5851 = vadd.f32 %v5808, %v5850
  %v5852 = vpop.f32.mrf.mxu0
  %v5853 = vadd.f32 %v5810, %v5852
  %v5854 = vpop.f32.mrf.mxu0
  %v5855 = vadd.f32 %v5812, %v5854
  %v5856 = vpop.f32.mrf.mxu0
  %v5857 = vadd.f32 %v5814, %v5856
  %5858 = vdwg.mxu0
  %5859 = vmatprep.subr.bf16.mxu0 %v5307
  %5860 = vmatpush1.bf16.msra.mxu0 %v5306
  %5861 = vmatprep.subr.bf16.mxu0 %v5305
  %5862 = vmatpush1.bf16.msra.mxu0 %v5304
  %5863 = vmatprep.subr.bf16.mxu0 %v5303
  %5864 = vmatpush1.bf16.msra.mxu0 %v5302
  %5865 = vmatprep.subr.bf16.mxu0 %v5301
  %5866 = vmatpush1.bf16.msra.mxu0 %v5300
  %5867 = vmatprep.subr.bf16.mxu0 %v5299
  %5868 = vmatpush1.bf16.msra.mxu0 %v5298
  %5869 = vmatprep.subr.bf16.mxu0 %v5297
  %5870 = vmatpush1.bf16.msra.mxu0 %v5296
  %5871 = vmatprep.subr.bf16.mxu0 %v5295
  %5872 = vmatpush1.bf16.msra.mxu0 %v5294
  %5873 = vmatprep.subr.bf16.mxu0 %v5293
  %5874 = vmatpush1.bf16.msra.mxu0 %v5292
  %5875 = vmatprep.subr.bf16.mxu0 %v5323
  %5876 = vmatpush2.bf16.msra.mxu0 %v5322
  %5877 = vmatprep.subr.bf16.mxu0 %v5321
  %5878 = vmatpush2.bf16.msra.mxu0 %v5320
  %5879 = vmatprep.subr.bf16.mxu0 %v5319
  %5880 = vmatpush2.bf16.msra.mxu0 %v5318
  %5881 = vmatprep.subr.bf16.mxu0 %v5317
  %5882 = vmatpush2.bf16.msra.mxu0 %v5316
  %5883 = vmatprep.subr.bf16.mxu0 %v5315
  %5884 = vmatpush2.bf16.msra.mxu0 %v5314
  %5885 = vmatprep.subr.bf16.mxu0 %v5313
  %5886 = vmatpush2.bf16.msra.mxu0 %v5312
  %5887 = vmatprep.subr.bf16.mxu0 %v5311
  %5888 = vmatpush2.bf16.msra.mxu0 %v5310
  %5889 = vmatprep.subr.bf16.mxu0 %v5309
  %5890 = vmatpush2.bf16.msra.mxu0 %v5308
  %5891 = vmatprep.mubr.bf16.mxu0 %v4091
  %5892 = vmatmul.mubr.bf16.gmra.mxu0 %v4090
  %v5893 = vpop.f32.mrf.mxu0
  %v5894 = vadd.f32 %v5851, %v5893
  %v5895 = vpop.f32.mrf.mxu0
  %v5896 = vadd.f32 %v5853, %v5895
  %v5897 = vpop.f32.mrf.mxu0
  %v5898 = vadd.f32 %v5855, %v5897
  %v5899 = vpop.f32.mrf.mxu0
  %v5900 = vadd.f32 %v5857, %v5899
  %5901 = vdwg.mxu0
  %5902 = vmatprep.subr.bf16.mxu0 %v5339
  %5903 = vmatpush1.bf16.msra.mxu0 %v5338
  %5904 = vmatprep.subr.bf16.mxu0 %v5337
  %5905 = vmatpush1.bf16.msra.mxu0 %v5336
  %5906 = vmatprep.subr.bf16.mxu0 %v5335
  %5907 = vmatpush1.bf16.msra.mxu0 %v5334
  %5908 = vmatprep.subr.bf16.mxu0 %v5333
  %5909 = vmatpush1.bf16.msra.mxu0 %v5332
  %5910 = vmatprep.subr.bf16.mxu0 %v5331
  %5911 = vmatpush1.bf16.msra.mxu0 %v5330
  %5912 = vmatprep.subr.bf16.mxu0 %v5329
  %5913 = vmatpush1.bf16.msra.mxu0 %v5328
  %5914 = vmatprep.subr.bf16.mxu0 %v5327
  %5915 = vmatpush1.bf16.msra.mxu0 %v5326
  %5916 = vmatprep.subr.bf16.mxu0 %v5325
  %5917 = vmatpush1.bf16.msra.mxu0 %v5324
  %5918 = vmatprep.subr.bf16.mxu0 %v5355
  %5919 = vmatpush2.bf16.msra.mxu0 %v5354
  %5920 = vmatprep.subr.bf16.mxu0 %v5353
  %5921 = vmatpush2.bf16.msra.mxu0 %v5352
  %5922 = vmatprep.subr.bf16.mxu0 %v5351
  %5923 = vmatpush2.bf16.msra.mxu0 %v5350
  %5924 = vmatprep.subr.bf16.mxu0 %v5349
  %5925 = vmatpush2.bf16.msra.mxu0 %v5348
  %5926 = vmatprep.subr.bf16.mxu0 %v5347
  %5927 = vmatpush2.bf16.msra.mxu0 %v5346
  %5928 = vmatprep.subr.bf16.mxu0 %v5345
  %5929 = vmatpush2.bf16.msra.mxu0 %v5344
  %5930 = vmatprep.subr.bf16.mxu0 %v5343
  %5931 = vmatpush2.bf16.msra.mxu0 %v5342
  %5932 = vmatprep.subr.bf16.mxu0 %v5341
  %5933 = vmatpush2.bf16.msra.mxu0 %v5340
  %5934 = vmatprep.mubr.bf16.mxu0 %v4093
  %5935 = vmatmul.mubr.bf16.gmra.mxu0 %v4092
  %v5936 = vpop.f32.mrf.mxu0
  %v5937 = vadd.f32 %v5894, %v5936
  %v5938 = vpop.f32.mrf.mxu0
  %v5939 = vadd.f32 %v5896, %v5938
  %v5940 = vpop.f32.mrf.mxu0
  %v5941 = vadd.f32 %v5898, %v5940
  %v5942 = vpop.f32.mrf.mxu0
  %v5943 = vadd.f32 %v5900, %v5942
  %5944 = vdwg.mxu0
  %5945 = vmatprep.subr.bf16.mxu0 %v5371
  %5946 = vmatpush1.bf16.msra.mxu0 %v5370
  %5947 = vmatprep.subr.bf16.mxu0 %v5369
  %5948 = vmatpush1.bf16.msra.mxu0 %v5368
  %5949 = vmatprep.subr.bf16.mxu0 %v5367
  %5950 = vmatpush1.bf16.msra.mxu0 %v5366
  %5951 = vmatprep.subr.bf16.mxu0 %v5365
  %5952 = vmatpush1.bf16.msra.mxu0 %v5364
  %5953 = vmatprep.subr.bf16.mxu0 %v5363
  %5954 = vmatpush1.bf16.msra.mxu0 %v5362
  %5955 = vmatprep.subr.bf16.mxu0 %v5361
  %5956 = vmatpush1.bf16.msra.mxu0 %v5360
  %5957 = vmatprep.subr.bf16.mxu0 %v5359
  %5958 = vmatpush1.bf16.msra.mxu0 %v5358
  %5959 = vmatprep.subr.bf16.mxu0 %v5357
  %5960 = vmatpush1.bf16.msra.mxu0 %v5356
  %5961 = vmatprep.subr.bf16.mxu0 %v5387
  %5962 = vmatpush2.bf16.msra.mxu0 %v5386
  %5963 = vmatprep.subr.bf16.mxu0 %v5385
  %5964 = vmatpush2.bf16.msra.mxu0 %v5384
  %5965 = vmatprep.subr.bf16.mxu0 %v5383
  %5966 = vmatpush2.bf16.msra.mxu0 %v5382
  %5967 = vmatprep.subr.bf16.mxu0 %v5381
  %5968 = vmatpush2.bf16.msra.mxu0 %v5380
  %5969 = vmatprep.subr.bf16.mxu0 %v5379
  %5970 = vmatpush2.bf16.msra.mxu0 %v5378
  %5971 = vmatprep.subr.bf16.mxu0 %v5377
  %5972 = vmatpush2.bf16.msra.mxu0 %v5376
  %5973 = vmatprep.subr.bf16.mxu0 %v5375
  %5974 = vmatpush2.bf16.msra.mxu0 %v5374
  %5975 = vmatprep.subr.bf16.mxu0 %v5373
  %5976 = vmatpush2.bf16.msra.mxu0 %v5372
  %5977 = vmatprep.mubr.bf16.mxu0 %v4095
  %5978 = vmatmul.mubr.bf16.gmra.mxu0 %v4094
  %v5979 = vpop.f32.mrf.mxu0
  %v5980 = vadd.f32 %v5937, %v5979
  %v5981 = vpop.f32.mrf.mxu0
  %v5982 = vadd.f32 %v5939, %v5981
  %v5983 = vpop.f32.mrf.mxu0
  %v5984 = vadd.f32 %v5941, %v5983
  %v5985 = vpop.f32.mrf.mxu0
  %v5986 = vadd.f32 %v5943, %v5985
  %5987 = vdwg.mxu0
  %v5988 = vadd.f32 %v2362, %v5980
  %v5989 = vadd.f32 %v2363, %v5982
  %v5990 = vadd.f32 %v2364, %v5984
  %v5991 = vadd.f32 %v2365, %v5986
  %v5992 = vld [vmem:[%s12] sm:$0x3]
  %v5993 = vld [vmem:[%s13] sm:$0x3]
  %v5994 = vsel %vm224, %v5989, 0.0
  %v5995 = vadd.f32 %v5988, %v5994
  %5996 = vadd.xlane.f32.xlu0 %v5995
  %v5997 = vpop.xlane.xlu0 %5996
  %v5998 = vsel %vm224, %v5991, 0.0
  %v5999 = vadd.f32 %v5990, %v5998
  %6000 = vadd.xlane.f32.xlu0 %v5999
  %v6001 = vpop.xlane.xlu0 %6000
  %v6002 = vmul.f32 %v5997, %v2307
  %v6003 = vmul.f32 %v6001, %v2307
  %v6004 = vsub.f32 %v5988, %v6002
  %v6005 = vsub.f32 %v5989, %v6002
  %v6006 = vsub.f32 %v5990, %v6003
  %v6007 = vsub.f32 %v5991, %v6003
  %v6008 = vmul.f32 %v6004, %v6004
  %v6009 = vmul.f32 %v6005, %v6005
  %v6010 = vmul.f32 %v6006, %v6006
  %v6011 = vmul.f32 %v6007, %v6007
  %v6012 = vsel %vm224, %v6009, 0.0
  %v6013 = vadd.f32 %v6008, %v6012
  %6014 = vadd.xlane.f32.xlu0 %v6013
  %v6015 = vpop.xlane.xlu0 %6014
  %v6016 = vsel %vm224, %v6011, 0.0
  %v6017 = vadd.f32 %v6010, %v6016
  %6018 = vadd.xlane.f32.xlu0 %v6017
  %v6019 = vpop.xlane.xlu0 %6018
  %v6020 = vmul.f32 %v6015, %v2307
  %v6021 = vmul.f32 %v6019, %v2307
  %v6022 = vadd.f32 %v6020, 1e-05
  %v6023 = vadd.f32 %v6021, 1e-05
  %v6024 = vrsqrt.pop %v6022
  %v6025 = vrsqrt.pop %v6023
  %v6026 = vmul.f32 %v6004, %v6024
  %v6027 = vmul.f32 %v6005, %v6024
  %v6028 = vmul.f32 %v6006, %v6025
  %v6029 = vmul.f32 %v6007, %v6025
  %v6031 = vlaneseq
  %v6032 = vshrl.u32 %v6031, 7
  %v6033 = vsub.s32 0, %v6032
  %v6034 = vrot.slane %v5992, %v6033
  %v6035 = vlaneseq
  %v6036 = vshrl.u32 %v6035, 7
  %v6037 = vsub.s32 1, %v6036
  %v6038 = vrot.slane %v5992, %v6037
  %v6041 = vmul.f32 %v6026, %v6034
  %v6042 = vmul.f32 %v6027, %v6038
  %v6043 = vmul.f32 %v6028, %v6034
  %v6044 = vmul.f32 %v6029, %v6038
  %v6046 = vlaneseq
  %v6047 = vshrl.u32 %v6046, 7
  %v6048 = vsub.s32 0, %v6047
  %v6049 = vrot.slane %v5993, %v6048
  %v6050 = vlaneseq
  %v6051 = vshrl.u32 %v6050, 7
  %v6052 = vsub.s32 1, %v6051
  %v6053 = vrot.slane %v5993, %v6052
  %v6056 = vadd.f32 %v6041, %v6049
  %v6057 = vadd.f32 %v6042, %v6053
  %v6058 = vadd.f32 %v6043, %v6049
  %v6059 = vadd.f32 %v6044, %v6053
  %6060 = vst [vmem:[%s18] sm:$0xff] %v6056
  %6061 = vst.msk [vmem:[%s18 + $0x8] sm:$0xff] %vm224, %v6057
  %6062 = vst [vmem:[%s18 + $0x10] sm:$0xff] %v6058
  %6063 = vst.msk [vmem:[%s18 + $0x18] sm:$0xff] %vm224, %v6059
  // Predicated region
  $region74: #{transam_forward.1} parent=0 // pred_check
    _
  $region75: #{transam_forward.1} parent=0 // pred_check_branch
    %6065 = sbr.rel (0) target = $region77
  $region76: #{transam_forward.1} parent=0 // pred_region
    _
  $region77: #{transam_forward.1} parent=0 // pred_fallthru
    _
  // Predicated region
  $region78: #{transam_forward.1} parent=0 // pred_check
    _
  $region79: #{transam_forward.1} parent=0 // pred_check_branch
    %6067 = sbr.rel (0) target = $region81
  $region80: #{transam_forward.1} parent=0 // pred_region
    _
  $region81: #{transam_forward.1} parent=0 // pred_fallthru
    _

</llo_original>
